<compile_context>
chip_gen: v6e
topology: v6e:2x2x1
jax: 0.10.0
libtpu: 0.0.40
codegen_flags: <defaults>
</compile_context>

<pallas_src>
import functools
import math

import jax
import jax.numpy as jnp
from jax.experimental import pallas as pl
from jax.experimental.pallas import tpu as pltpu

EPS = 1e-5                       # PyTorch nn.LayerNorm default
_VMEM_BUDGET = 12 * 1024 * 1024  # double-buffered row streams stay under v5e's 16 MiB default
_MAX_TILE_ROWS = 1024            # large tiles amortize ~0.35 us per-grid-step overhead


def _round_up(n, m):
    return ((n + m - 1) // m) * m


def _pick_tile_rows(rows, bytes_per_row, full_operand_bytes=0):
    """Largest row tile (multiple of 8) whose double-buffered streams fit the budget."""
    avail = max(_VMEM_BUDGET - 2 * full_operand_bytes, 16 * bytes_per_row)
    t = avail // max(2 * bytes_per_row, 1)        # x2 for double buffering
    t = max(8, min(int(t), _MAX_TILE_ROWS))
    t = (t // 8) * 8
    t = min(t, _round_up(rows, 8))
    return max(t, 8)


def _vmem_limit(bytes_needed):
    # Stay at/above the smallest default scoped limit (16 MiB on v5e) and well
    # below v7x's 64 MiB physical VMEM per TensorCore.
    return int(min(32 << 20, max(bytes_needed + (4 << 20), 16 << 20)))


def _row_params(tile, bytes_per_row, full_operand_bytes=0):
    need = 2 * tile * bytes_per_row + 2 * full_operand_bytes
    return pltpu.CompilerParams(
        dimension_semantics=("parallel",),
        vmem_limit_bytes=_vmem_limit(need),
    )


def _layer_norm(s, gamma, beta):
    """LayerNorm over the last dim, f32 two-pass stats."""
    inv_d = 1.0 / s.shape[-1]
    mean = jnp.sum(s, axis=-1, keepdims=True) * inv_d
    d = s - mean
    var = jnp.sum(d * d, axis=-1, keepdims=True) * inv_d
    return d * jax.lax.rsqrt(var + EPS) * gamma + beta


# ---------------------------------------------------------------------------
# Generic row-tiled Linear: y = x @ W + b (optional fused ReLU)
# ---------------------------------------------------------------------------
def _linear_kernel(x_ref, w_ref, b_ref, o_ref, *, activation):
    x = x_ref[...].astype(jnp.float32)
    w = w_ref[...].astype(jnp.float32)
    y = jnp.dot(x, w, preferred_element_type=jnp.float32)
    y = y + b_ref[...].astype(jnp.float32)
    if activation == "relu":
        y = jnp.maximum(y, 0.0)
    o_ref[...] = y.astype(o_ref.dtype)


def linear(x, w, b, *, activation=None):
    """x: (..., K), w: (K, N), b: (N,) -> (..., N)."""
    *lead, K = x.shape
    Kw, N = w.shape
    assert K == Kw
    rows = math.prod(lead) if lead else 1
    x2 = x.reshape(rows, K)

    bytes_per_row = (K + N) * 4            # per-row tile traffic (x tile + out tile, f32)
    full_bytes = (K * N + N) * 4           # resident weights + bias
    tile = _pick_tile_rows(rows, bytes_per_row, full_bytes)
    padded = _round_up(rows, tile)
    if padded != rows:
        x2 = jnp.pad(x2, ((0, padded - rows), (0, 0)))

    out = pl.pallas_call(
        functools.partial(_linear_kernel, activation=activation),
        out_shape=jax.ShapeDtypeStruct((padded, N), x.dtype),
        grid_spec=pltpu.PrefetchScalarGridSpec(
            num_scalar_prefetch=0,
            grid=(padded // tile,),
            in_specs=[
                pl.BlockSpec((tile, K), lambda i: (i, 0)),
                pl.BlockSpec((K, N), lambda i: (0, 0)),
                pl.BlockSpec((1, N), lambda i: (0, 0)),
            ],
            out_specs=pl.BlockSpec((tile, N), lambda i: (i, 0)),
        ),
        compiler_params=_row_params(tile, bytes_per_row, full_bytes),
    )(x2, w, b.reshape(1, N))
    return out[:rows].reshape(*lead, N)


# ---------------------------------------------------------------------------
# Fused input embedding: geohash/nd projections + concat-linear + PE add
# (concat avoided by splitting the main Linear weight into partial matmuls)
# ---------------------------------------------------------------------------
def _input_embed_kernel(sl_ref, gh_ref, nd_ref, wsl_ref, wg1_ref, bg1_ref, wg2_ref,
                        wn1_ref, bn1_ref, wn2_ref, b_ref, pe_ref, o_ref):
    f32 = jnp.float32
    sl = sl_ref[0].astype(f32)                   # (S, shuzhi+leibie)
    gh = gh_ref[0].astype(f32)                   # (S, geohash_dim)
    nd = nd_ref[0].astype(f32)                   # (S, nd_dim)
    ghh = jnp.dot(gh, wg1_ref[...].astype(f32),
                  preferred_element_type=f32) + bg1_ref[...].astype(f32)
    ndh = jnp.dot(nd, wn1_ref[...].astype(f32),
                  preferred_element_type=f32) + bn1_ref[...].astype(f32)
    x = (jnp.dot(sl, wsl_ref[...].astype(f32), preferred_element_type=f32)
         + jnp.dot(ghh, wg2_ref[...].astype(f32), preferred_element_type=f32)
         + jnp.dot(ndh, wn2_ref[...].astype(f32), preferred_element_type=f32)
         + b_ref[...].astype(f32)
         + pe_ref[...].astype(f32))
    o_ref[0] = x.astype(o_ref.dtype)


def input_embed(sl, geohash, nd, params, pe):
    """sl: (B,S,shuzhi+leibie), geohash: (B,S,Cg), nd: (B,S,Cn), pe: (S,D) -> (B,S,D)."""
    B, S, C_sl = sl.shape
    Cg = geohash.shape[-1]
    Cn = nd.shape[-1]
    wg1, bg1 = params["geohash_w"], params["geohash_b"]
    wn1, bn1 = params["nd_w"], params["nd_b"]
    Hg = wg1.shape[1]
    Hn = wn1.shape[1]
    w, b = params["linear_w"], params["linear_b"]
    D = w.shape[1]
    # Split the concat-linear weight so no in-kernel concatenation is needed.
    wsl = w[:C_sl]
    wg2 = w[C_sl:C_sl + Hg]
    wn2 = w[C_sl + Hg:C_sl + Hg + Hn]

    bytes_need = 4 * (S * (C_sl + Cg + Cn + 2 * D)
                      + C_sl * D + Cg * Hg + Hg * D + Cn * Hn + Hn * D
                      + 2 * (Hg + Hn) + 2 * D + S * D)
    return pl.pallas_call(
        _input_embed_kernel,
        out_shape=jax.ShapeDtypeStruct((B, S, D), sl.dtype),
        grid_spec=pltpu.PrefetchScalarGridSpec(
            num_scalar_prefetch=0,
            grid=(B,),
            in_specs=[
                pl.BlockSpec((1, S, C_sl), lambda i: (i, 0, 0)),
                pl.BlockSpec((1, S, Cg), lambda i: (i, 0, 0)),
                pl.BlockSpec((1, S, Cn), lambda i: (i, 0, 0)),
                pl.BlockSpec((C_sl, D), lambda i: (0, 0)),
                pl.BlockSpec((Cg, Hg), lambda i: (0, 0)),
                pl.BlockSpec((1, Hg), lambda i: (0, 0)),
                pl.BlockSpec((Hg, D), lambda i: (0, 0)),
                pl.BlockSpec((Cn, Hn), lambda i: (0, 0)),
                pl.BlockSpec((1, Hn), lambda i: (0, 0)),
                pl.BlockSpec((Hn, D), lambda i: (0, 0)),
                pl.BlockSpec((1, D), lambda i: (0, 0)),
                pl.BlockSpec((S, D), lambda i: (0, 0)),
            ],
            out_specs=pl.BlockSpec((1, S, D), lambda i: (i, 0, 0)),
        ),
        compiler_params=pltpu.CompilerParams(
            dimension_semantics=("parallel",),
            vmem_limit_bytes=_vmem_limit(2 * bytes_need),
        ),
    )(sl, geohash, nd, wsl, wg1, bg1.reshape(1, Hg), wg2,
      wn1, bn1.reshape(1, Hn), wn2, b.reshape(1, D), pe)


# ---------------------------------------------------------------------------
# Fused multi-head attention + output projection (W_0) + residual + LayerNorm
# One batch element per grid step; W_0 is applied head-wise (no head concat).
# ---------------------------------------------------------------------------
def _attn_block_kernel(x_ref, q_ref, k_ref, v_ref, w0_ref, b0_ref, g_ref, b_ref,
                       o_ref, *, scale):
    f32 = jnp.float32
    x = x_ref[0].astype(f32)                     # (S, D)
    q = q_ref[0].astype(f32)                     # (H, S, dh)
    k = k_ref[0].astype(f32)
    v = v_ref[0].astype(f32)
    H = q.shape[0]

    mha = b0_ref[...].astype(f32)                # (1, D) -> broadcasts over S
    for h in range(H):                           # static unroll (H small)
        qh, kh, vh = q[h], k[h], v[h]            # (S, dh)
        s = jnp.einsum("qd,kd->qk", qh, kh, preferred_element_type=f32) * scale
        s = s - jnp.max(s, axis=-1, keepdims=True)
        p = jnp.exp(s)
        p = p / jnp.sum(p, axis=-1, keepdims=True)
        oh = jnp.dot(p, vh, preferred_element_type=f32)          # (S, dh)
        mha = mha + jnp.dot(oh, w0_ref[h].astype(f32),
                            preferred_element_type=f32)          # (S, D)

    out = _layer_norm(x + mha, g_ref[...].astype(f32), b_ref[...].astype(f32))
    o_ref[0] = out.astype(o_ref.dtype)


def attention_block(x, q, k, v, w0_heads, b0, gamma, beta, *, scale):
    """x: (B,S,D); q,k,v: (B,H,S,dh); w0_heads: (H,dh,D) -> LayerNorm(x + MHA(x))."""
    # TODO(synk): optional src_mask (masked_fill before softmax) is not wired in;
    # the reference forward in this script uses mask=None.
    B, H, S, dh = q.shape
    D = x.shape[-1]
    xspec = pl.BlockSpec((1, S, D), lambda b: (b, 0, 0))
    hspec = pl.BlockSpec((1, H, S, dh), lambda b: (b, 0, 0, 0))
    vecD = pl.BlockSpec((1, D), lambda b: (0, 0))
    bytes_need = 4 * (2 * S * D + 3 * H * S * dh + S * S + H * dh * D + 3 * D)
    return pl.pallas_call(
        functools.partial(_attn_block_kernel, scale=scale),
        out_shape=jax.ShapeDtypeStruct((B, S, D), x.dtype),
        grid_spec=pltpu.PrefetchScalarGridSpec(
            num_scalar_prefetch=0,
            grid=(B,),
            in_specs=[xspec, hspec, hspec, hspec,
                      pl.BlockSpec((H, dh, D), lambda b: (0, 0, 0)),
                      vecD, vecD, vecD],
            out_specs=xspec,
        ),
        compiler_params=pltpu.CompilerParams(
            dimension_semantics=("parallel",),
            vmem_limit_bytes=_vmem_limit(2 * bytes_need),
        ),
    )(x, q, k, v, w0_heads, b0.reshape(1, D), gamma.reshape(1, D), beta.reshape(1, D))


# ---------------------------------------------------------------------------
# Fused position-wise FFN + residual add + LayerNorm (row-tiled)
# ---------------------------------------------------------------------------
def _ffn_add_norm_kernel(x_ref, w1_ref, b1_ref, w2_ref, b2_ref, g_ref, b_ref, o_ref):
    f32 = jnp.float32
    x = x_ref[...].astype(f32)                   # (tile, D)
    h = jnp.dot(x, w1_ref[...].astype(f32), preferred_element_type=f32)
    h = jnp.maximum(h + b1_ref[...].astype(f32), 0.0)
    y = jnp.dot(h, w2_ref[...].astype(f32), preferred_element_type=f32)
    y = y + b2_ref[...].astype(f32)
    out = _layer_norm(x + y, g_ref[...].astype(f32), b_ref[...].astype(f32))
    o_ref[...] = out.astype(o_ref.dtype)


def ffn_add_norm(x, w1, b1, w2, b2, gamma, beta):
    *lead, D = x.shape
    F = w1.shape[1]
    rows = math.prod(lead) if lead else 1
    x2 = x.reshape(rows, D)

    bytes_per_row = (2 * D + F) * 4
    full_bytes = (D * F + F + F * D + 3 * D) * 4
    tile = _pick_tile_rows(rows, bytes_per_row, full_bytes)
    padded = _round_up(rows, tile)
    if padded != rows:
        x2 = jnp.pad(x2, ((0, padded - rows), (0, 0)))

    out = pl.pallas_call(
        _ffn_add_norm_kernel,
        out_shape=jax.ShapeDtypeStruct((padded, D), x.dtype),
        grid_spec=pltpu.PrefetchScalarGridSpec(
            num_scalar_prefetch=0,
            grid=(padded // tile,),
            in_specs=[
                pl.BlockSpec((tile, D), lambda i: (i, 0)),
                pl.BlockSpec((D, F), lambda i: (0, 0)),
                pl.BlockSpec((1, F), lambda i: (0, 0)),
                pl.BlockSpec((F, D), lambda i: (0, 0)),
                pl.BlockSpec((1, D), lambda i: (0, 0)),
                pl.BlockSpec((1, D), lambda i: (0, 0)),
                pl.BlockSpec((1, D), lambda i: (0, 0)),
            ],
            out_specs=pl.BlockSpec((tile, D), lambda i: (i, 0)),
        ),
        compiler_params=_row_params(tile, bytes_per_row, full_bytes),
    )(x2, w1, b1.reshape(1, F), w2, b2.reshape(1, D),
      gamma.reshape(1, D), beta.reshape(1, D))
    return out[:rows].reshape(*lead, D)


# ---------------------------------------------------------------------------
# Model assembly (host-side composition of Pallas kernels)
# ---------------------------------------------------------------------------
def encoder_block_forward(p, x, n_heads):
    B, S, D = x.shape
    H = n_heads
    dh = D // H

    # Fused QKV projection: one MXU pass, N = 3*D.
    w_qkv = jnp.concatenate([p["W_q_w"], p["W_k_w"], p["W_v_w"]], axis=1)
    b_qkv = jnp.concatenate([p["W_q_b"], p["W_k_b"], p["W_v_b"]])
    qkv = linear(x, w_qkv, b_qkv)                # (B, S, 3D)
    q, k, v = jnp.split(qkv, 3, axis=-1)

    def split(t):  # (B,S,D) -> (B,H,S,dh)   (layout plumbing, jnp)
        return t.reshape(B, S, H, dh).transpose(0, 2, 1, 3)

    # dropout_layer_1 / attention_dropout: identity in inference
    x1 = attention_block(
        x, split(q), split(k), split(v),
        p["W_0_w"].reshape(H, dh, D), p["W_0_b"],
        p["ln1_g"], p["ln1_b"], scale=1.0 / math.sqrt(dh))

    # FFN-internal dropout / dropout_layer_2: identity in inference
    return ffn_add_norm(x1, p["ffn_w1_w"], p["ffn_w1_b"],
                        p["ffn_w2_w"], p["ffn_w2_b"],
                        p["ln2_g"], p["ln2_b"])


def transformer_encoder_extractor_forward(params, shuzhi, leibie, geohash, nd, *, n_heads):
    sl = jnp.concatenate([shuzhi, leibie], axis=-1)      # raw features, tiny concat
    S = sl.shape[1]
    pe = params["pe_table"][:S].astype(sl.dtype)         # PositionalEncoding (dropout = identity)
    x = input_embed(sl, geohash, nd, params, pe)
    for blk in params["blocks"]:
        x = encoder_block_forward(blk, x, n_heads)
    return x


# ---------------------------------------------------------------------------
# Parameters / PE table / pure-JAX reference
# ---------------------------------------------------------------------------
def make_pe_table(max_seq_len, d_model):
    pos = jnp.arange(max_seq_len, dtype=jnp.float32)[:, None]
    idx = jnp.arange(d_model)[None, :]
    rates = 1.0 / jnp.power(10000.0, (2 * (idx // 2)).astype(jnp.float32) / d_model)
    ang = pos * rates
    return jnp.where(idx % 2 == 0, jnp.sin(ang), jnp.cos(ang))     # (max_seq_len, d_model)


def _xavier(key, fan_in, fan_out):
    bound = math.sqrt(6.0 / (fan_in + fan_out))
    return jax.random.uniform(key, (fan_in, fan_out), jnp.float32, -bound, bound)


def _bias(key, n):
    return jax.random.uniform(key, (n,), jnp.float32, -0.05, 0.05)


def init_params(key, *, d_model, n_blocks, n_heads, d_ff,
                shuzhi_dim=5, leibie_dim=4, geohash_dim=45, hidden_geohash_dim=16,
                nd_dim=128, hidden_nd_dim=16, max_seq_len=15):
    del n_heads
    keys = iter(jax.random.split(key, 6 + 12 * n_blocks))
    cat_dim = shuzhi_dim + leibie_dim + hidden_geohash_dim + hidden_nd_dim
    params = {
        "geohash_w": _xavier(next(keys), geohash_dim, hidden_geohash_dim),
        "geohash_b": _bias(next(keys), hidden_geohash_dim),
        "nd_w": _xavier(next(keys), nd_dim, hidden_nd_dim),
        "nd_b": _bias(next(keys), hidden_nd_dim),
        "linear_w": _xavier(next(keys), cat_dim, d_model),
        "linear_b": _bias(next(keys), d_model),
        "pe_table": make_pe_table(max_seq_len, d_model),
        "blocks": [],
    }
    for _ in range(n_blocks):
        blk = {
            "W_q_w": _xavier(next(keys), d_model, d_model), "W_q_b": _bias(next(keys), d_model),
            "W_k_w": _xavier(next(keys), d_model, d_model), "W_k_b": _bias(next(keys), d_model),
            "W_v_w": _xavier(next(keys), d_model, d_model), "W_v_b": _bias(next(keys), d_model),
            "W_0_w": _xavier(next(keys), d_model, d_model), "W_0_b": _bias(next(keys), d_model),
            "ffn_w1_w": _xavier(next(keys), d_model, d_ff), "ffn_w1_b": _bias(next(keys), d_ff),
            "ffn_w2_w": _xavier(next(keys), d_ff, d_model), "ffn_w2_b": _bias(next(keys), d_model),
            "ln1_g": jnp.ones((d_model,), jnp.float32), "ln1_b": jnp.zeros((d_model,), jnp.float32),
            "ln2_g": jnp.ones((d_model,), jnp.float32), "ln2_b": jnp.zeros((d_model,), jnp.float32),
        }
        params["blocks"].append(blk)
    return params


def _layer_norm_ref(s, g, b):
    mean = jnp.mean(s, axis=-1, keepdims=True)
    var = jnp.mean((s - mean) ** 2, axis=-1, keepdims=True)
    return (s - mean) / jnp.sqrt(var + EPS) * g + b


def reference_forward(params, shuzhi, leibie, geohash, nd, *, n_heads):
    def lin(x, w, b, act=None):
        y = x @ w + b
        return jnp.maximum(y, 0.0) if act == "relu" else y

    gh = lin(geohash, params["geohash_w"], params["geohash_b"])
    ndh = lin(nd, params["nd_w"], params["nd_b"])
    feat = jnp.concatenate([shuzhi, leibie, gh, ndh], axis=-1)
    x = lin(feat, params["linear_w"], params["linear_b"])
    S = x.shape[1]
    x = x + params["pe_table"][:S][None]
    for p in params["blocks"]:
        B, S, D = x.shape
        H = n_heads
        dh = D // H
        q = lin(x, p["W_q_w"], p["W_q_b"])
        k = lin(x, p["W_k_w"], p["W_k_b"])
        v = lin(x, p["W_v_w"], p["W_v_b"])

        def split(t):
            return t.reshape(B, S, H, dh).transpose(0, 2, 1, 3)

        qh, kh, vh = split(q), split(k), split(v)
        s = jnp.einsum("bhqd,bhkd->bhqk", qh, kh) / math.sqrt(dh)
        a = jax.nn.softmax(s, axis=-1)
        o = jnp.einsum("bhqk,bhkd->bhqd", a, vh).transpose(0, 2, 1, 3).reshape(B, S, D)
        mha = lin(o, p["W_0_w"], p["W_0_b"])
        x1 = _layer_norm_ref(x + mha, p["ln1_g"], p["ln1_b"])
        ff = lin(lin(x1, p["ffn_w1_w"], p["ffn_w1_b"], "relu"), p["ffn_w2_w"], p["ffn_w2_b"])
        x = _layer_norm_ref(x1 + ff, p["ln2_g"], p["ln2_b"])
    return x


if __name__ == "__main__":
    # Small shapes consistent with the module defaults (len_history=15 >= seq).
    d_model, n_blocks, n_heads, d_ff = 32, 2, 4, 64
    batch, seq = 2, 8
    shuzhi_dim, leibie_dim, geohash_dim, nd_dim = 5, 4, 45, 128

    root = jax.random.PRNGKey(0)
    kp, k1, k2, k3, k4 = jax.random.split(root, 5)
    params = init_params(kp, d_model=d_model, n_blocks=n_blocks, n_heads=n_heads, d_ff=d_ff)

    shuzhi = jax.random.normal(k1, (batch, seq, shuzhi_dim), jnp.float32)
    leibie = jax.random.normal(k2, (batch, seq, leibie_dim), jnp.float32)
    geohash = jax.random.normal(k3, (batch, seq, geohash_dim), jnp.float32)
    nd = jax.random.normal(k4, (batch, seq, nd_dim), jnp.float32)

    fwd = jax.jit(functools.partial(transformer_encoder_extractor_forward, n_heads=n_heads))
    out = jax.block_until_ready(fwd(params, shuzhi, leibie, geohash, nd))

    ref = jax.block_until_ready(
        reference_forward(params, shuzhi, leibie, geohash, nd, n_heads=n_heads))

    assert out.shape == (batch, seq, d_model)
    assert bool(jnp.all(jnp.isfinite(out)))
    max_err = float(jnp.max(jnp.abs(out - ref)))
    assert jnp.allclose(out, ref, atol=2e-4, rtol=2e-4), f"mismatch vs reference: {max_err}"

    print("KERNEL_OK")
</pallas_src>

<mosaic_0001>
module attributes {stable_mosaic.version = 11 : i64} {
  func.func @_input_embed_kernel(%arg0: i32, %arg1: memref<1x8x9xf32, #tpu.memory_space<vmem>>, %arg2: memref<1x8x45xf32, #tpu.memory_space<vmem>>, %arg3: memref<1x8x128xf32, #tpu.memory_space<vmem>>, %arg4: memref<9x32xf32, #tpu.memory_space<vmem>>, %arg5: memref<45x16xf32, #tpu.memory_space<vmem>>, %arg6: memref<1x16xf32, #tpu.memory_space<vmem>>, %arg7: memref<16x32xf32, #tpu.memory_space<vmem>>, %arg8: memref<128x16xf32, #tpu.memory_space<vmem>>, %arg9: memref<1x16xf32, #tpu.memory_space<vmem>>, %arg10: memref<16x32xf32, #tpu.memory_space<vmem>>, %arg11: memref<1x32xf32, #tpu.memory_space<vmem>>, %arg12: memref<8x32xf32, #tpu.memory_space<vmem>>, %arg13: memref<1x8x32xf32, #tpu.memory_space<vmem>>) attributes {dimension_semantics = [#tpu.dimension_semantics<parallel>], iteration_bounds = array<i64: 2>, scalar_prefetch = 0 : i64, scratch_operands = 0 : i64, tpu.core_type = #tpu.core_type<tc>, window_params = [{transform_indices = @transform_0, window_bounds = array<i64: 1, 8, 9>}, {transform_indices = @transform_1, window_bounds = array<i64: 1, 8, 45>}, {transform_indices = @transform_2, window_bounds = array<i64: 1, 8, 128>}, {pipeline_mode = #tpu.pipeline_mode<synchronous>, transform_indices = @transform_3, window_bounds = array<i64: 9, 32>}, {pipeline_mode = #tpu.pipeline_mode<synchronous>, transform_indices = @transform_4, window_bounds = array<i64: 45, 16>}, {pipeline_mode = #tpu.pipeline_mode<synchronous>, transform_indices = @transform_5, window_bounds = array<i64: 1, 16>}, {pipeline_mode = #tpu.pipeline_mode<synchronous>, transform_indices = @transform_6, window_bounds = array<i64: 16, 32>}, {pipeline_mode = #tpu.pipeline_mode<synchronous>, transform_indices = @transform_7, window_bounds = array<i64: 128, 16>}, {pipeline_mode = #tpu.pipeline_mode<synchronous>, transform_indices = @transform_8, window_bounds = array<i64: 1, 16>}, {pipeline_mode = #tpu.pipeline_mode<synchronous>, transform_indices = @transform_9, window_bounds = array<i64: 16, 32>}, {pipeline_mode = #tpu.pipeline_mode<synchronous>, transform_indices = @transform_10, window_bounds = array<i64: 1, 32>}, {pipeline_mode = #tpu.pipeline_mode<synchronous>, transform_indices = @transform_11, window_bounds = array<i64: 8, 32>}, {transform_indices = @transform_12, window_bounds = array<i64: 1, 8, 32>}]} {
    %c0 = arith.constant 0 : index
    %c0_0 = arith.constant 0 : index
    %c0_1 = arith.constant 0 : index
    %0 = vector.load %arg1[%c0, %c0_0, %c0_1] : memref<1x8x9xf32, #tpu.memory_space<vmem>>, vector<1x8x9xf32>
    %1 = vector.shape_cast %0 : vector<1x8x9xf32> to vector<8x9xf32>
    %c0_2 = arith.constant 0 : index
    %c0_3 = arith.constant 0 : index
    %c0_4 = arith.constant 0 : index
    %2 = vector.load %arg2[%c0_2, %c0_3, %c0_4] : memref<1x8x45xf32, #tpu.memory_space<vmem>>, vector<1x8x45xf32>
    %3 = vector.shape_cast %2 : vector<1x8x45xf32> to vector<8x45xf32>
    %c0_5 = arith.constant 0 : index
    %c0_6 = arith.constant 0 : index
    %c0_7 = arith.constant 0 : index
    %4 = vector.load %arg3[%c0_5, %c0_6, %c0_7] : memref<1x8x128xf32, #tpu.memory_space<vmem>>, vector<1x8x128xf32>
    %5 = vector.shape_cast %4 : vector<1x8x128xf32> to vector<8x128xf32>
    %c0_8 = arith.constant 0 : index
    %c0_9 = arith.constant 0 : index
    %6 = vector.load %arg5[%c0_8, %c0_9] : memref<45x16xf32, #tpu.memory_space<vmem>>, vector<45x16xf32>
    %cst = arith.constant dense<0.000000e+00> : vector<8x16xf32>
    %7 = tpu.matmul %3, %6, %cst {dimension_numbers = #tpu.dot_dimension_numbers<[1], [0], [0], [1], [0, 0, 1, 1], [], []>} : vector<8x45xf32>, vector<45x16xf32>, vector<8x16xf32> -> vector<8x16xf32>
    %c0_10 = arith.constant 0 : index
    %c0_11 = arith.constant 0 : index
    %8 = vector.load %arg6[%c0_10, %c0_11] : memref<1x16xf32, #tpu.memory_space<vmem>>, vector<1x16xf32>
    %9 = vector.broadcast %8 : vector<1x16xf32> to vector<8x16xf32>
    %10 = arith.addf %7, %9 : vector<8x16xf32>
    %c0_12 = arith.constant 0 : index
    %c0_13 = arith.constant 0 : index
    %11 = vector.load %arg8[%c0_12, %c0_13] : memref<128x16xf32, #tpu.memory_space<vmem>>, vector<128x16xf32>
    %cst_14 = arith.constant dense<0.000000e+00> : vector<8x16xf32>
    %12 = tpu.matmul %5, %11, %cst_14 {dimension_numbers = #tpu.dot_dimension_numbers<[1], [0], [0], [1], [0, 0, 1, 1], [], []>} : vector<8x128xf32>, vector<128x16xf32>, vector<8x16xf32> -> vector<8x16xf32>
    %c0_15 = arith.constant 0 : index
    %c0_16 = arith.constant 0 : index
    %13 = vector.load %arg9[%c0_15, %c0_16] : memref<1x16xf32, #tpu.memory_space<vmem>>, vector<1x16xf32>
    %14 = vector.broadcast %13 : vector<1x16xf32> to vector<8x16xf32>
    %15 = arith.addf %12, %14 : vector<8x16xf32>
    %c0_17 = arith.constant 0 : index
    %c0_18 = arith.constant 0 : index
    %16 = vector.load %arg4[%c0_17, %c0_18] : memref<9x32xf32, #tpu.memory_space<vmem>>, vector<9x32xf32>
    %cst_19 = arith.constant dense<0.000000e+00> : vector<8x32xf32>
    %17 = tpu.matmul %1, %16, %cst_19 {dimension_numbers = #tpu.dot_dimension_numbers<[1], [0], [0], [1], [0, 0, 1, 1], [], []>} : vector<8x9xf32>, vector<9x32xf32>, vector<8x32xf32> -> vector<8x32xf32>
    %c0_20 = arith.constant 0 : index
    %c0_21 = arith.constant 0 : index
    %18 = vector.load %arg7[%c0_20, %c0_21] : memref<16x32xf32, #tpu.memory_space<vmem>>, vector<16x32xf32>
    %cst_22 = arith.constant dense<0.000000e+00> : vector<8x32xf32>
    %19 = tpu.matmul %10, %18, %cst_22 {dimension_numbers = #tpu.dot_dimension_numbers<[1], [0], [0], [1], [0, 0, 1, 1], [], []>} : vector<8x16xf32>, vector<16x32xf32>, vector<8x32xf32> -> vector<8x32xf32>
    %20 = arith.addf %17, %19 : vector<8x32xf32>
    %c0_23 = arith.constant 0 : index
    %c0_24 = arith.constant 0 : index
    %21 = vector.load %arg10[%c0_23, %c0_24] : memref<16x32xf32, #tpu.memory_space<vmem>>, vector<16x32xf32>
    %cst_25 = arith.constant dense<0.000000e+00> : vector<8x32xf32>
    %22 = tpu.matmul %15, %21, %cst_25 {dimension_numbers = #tpu.dot_dimension_numbers<[1], [0], [0], [1], [0, 0, 1, 1], [], []>} : vector<8x16xf32>, vector<16x32xf32>, vector<8x32xf32> -> vector<8x32xf32>
    %23 = arith.addf %20, %22 : vector<8x32xf32>
    %c0_26 = arith.constant 0 : index
    %c0_27 = arith.constant 0 : index
    %24 = vector.load %arg11[%c0_26, %c0_27] : memref<1x32xf32, #tpu.memory_space<vmem>>, vector<1x32xf32>
    %25 = vector.broadcast %24 : vector<1x32xf32> to vector<8x32xf32>
    %26 = arith.addf %23, %25 : vector<8x32xf32>
    %c0_28 = arith.constant 0 : index
    %c0_29 = arith.constant 0 : index
    %27 = vector.load %arg12[%c0_28, %c0_29] : memref<8x32xf32, #tpu.memory_space<vmem>>, vector<8x32xf32>
    %28 = arith.addf %26, %27 : vector<8x32xf32>
    %c0_30 = arith.constant 0 : index
    %c0_31 = arith.constant 0 : index
    %c0_32 = arith.constant 0 : index
    %29 = vector.load %arg13[%c0_30, %c0_31, %c0_32] : memref<1x8x32xf32, #tpu.memory_space<vmem>>, vector<1x8x32xf32>
    %30 = vector.shape_cast %29 : vector<1x8x32xf32> to vector<8x32xf32>
    %31 = vector.shape_cast %28 : vector<8x32xf32> to vector<1x8x32xf32>
    tpu.vector_store %arg13[%c0_30, %c0_31, %c0_32], %31 {strides = array<i32>} : memref<1x8x32xf32, #tpu.memory_space<vmem>>, vector<1x8x32xf32>,
    return
  }
  func.func @transform_0(%arg0: i32) -> (i32, i32, i32) {
    %c0_i32 = arith.constant 0 : i32
    %c0_i32_0 = arith.constant 0 : i32
    %c0_i32_1 = arith.constant 0 : i32
    return %arg0, %c0_i32, %c0_i32_0 : i32, i32, i32
  }
  func.func @transform_1(%arg0: i32) -> (i32, i32, i32) {
    %c0_i32 = arith.constant 0 : i32
    %c0_i32_0 = arith.constant 0 : i32
    %c0_i32_1 = arith.constant 0 : i32
    return %arg0, %c0_i32, %c0_i32_0 : i32, i32, i32
  }
  func.func @transform_2(%arg0: i32) -> (i32, i32, i32) {
    %c0_i32 = arith.constant 0 : i32
    %c0_i32_0 = arith.constant 0 : i32
    %c0_i32_1 = arith.constant 0 : i32
    return %arg0, %c0_i32, %c0_i32_0 : i32, i32, i32
  }
  func.func @transform_3(%arg0: i32) -> (i32, i32) {
    %c0_i32 = arith.constant 0 : i32
    %c0_i32_0 = arith.constant 0 : i32
    %c0_i32_1 = arith.constant 0 : i32
    return %c0_i32, %c0_i32_0 : i32, i32
  }
  func.func @transform_4(%arg0: i32) -> (i32, i32) {
    %c0_i32 = arith.constant 0 : i32
    %c0_i32_0 = arith.constant 0 : i32
    %c0_i32_1 = arith.constant 0 : i32
    return %c0_i32, %c0_i32_0 : i32, i32
  }
  func.func @transform_5(%arg0: i32) -> (i32, i32) {
    %c0_i32 = arith.constant 0 : i32
    %c0_i32_0 = arith.constant 0 : i32
    %c0_i32_1 = arith.constant 0 : i32
    return %c0_i32, %c0_i32_0 : i32, i32
  }
  func.func @transform_6(%arg0: i32) -> (i32, i32) {
    %c0_i32 = arith.constant 0 : i32
    %c0_i32_0 = arith.constant 0 : i32
    %c0_i32_1 = arith.constant 0 : i32
    return %c0_i32, %c0_i32_0 : i32, i32
  }
  func.func @transform_7(%arg0: i32) -> (i32, i32) {
    %c0_i32 = arith.constant 0 : i32
    %c0_i32_0 = arith.constant 0 : i32
    %c0_i32_1 = arith.constant 0 : i32
    return %c0_i32, %c0_i32_0 : i32, i32
  }
  func.func @transform_8(%arg0: i32) -> (i32, i32) {
    %c0_i32 = arith.constant 0 : i32
    %c0_i32_0 = arith.constant 0 : i32
    %c0_i32_1 = arith.constant 0 : i32
    return %c0_i32, %c0_i32_0 : i32, i32
  }
  func.func @transform_9(%arg0: i32) -> (i32, i32) {
    %c0_i32 = arith.constant 0 : i32
    %c0_i32_0 = arith.constant 0 : i32
    %c0_i32_1 = arith.constant 0 : i32
    return %c0_i32, %c0_i32_0 : i32, i32
  }
  func.func @transform_10(%arg0: i32) -> (i32, i32) {
    %c0_i32 = arith.constant 0 : i32
    %c0_i32_0 = arith.constant 0 : i32
    %c0_i32_1 = arith.constant 0 : i32
    return %c0_i32, %c0_i32_0 : i32, i32
  }
  func.func @transform_11(%arg0: i32) -> (i32, i32) {
    %c0_i32 = arith.constant 0 : i32
    %c0_i32_0 = arith.constant 0 : i32
    %c0_i32_1 = arith.constant 0 : i32
    return %c0_i32, %c0_i32_0 : i32, i32
  }
  func.func @transform_12(%arg0: i32) -> (i32, i32, i32) {
    %c0_i32 = arith.constant 0 : i32
    %c0_i32_0 = arith.constant 0 : i32
    %c0_i32_1 = arith.constant 0 : i32
    return %arg0, %c0_i32, %c0_i32_0 : i32, i32, i32
  }
}

module attributes {stable_mosaic.version = 11 : i64} {
  func.func @_linear_kernel(%arg0: i32, %arg1: memref<16x32xf32, #tpu.memory_space<vmem>>, %arg2: memref<32x96xf32, #tpu.memory_space<vmem>>, %arg3: memref<1x96xf32, #tpu.memory_space<vmem>>, %arg4: memref<16x96xf32, #tpu.memory_space<vmem>>) attributes {dimension_semantics = [#tpu.dimension_semantics<parallel>], iteration_bounds = array<i64: 1>, scalar_prefetch = 0 : i64, scratch_operands = 0 : i64, tpu.core_type = #tpu.core_type<tc>, window_params = [{transform_indices = @transform_0, window_bounds = array<i64: 16, 32>}, {pipeline_mode = #tpu.pipeline_mode<synchronous>, transform_indices = @transform_1, window_bounds = array<i64: 32, 96>}, {pipeline_mode = #tpu.pipeline_mode<synchronous>, transform_indices = @transform_2, window_bounds = array<i64: 1, 96>}, {transform_indices = @transform_3, window_bounds = array<i64: 16, 96>}]} {
    %c0 = arith.constant 0 : index
    %c0_0 = arith.constant 0 : index
    %0 = vector.load %arg1[%c0, %c0_0] : memref<16x32xf32, #tpu.memory_space<vmem>>, vector<16x32xf32>
    %c0_1 = arith.constant 0 : index
    %c0_2 = arith.constant 0 : index
    %1 = vector.load %arg2[%c0_1, %c0_2] : memref<32x96xf32, #tpu.memory_space<vmem>>, vector<32x96xf32>
    %cst = arith.constant dense<0.000000e+00> : vector<16x96xf32>
    %2 = tpu.matmul %0, %1, %cst {dimension_numbers = #tpu.dot_dimension_numbers<[1], [0], [0], [1], [0, 0, 1, 1], [], []>} : vector<16x32xf32>, vector<32x96xf32>, vector<16x96xf32> -> vector<16x96xf32>
    %c0_3 = arith.constant 0 : index
    %c0_4 = arith.constant 0 : index
    %3 = vector.load %arg3[%c0_3, %c0_4] : memref<1x96xf32, #tpu.memory_space<vmem>>, vector<1x96xf32>
    %4 = vector.broadcast %3 : vector<1x96xf32> to vector<16x96xf32>
    %5 = arith.addf %2, %4 : vector<16x96xf32>
    %c0_5 = arith.constant 0 : index
    %c0_6 = arith.constant 0 : index
    %6 = vector.load %arg4[%c0_5, %c0_6] : memref<16x96xf32, #tpu.memory_space<vmem>>, vector<16x96xf32>
    tpu.vector_store %arg4[%c0_5, %c0_6], %5 {strides = array<i32>} : memref<16x96xf32, #tpu.memory_space<vmem>>, vector<16x96xf32>,
    return
  }
  func.func @transform_0(%arg0: i32) -> (i32, i32) {
    %c0_i32 = arith.constant 0 : i32
    %c0_i32_0 = arith.constant 0 : i32
    return %arg0, %c0_i32 : i32, i32
  }
  func.func @transform_1(%arg0: i32) -> (i32, i32) {
    %c0_i32 = arith.constant 0 : i32
    %c0_i32_0 = arith.constant 0 : i32
    %c0_i32_1 = arith.constant 0 : i32
    return %c0_i32, %c0_i32_0 : i32, i32
  }
  func.func @transform_2(%arg0: i32) -> (i32, i32) {
    %c0_i32 = arith.constant 0 : i32
    %c0_i32_0 = arith.constant 0 : i32
    %c0_i32_1 = arith.constant 0 : i32
    return %c0_i32, %c0_i32_0 : i32, i32
  }
  func.func @transform_3(%arg0: i32) -> (i32, i32) {
    %c0_i32 = arith.constant 0 : i32
    %c0_i32_0 = arith.constant 0 : i32
    return %arg0, %c0_i32 : i32, i32
  }
}

module attributes {stable_mosaic.version = 11 : i64} {
  func.func @_attn_block_kernel(%arg0: i32, %arg1: memref<1x8x32xf32, #tpu.memory_space<vmem>>, %arg2: memref<1x4x8x8xf32, #tpu.memory_space<vmem>>, %arg3: memref<1x4x8x8xf32, #tpu.memory_space<vmem>>, %arg4: memref<1x4x8x8xf32, #tpu.memory_space<vmem>>, %arg5: memref<4x8x32xf32, #tpu.memory_space<vmem>>, %arg6: memref<1x32xf32, #tpu.memory_space<vmem>>, %arg7: memref<1x32xf32, #tpu.memory_space<vmem>>, %arg8: memref<1x32xf32, #tpu.memory_space<vmem>>, %arg9: memref<1x8x32xf32, #tpu.memory_space<vmem>>) attributes {dimension_semantics = [#tpu.dimension_semantics<parallel>], iteration_bounds = array<i64: 2>, scalar_prefetch = 0 : i64, scratch_operands = 0 : i64, tpu.core_type = #tpu.core_type<tc>, window_params = [{transform_indices = @transform_0, window_bounds = array<i64: 1, 8, 32>}, {transform_indices = @transform_1, window_bounds = array<i64: 1, 4, 8, 8>}, {transform_indices = @transform_2, window_bounds = array<i64: 1, 4, 8, 8>}, {transform_indices = @transform_3, window_bounds = array<i64: 1, 4, 8, 8>}, {pipeline_mode = #tpu.pipeline_mode<synchronous>, transform_indices = @transform_4, window_bounds = array<i64: 4, 8, 32>}, {pipeline_mode = #tpu.pipeline_mode<synchronous>, transform_indices = @transform_5, window_bounds = array<i64: 1, 32>}, {pipeline_mode = #tpu.pipeline_mode<synchronous>, transform_indices = @transform_6, window_bounds = array<i64: 1, 32>}, {pipeline_mode = #tpu.pipeline_mode<synchronous>, transform_indices = @transform_7, window_bounds = array<i64: 1, 32>}, {transform_indices = @transform_8, window_bounds = array<i64: 1, 8, 32>}]} {
    %c0 = arith.constant 0 : index
    %c0_0 = arith.constant 0 : index
    %c0_1 = arith.constant 0 : index
    %0 = vector.load %arg1[%c0, %c0_0, %c0_1] : memref<1x8x32xf32, #tpu.memory_space<vmem>>, vector<1x8x32xf32>
    %1 = vector.shape_cast %0 : vector<1x8x32xf32> to vector<8x32xf32>
    %c0_2 = arith.constant 0 : index
    %c0_3 = arith.constant 0 : index
    %c0_4 = arith.constant 0 : index
    %c0_5 = arith.constant 0 : index
    %2 = vector.load %arg2[%c0_2, %c0_3, %c0_4, %c0_5] : memref<1x4x8x8xf32, #tpu.memory_space<vmem>>, vector<1x4x8x8xf32>
    %3 = vector.shape_cast %2 : vector<1x4x8x8xf32> to vector<4x8x8xf32>
    %c0_6 = arith.constant 0 : index
    %c0_7 = arith.constant 0 : index
    %c0_8 = arith.constant 0 : index
    %c0_9 = arith.constant 0 : index
    %4 = vector.load %arg3[%c0_6, %c0_7, %c0_8, %c0_9] : memref<1x4x8x8xf32, #tpu.memory_space<vmem>>, vector<1x4x8x8xf32>
    %5 = vector.shape_cast %4 : vector<1x4x8x8xf32> to vector<4x8x8xf32>
    %c0_10 = arith.constant 0 : index
    %c0_11 = arith.constant 0 : index
    %c0_12 = arith.constant 0 : index
    %c0_13 = arith.constant 0 : index
    %6 = vector.load %arg4[%c0_10, %c0_11, %c0_12, %c0_13] : memref<1x4x8x8xf32, #tpu.memory_space<vmem>>, vector<1x4x8x8xf32>
    %7 = vector.shape_cast %6 : vector<1x4x8x8xf32> to vector<4x8x8xf32>
    %c0_14 = arith.constant 0 : index
    %c0_15 = arith.constant 0 : index
    %8 = vector.load %arg6[%c0_14, %c0_15] : memref<1x32xf32, #tpu.memory_space<vmem>>, vector<1x32xf32>
    %9 = vector.extract_strided_slice %3 {offsets = [0, 0, 0], sizes = [1, 8, 8], strides = [1, 1, 1]} : vector<4x8x8xf32> to vector<1x8x8xf32>
    %10 = vector.shape_cast %9 : vector<1x8x8xf32> to vector<8x8xf32>
    %11 = vector.extract_strided_slice %5 {offsets = [0, 0, 0], sizes = [1, 8, 8], strides = [1, 1, 1]} : vector<4x8x8xf32> to vector<1x8x8xf32>
    %12 = vector.shape_cast %11 : vector<1x8x8xf32> to vector<8x8xf32>
    %13 = vector.extract_strided_slice %7 {offsets = [0, 0, 0], sizes = [1, 8, 8], strides = [1, 1, 1]} : vector<4x8x8xf32> to vector<1x8x8xf32>
    %14 = vector.shape_cast %13 : vector<1x8x8xf32> to vector<8x8xf32>
    "tpu.trace_start"() <{level = 10 : i32, message = "qd,kd->qk"}> : () -> ()
    %cst = arith.constant dense<0.000000e+00> : vector<8x8xf32>
    %15 = tpu.matmul %10, %12, %cst {dimension_numbers = #tpu.dot_dimension_numbers<[1], [1], [0], [0], [0, 0, 1, 0], [], []>} : vector<8x8xf32>, vector<8x8xf32>, vector<8x8xf32> -> vector<8x8xf32>
    "tpu.trace_stop"() : () -> ()
    %cst_16 = arith.constant 0.353553385 : f32
    %16 = vector.broadcast %cst_16 : f32 to vector<8x8xf32>
    %17 = arith.mulf %15, %16 : vector<8x8xf32>
    %cst_17 = arith.constant dense<0xFF800000> : vector<8xf32>
    %18 = vector.multi_reduction <maximumf>, %17, %cst_17 [1] : vector<8x8xf32> to vector<8xf32>
    %19 = vector.shape_cast %18 : vector<8xf32> to vector<8x1xf32>
    %20 = vector.broadcast %19 : vector<8x1xf32> to vector<8x8xf32>
    %21 = arith.subf %17, %20 : vector<8x8xf32>
    %22 = math.exp %21 : vector<8x8xf32>
    %cst_18 = arith.constant dense<0.000000e+00> : vector<8xf32>
    %23 = vector.multi_reduction <add>, %22, %cst_18 [1] : vector<8x8xf32> to vector<8xf32>
    %24 = vector.shape_cast %23 : vector<8xf32> to vector<8x1xf32>
    %25 = vector.broadcast %24 : vector<8x1xf32> to vector<8x8xf32>
    %26 = arith.divf %22, %25 : vector<8x8xf32>
    %cst_19 = arith.constant dense<0.000000e+00> : vector<8x8xf32>
    %27 = tpu.matmul %26, %14, %cst_19 {dimension_numbers = #tpu.dot_dimension_numbers<[1], [0], [0], [1], [0, 0, 1, 1], [], []>} : vector<8x8xf32>, vector<8x8xf32>, vector<8x8xf32> -> vector<8x8xf32>
    %c0_20 = arith.constant 0 : index
    %c0_21 = arith.constant 0 : index
    %c0_22 = arith.constant 0 : index
    %28 = vector.load %arg5[%c0_20, %c0_21, %c0_22] : memref<4x8x32xf32, #tpu.memory_space<vmem>>, vector<1x8x32xf32>
    %29 = vector.shape_cast %28 : vector<1x8x32xf32> to vector<8x32xf32>
    %cst_23 = arith.constant dense<0.000000e+00> : vector<8x32xf32>
    %30 = tpu.matmul %27, %29, %cst_23 {dimension_numbers = #tpu.dot_dimension_numbers<[1], [0], [0], [1], [0, 0, 1, 1], [], []>} : vector<8x8xf32>, vector<8x32xf32>, vector<8x32xf32> -> vector<8x32xf32>
    %31 = vector.broadcast %8 : vector<1x32xf32> to vector<8x32xf32>
    %32 = arith.addf %31, %30 : vector<8x32xf32>
    %33 = vector.extract_strided_slice %3 {offsets = [1, 0, 0], sizes = [1, 8, 8], strides = [1, 1, 1]} : vector<4x8x8xf32> to vector<1x8x8xf32>
    %34 = vector.shape_cast %33 : vector<1x8x8xf32> to vector<8x8xf32>
    %35 = vector.extract_strided_slice %5 {offsets = [1, 0, 0], sizes = [1, 8, 8], strides = [1, 1, 1]} : vector<4x8x8xf32> to vector<1x8x8xf32>
    %36 = vector.shape_cast %35 : vector<1x8x8xf32> to vector<8x8xf32>
    %37 = vector.extract_strided_slice %7 {offsets = [1, 0, 0], sizes = [1, 8, 8], strides = [1, 1, 1]} : vector<4x8x8xf32> to vector<1x8x8xf32>
    %38 = vector.shape_cast %37 : vector<1x8x8xf32> to vector<8x8xf32>
    "tpu.trace_start"() <{level = 10 : i32, message = "qd,kd->qk"}> : () -> ()
    %cst_24 = arith.constant dense<0.000000e+00> : vector<8x8xf32>
    %39 = tpu.matmul %34, %36, %cst_24 {dimension_numbers = #tpu.dot_dimension_numbers<[1], [1], [0], [0], [0, 0, 1, 0], [], []>} : vector<8x8xf32>, vector<8x8xf32>, vector<8x8xf32> -> vector<8x8xf32>
    "tpu.trace_stop"() : () -> ()
    %cst_25 = arith.constant 0.353553385 : f32
    %40 = vector.broadcast %cst_25 : f32 to vector<8x8xf32>
    %41 = arith.mulf %39, %40 : vector<8x8xf32>
    %cst_26 = arith.constant dense<0xFF800000> : vector<8xf32>
    %42 = vector.multi_reduction <maximumf>, %41, %cst_26 [1] : vector<8x8xf32> to vector<8xf32>
    %43 = vector.shape_cast %42 : vector<8xf32> to vector<8x1xf32>
    %44 = vector.broadcast %43 : vector<8x1xf32> to vector<8x8xf32>
    %45 = arith.subf %41, %44 : vector<8x8xf32>
    %46 = math.exp %45 : vector<8x8xf32>
    %cst_27 = arith.constant dense<0.000000e+00> : vector<8xf32>
    %47 = vector.multi_reduction <add>, %46, %cst_27 [1] : vector<8x8xf32> to vector<8xf32>
    %48 = vector.shape_cast %47 : vector<8xf32> to vector<8x1xf32>
    %49 = vector.broadcast %48 : vector<8x1xf32> to vector<8x8xf32>
    %50 = arith.divf %46, %49 : vector<8x8xf32>
    %cst_28 = arith.constant dense<0.000000e+00> : vector<8x8xf32>
    %51 = tpu.matmul %50, %38, %cst_28 {dimension_numbers = #tpu.dot_dimension_numbers<[1], [0], [0], [1], [0, 0, 1, 1], [], []>} : vector<8x8xf32>, vector<8x8xf32>, vector<8x8xf32> -> vector<8x8xf32>
    %c1 = arith.constant 1 : index
    %c0_29 = arith.constant 0 : index
    %c0_30 = arith.constant 0 : index
    %52 = vector.load %arg5[%c1, %c0_29, %c0_30] : memref<4x8x32xf32, #tpu.memory_space<vmem>>, vector<1x8x32xf32>
    %53 = vector.shape_cast %52 : vector<1x8x32xf32> to vector<8x32xf32>
    %cst_31 = arith.constant dense<0.000000e+00> : vector<8x32xf32>
    %54 = tpu.matmul %51, %53, %cst_31 {dimension_numbers = #tpu.dot_dimension_numbers<[1], [0], [0], [1], [0, 0, 1, 1], [], []>} : vector<8x8xf32>, vector<8x32xf32>, vector<8x32xf32> -> vector<8x32xf32>
    %55 = arith.addf %32, %54 : vector<8x32xf32>
    %56 = vector.extract_strided_slice %3 {offsets = [2, 0, 0], sizes = [1, 8, 8], strides = [1, 1, 1]} : vector<4x8x8xf32> to vector<1x8x8xf32>
    %57 = vector.shape_cast %56 : vector<1x8x8xf32> to vector<8x8xf32>
    %58 = vector.extract_strided_slice %5 {offsets = [2, 0, 0], sizes = [1, 8, 8], strides = [1, 1, 1]} : vector<4x8x8xf32> to vector<1x8x8xf32>
    %59 = vector.shape_cast %58 : vector<1x8x8xf32> to vector<8x8xf32>
    %60 = vector.extract_strided_slice %7 {offsets = [2, 0, 0], sizes = [1, 8, 8], strides = [1, 1, 1]} : vector<4x8x8xf32> to vector<1x8x8xf32>
    %61 = vector.shape_cast %60 : vector<1x8x8xf32> to vector<8x8xf32>
    "tpu.trace_start"() <{level = 10 : i32, message = "qd,kd->qk"}> : () -> ()
    %cst_32 = arith.constant dense<0.000000e+00> : vector<8x8xf32>
    %62 = tpu.matmul %57, %59, %cst_32 {dimension_numbers = #tpu.dot_dimension_numbers<[1], [1], [0], [0], [0, 0, 1, 0], [], []>} : vector<8x8xf32>, vector<8x8xf32>, vector<8x8xf32> -> vector<8x8xf32>
    "tpu.trace_stop"() : () -> ()
    %cst_33 = arith.constant 0.353553385 : f32
    %63 = vector.broadcast %cst_33 : f32 to vector<8x8xf32>
    %64 = arith.mulf %62, %63 : vector<8x8xf32>
    %cst_34 = arith.constant dense<0xFF800000> : vector<8xf32>
    %65 = vector.multi_reduction <maximumf>, %64, %cst_34 [1] : vector<8x8xf32> to vector<8xf32>
    %66 = vector.shape_cast %65 : vector<8xf32> to vector<8x1xf32>
    %67 = vector.broadcast %66 : vector<8x1xf32> to vector<8x8xf32>
    %68 = arith.subf %64, %67 : vector<8x8xf32>
    %69 = math.exp %68 : vector<8x8xf32>
    %cst_35 = arith.constant dense<0.000000e+00> : vector<8xf32>
    %70 = vector.multi_reduction <add>, %69, %cst_35 [1] : vector<8x8xf32> to vector<8xf32>
    %71 = vector.shape_cast %70 : vector<8xf32> to vector<8x1xf32>
    %72 = vector.broadcast %71 : vector<8x1xf32> to vector<8x8xf32>
    %73 = arith.divf %69, %72 : vector<8x8xf32>
    %cst_36 = arith.constant dense<0.000000e+00> : vector<8x8xf32>
    %74 = tpu.matmul %73, %61, %cst_36 {dimension_numbers = #tpu.dot_dimension_numbers<[1], [0], [0], [1], [0, 0, 1, 1], [], []>} : vector<8x8xf32>, vector<8x8xf32>, vector<8x8xf32> -> vector<8x8xf32>
    %c2 = arith.constant 2 : index
    %c0_37 = arith.constant 0 : index
    %c0_38 = arith.constant 0 : index
    %75 = vector.load %arg5[%c2, %c0_37, %c0_38] : memref<4x8x32xf32, #tpu.memory_space<vmem>>, vector<1x8x32xf32>
    %76 = vector.shape_cast %75 : vector<1x8x32xf32> to vector<8x32xf32>
    %cst_39 = arith.constant dense<0.000000e+00> : vector<8x32xf32>
    %77 = tpu.matmul %74, %76, %cst_39 {dimension_numbers = #tpu.dot_dimension_numbers<[1], [0], [0], [1], [0, 0, 1, 1], [], []>} : vector<8x8xf32>, vector<8x32xf32>, vector<8x32xf32> -> vector<8x32xf32>
    %78 = arith.addf %55, %77 : vector<8x32xf32>
    %79 = vector.extract_strided_slice %3 {offsets = [3, 0, 0], sizes = [1, 8, 8], strides = [1, 1, 1]} : vector<4x8x8xf32> to vector<1x8x8xf32>
    %80 = vector.shape_cast %79 : vector<1x8x8xf32> to vector<8x8xf32>
    %81 = vector.extract_strided_slice %5 {offsets = [3, 0, 0], sizes = [1, 8, 8], strides = [1, 1, 1]} : vector<4x8x8xf32> to vector<1x8x8xf32>
    %82 = vector.shape_cast %81 : vector<1x8x8xf32> to vector<8x8xf32>
    %83 = vector.extract_strided_slice %7 {offsets = [3, 0, 0], sizes = [1, 8, 8], strides = [1, 1, 1]} : vector<4x8x8xf32> to vector<1x8x8xf32>
    %84 = vector.shape_cast %83 : vector<1x8x8xf32> to vector<8x8xf32>
    "tpu.trace_start"() <{level = 10 : i32, message = "qd,kd->qk"}> : () -> ()
    %cst_40 = arith.constant dense<0.000000e+00> : vector<8x8xf32>
    %85 = tpu.matmul %80, %82, %cst_40 {dimension_numbers = #tpu.dot_dimension_numbers<[1], [1], [0], [0], [0, 0, 1, 0], [], []>} : vector<8x8xf32>, vector<8x8xf32>, vector<8x8xf32> -> vector<8x8xf32>
    "tpu.trace_stop"() : () -> ()
    %cst_41 = arith.constant 0.353553385 : f32
    %86 = vector.broadcast %cst_41 : f32 to vector<8x8xf32>
    %87 = arith.mulf %85, %86 : vector<8x8xf32>
    %cst_42 = arith.constant dense<0xFF800000> : vector<8xf32>
    %88 = vector.multi_reduction <maximumf>, %87, %cst_42 [1] : vector<8x8xf32> to vector<8xf32>
    %89 = vector.shape_cast %88 : vector<8xf32> to vector<8x1xf32>
    %90 = vector.broadcast %89 : vector<8x1xf32> to vector<8x8xf32>
    %91 = arith.subf %87, %90 : vector<8x8xf32>
    %92 = math.exp %91 : vector<8x8xf32>
    %cst_43 = arith.constant dense<0.000000e+00> : vector<8xf32>
    %93 = vector.multi_reduction <add>, %92, %cst_43 [1] : vector<8x8xf32> to vector<8xf32>
    %94 = vector.shape_cast %93 : vector<8xf32> to vector<8x1xf32>
    %95 = vector.broadcast %94 : vector<8x1xf32> to vector<8x8xf32>
    %96 = arith.divf %92, %95 : vector<8x8xf32>
    %cst_44 = arith.constant dense<0.000000e+00> : vector<8x8xf32>
    %97 = tpu.matmul %96, %84, %cst_44 {dimension_numbers = #tpu.dot_dimension_numbers<[1], [0], [0], [1], [0, 0, 1, 1], [], []>} : vector<8x8xf32>, vector<8x8xf32>, vector<8x8xf32> -> vector<8x8xf32>
    %c3 = arith.constant 3 : index
    %c0_45 = arith.constant 0 : index
    %c0_46 = arith.constant 0 : index
    %98 = vector.load %arg5[%c3, %c0_45, %c0_46] : memref<4x8x32xf32, #tpu.memory_space<vmem>>, vector<1x8x32xf32>
    %99 = vector.shape_cast %98 : vector<1x8x32xf32> to vector<8x32xf32>
    %cst_47 = arith.constant dense<0.000000e+00> : vector<8x32xf32>
    %100 = tpu.matmul %97, %99, %cst_47 {dimension_numbers = #tpu.dot_dimension_numbers<[1], [0], [0], [1], [0, 0, 1, 1], [], []>} : vector<8x8xf32>, vector<8x32xf32>, vector<8x32xf32> -> vector<8x32xf32>
    %101 = arith.addf %78, %100 : vector<8x32xf32>
    %102 = arith.addf %1, %101 : vector<8x32xf32>
    %c0_48 = arith.constant 0 : index
    %c0_49 = arith.constant 0 : index
    %103 = vector.load %arg7[%c0_48, %c0_49] : memref<1x32xf32, #tpu.memory_space<vmem>>, vector<1x32xf32>
    %c0_50 = arith.constant 0 : index
    %c0_51 = arith.constant 0 : index
    %104 = vector.load %arg8[%c0_50, %c0_51] : memref<1x32xf32, #tpu.memory_space<vmem>>, vector<1x32xf32>
    %cst_52 = arith.constant dense<0.000000e+00> : vector<8xf32>
    %105 = vector.multi_reduction <add>, %102, %cst_52 [1] : vector<8x32xf32> to vector<8xf32>
    %106 = vector.shape_cast %105 : vector<8xf32> to vector<8x1xf32>
    %cst_53 = arith.constant 3.125000e-02 : f32
    %107 = vector.broadcast %cst_53 : f32 to vector<8x1xf32>
    %108 = arith.mulf %106, %107 : vector<8x1xf32>
    %109 = vector.broadcast %108 : vector<8x1xf32> to vector<8x32xf32>
    %110 = arith.subf %102, %109 : vector<8x32xf32>
    %111 = arith.mulf %110, %110 : vector<8x32xf32>
    %cst_54 = arith.constant dense<0.000000e+00> : vector<8xf32>
    %112 = vector.multi_reduction <add>, %111, %cst_54 [1] : vector<8x32xf32> to vector<8xf32>
    %113 = vector.shape_cast %112 : vector<8xf32> to vector<8x1xf32>
    %cst_55 = arith.constant 3.125000e-02 : f32
    %114 = vector.broadcast %cst_55 : f32 to vector<8x1xf32>
    %115 = arith.mulf %113, %114 : vector<8x1xf32>
    %cst_56 = arith.constant 9.99999974E-6 : f32
    %116 = vector.broadcast %cst_56 : f32 to vector<8x1xf32>
    %117 = arith.addf %115, %116 : vector<8x1xf32>
    %118 = math.rsqrt %117 : vector<8x1xf32>
    %119 = vector.broadcast %118 : vector<8x1xf32> to vector<8x32xf32>
    %120 = arith.mulf %110, %119 : vector<8x32xf32>
    %121 = vector.broadcast %103 : vector<1x32xf32> to vector<8x32xf32>
    %122 = arith.mulf %120, %121 : vector<8x32xf32>
    %123 = vector.broadcast %104 : vector<1x32xf32> to vector<8x32xf32>
    %124 = arith.addf %122, %123 : vector<8x32xf32>
    %c0_57 = arith.constant 0 : index
    %c0_58 = arith.constant 0 : index
    %c0_59 = arith.constant 0 : index
    %125 = vector.load %arg9[%c0_57, %c0_58, %c0_59] : memref<1x8x32xf32, #tpu.memory_space<vmem>>, vector<1x8x32xf32>
    %126 = vector.shape_cast %125 : vector<1x8x32xf32> to vector<8x32xf32>
    %127 = vector.shape_cast %124 : vector<8x32xf32> to vector<1x8x32xf32>
    tpu.vector_store %arg9[%c0_57, %c0_58, %c0_59], %127 {strides = array<i32>} : memref<1x8x32xf32, #tpu.memory_space<vmem>>, vector<1x8x32xf32>,
    return
  }
  func.func @transform_0(%arg0: i32) -> (i32, i32, i32) {
    %c0_i32 = arith.constant 0 : i32
    %c0_i32_0 = arith.constant 0 : i32
    %c0_i32_1 = arith.constant 0 : i32
    return %arg0, %c0_i32, %c0_i32_0 : i32, i32, i32
  }
  func.func @transform_1(%arg0: i32) -> (i32, i32, i32, i32) {
    %c0_i32 = arith.constant 0 : i32
    %c0_i32_0 = arith.constant 0 : i32
    %c0_i32_1 = arith.constant 0 : i32
    %c0_i32_2 = arith.constant 0 : i32
    return %arg0, %c0_i32, %c0_i32_0, %c0_i32_1 : i32, i32, i32, i32
  }
  func.func @transform_2(%arg0: i32) -> (i32, i32, i32, i32) {
    %c0_i32 = arith.constant 0 : i32
    %c0_i32_0 = arith.constant 0 : i32
    %c0_i32_1 = arith.constant 0 : i32
    %c0_i32_2 = arith.constant 0 : i32
    return %arg0, %c0_i32, %c0_i32_0, %c0_i32_1 : i32, i32, i32, i32
  }
  func.func @transform_3(%arg0: i32) -> (i32, i32, i32, i32) {
    %c0_i32 = arith.constant 0 : i32
    %c0_i32_0 = arith.constant 0 : i32
    %c0_i32_1 = arith.constant 0 : i32
    %c0_i32_2 = arith.constant 0 : i32
    return %arg0, %c0_i32, %c0_i32_0, %c0_i32_1 : i32, i32, i32, i32
  }
  func.func @transform_4(%arg0: i32) -> (i32, i32, i32) {
    %c0_i32 = arith.constant 0 : i32
    %c0_i32_0 = arith.constant 0 : i32
    %c0_i32_1 = arith.constant 0 : i32
    %c0_i32_2 = arith.constant 0 : i32
    return %c0_i32, %c0_i32_0, %c0_i32_1 : i32, i32, i32
  }
  func.func @transform_5(%arg0: i32) -> (i32, i32) {
    %c0_i32 = arith.constant 0 : i32
    %c0_i32_0 = arith.constant 0 : i32
    %c0_i32_1 = arith.constant 0 : i32
    return %c0_i32, %c0_i32_0 : i32, i32
  }
  func.func @transform_6(%arg0: i32) -> (i32, i32) {
    %c0_i32 = arith.constant 0 : i32
    %c0_i32_0 = arith.constant 0 : i32
    %c0_i32_1 = arith.constant 0 : i32
    return %c0_i32, %c0_i32_0 : i32, i32
  }
  func.func @transform_7(%arg0: i32) -> (i32, i32) {
    %c0_i32 = arith.constant 0 : i32
    %c0_i32_0 = arith.constant 0 : i32
    %c0_i32_1 = arith.constant 0 : i32
    return %c0_i32, %c0_i32_0 : i32, i32
  }
  func.func @transform_8(%arg0: i32) -> (i32, i32, i32) {
    %c0_i32 = arith.constant 0 : i32
    %c0_i32_0 = arith.constant 0 : i32
    %c0_i32_1 = arith.constant 0 : i32
    return %arg0, %c0_i32, %c0_i32_0 : i32, i32, i32
  }
}

module attributes {stable_mosaic.version = 11 : i64} {
  func.func @_ffn_add_norm_kernel(%arg0: i32, %arg1: memref<16x32xf32, #tpu.memory_space<vmem>>, %arg2: memref<32x64xf32, #tpu.memory_space<vmem>>, %arg3: memref<1x64xf32, #tpu.memory_space<vmem>>, %arg4: memref<64x32xf32, #tpu.memory_space<vmem>>, %arg5: memref<1x32xf32, #tpu.memory_space<vmem>>, %arg6: memref<1x32xf32, #tpu.memory_space<vmem>>, %arg7: memref<1x32xf32, #tpu.memory_space<vmem>>, %arg8: memref<16x32xf32, #tpu.memory_space<vmem>>) attributes {dimension_semantics = [#tpu.dimension_semantics<parallel>], iteration_bounds = array<i64: 1>, scalar_prefetch = 0 : i64, scratch_operands = 0 : i64, tpu.core_type = #tpu.core_type<tc>, window_params = [{transform_indices = @transform_0, window_bounds = array<i64: 16, 32>}, {pipeline_mode = #tpu.pipeline_mode<synchronous>, transform_indices = @transform_1, window_bounds = array<i64: 32, 64>}, {pipeline_mode = #tpu.pipeline_mode<synchronous>, transform_indices = @transform_2, window_bounds = array<i64: 1, 64>}, {pipeline_mode = #tpu.pipeline_mode<synchronous>, transform_indices = @transform_3, window_bounds = array<i64: 64, 32>}, {pipeline_mode = #tpu.pipeline_mode<synchronous>, transform_indices = @transform_4, window_bounds = array<i64: 1, 32>}, {pipeline_mode = #tpu.pipeline_mode<synchronous>, transform_indices = @transform_5, window_bounds = array<i64: 1, 32>}, {pipeline_mode = #tpu.pipeline_mode<synchronous>, transform_indices = @transform_6, window_bounds = array<i64: 1, 32>}, {transform_indices = @transform_7, window_bounds = array<i64: 16, 32>}]} {
    %c0 = arith.constant 0 : index
    %c0_0 = arith.constant 0 : index
    %0 = vector.load %arg1[%c0, %c0_0] : memref<16x32xf32, #tpu.memory_space<vmem>>, vector<16x32xf32>
    %c0_1 = arith.constant 0 : index
    %c0_2 = arith.constant 0 : index
    %1 = vector.load %arg2[%c0_1, %c0_2] : memref<32x64xf32, #tpu.memory_space<vmem>>, vector<32x64xf32>
    %cst = arith.constant dense<0.000000e+00> : vector<16x64xf32>
    %2 = tpu.matmul %0, %1, %cst {dimension_numbers = #tpu.dot_dimension_numbers<[1], [0], [0], [1], [0, 0, 1, 1], [], []>} : vector<16x32xf32>, vector<32x64xf32>, vector<16x64xf32> -> vector<16x64xf32>
    %c0_3 = arith.constant 0 : index
    %c0_4 = arith.constant 0 : index
    %3 = vector.load %arg3[%c0_3, %c0_4] : memref<1x64xf32, #tpu.memory_space<vmem>>, vector<1x64xf32>
    %4 = vector.broadcast %3 : vector<1x64xf32> to vector<16x64xf32>
    %5 = arith.addf %2, %4 : vector<16x64xf32>
    %cst_5 = arith.constant 0.000000e+00 : f32
    %6 = vector.broadcast %cst_5 : f32 to vector<16x64xf32>
    %7 = arith.maximumf %5, %6 : vector<16x64xf32>
    %c0_6 = arith.constant 0 : index
    %c0_7 = arith.constant 0 : index
    %8 = vector.load %arg4[%c0_6, %c0_7] : memref<64x32xf32, #tpu.memory_space<vmem>>, vector<64x32xf32>
    %cst_8 = arith.constant dense<0.000000e+00> : vector<16x32xf32>
    %9 = tpu.matmul %7, %8, %cst_8 {dimension_numbers = #tpu.dot_dimension_numbers<[1], [0], [0], [1], [0, 0, 1, 1], [], []>} : vector<16x64xf32>, vector<64x32xf32>, vector<16x32xf32> -> vector<16x32xf32>
    %c0_9 = arith.constant 0 : index
    %c0_10 = arith.constant 0 : index
    %10 = vector.load %arg5[%c0_9, %c0_10] : memref<1x32xf32, #tpu.memory_space<vmem>>, vector<1x32xf32>
    %11 = vector.broadcast %10 : vector<1x32xf32> to vector<16x32xf32>
    %12 = arith.addf %9, %11 : vector<16x32xf32>
    %13 = arith.addf %0, %12 : vector<16x32xf32>
    %c0_11 = arith.constant 0 : index
    %c0_12 = arith.constant 0 : index
    %14 = vector.load %arg6[%c0_11, %c0_12] : memref<1x32xf32, #tpu.memory_space<vmem>>, vector<1x32xf32>
    %c0_13 = arith.constant 0 : index
    %c0_14 = arith.constant 0 : index
    %15 = vector.load %arg7[%c0_13, %c0_14] : memref<1x32xf32, #tpu.memory_space<vmem>>, vector<1x32xf32>
    %cst_15 = arith.constant dense<0.000000e+00> : vector<16xf32>
    %16 = vector.multi_reduction <add>, %13, %cst_15 [1] : vector<16x32xf32> to vector<16xf32>
    %17 = vector.shape_cast %16 : vector<16xf32> to vector<16x1xf32>
    %cst_16 = arith.constant 3.125000e-02 : f32
    %18 = vector.broadcast %cst_16 : f32 to vector<16x1xf32>
    %19 = arith.mulf %17, %18 : vector<16x1xf32>
    %20 = vector.broadcast %19 : vector<16x1xf32> to vector<16x32xf32>
    %21 = arith.subf %13, %20 : vector<16x32xf32>
    %22 = arith.mulf %21, %21 : vector<16x32xf32>
    %cst_17 = arith.constant dense<0.000000e+00> : vector<16xf32>
    %23 = vector.multi_reduction <add>, %22, %cst_17 [1] : vector<16x32xf32> to vector<16xf32>
    %24 = vector.shape_cast %23 : vector<16xf32> to vector<16x1xf32>
    %cst_18 = arith.constant 3.125000e-02 : f32
    %25 = vector.broadcast %cst_18 : f32 to vector<16x1xf32>
    %26 = arith.mulf %24, %25 : vector<16x1xf32>
    %cst_19 = arith.constant 9.99999974E-6 : f32
    %27 = vector.broadcast %cst_19 : f32 to vector<16x1xf32>
    %28 = arith.addf %26, %27 : vector<16x1xf32>
    %29 = math.rsqrt %28 : vector<16x1xf32>
    %30 = vector.broadcast %29 : vector<16x1xf32> to vector<16x32xf32>
    %31 = arith.mulf %21, %30 : vector<16x32xf32>
    %32 = vector.broadcast %14 : vector<1x32xf32> to vector<16x32xf32>
    %33 = arith.mulf %31, %32 : vector<16x32xf32>
    %34 = vector.broadcast %15 : vector<1x32xf32> to vector<16x32xf32>
    %35 = arith.addf %33, %34 : vector<16x32xf32>
    %c0_20 = arith.constant 0 : index
    %c0_21 = arith.constant 0 : index
    %36 = vector.load %arg8[%c0_20, %c0_21] : memref<16x32xf32, #tpu.memory_space<vmem>>, vector<16x32xf32>
    tpu.vector_store %arg8[%c0_20, %c0_21], %35 {strides = array<i32>} : memref<16x32xf32, #tpu.memory_space<vmem>>, vector<16x32xf32>,
    return
  }
  func.func @transform_0(%arg0: i32) -> (i32, i32) {
    %c0_i32 = arith.constant 0 : i32
    %c0_i32_0 = arith.constant 0 : i32
    return %arg0, %c0_i32 : i32, i32
  }
  func.func @transform_1(%arg0: i32) -> (i32, i32) {
    %c0_i32 = arith.constant 0 : i32
    %c0_i32_0 = arith.constant 0 : i32
    %c0_i32_1 = arith.constant 0 : i32
    return %c0_i32, %c0_i32_0 : i32, i32
  }
  func.func @transform_2(%arg0: i32) -> (i32, i32) {
    %c0_i32 = arith.constant 0 : i32
    %c0_i32_0 = arith.constant 0 : i32
    %c0_i32_1 = arith.constant 0 : i32
    return %c0_i32, %c0_i32_0 : i32, i32
  }
  func.func @transform_3(%arg0: i32) -> (i32, i32) {
    %c0_i32 = arith.constant 0 : i32
    %c0_i32_0 = arith.constant 0 : i32
    %c0_i32_1 = arith.constant 0 : i32
    return %c0_i32, %c0_i32_0 : i32, i32
  }
  func.func @transform_4(%arg0: i32) -> (i32, i32) {
    %c0_i32 = arith.constant 0 : i32
    %c0_i32_0 = arith.constant 0 : i32
    %c0_i32_1 = arith.constant 0 : i32
    return %c0_i32, %c0_i32_0 : i32, i32
  }
  func.func @transform_5(%arg0: i32) -> (i32, i32) {
    %c0_i32 = arith.constant 0 : i32
    %c0_i32_0 = arith.constant 0 : i32
    %c0_i32_1 = arith.constant 0 : i32
    return %c0_i32, %c0_i32_0 : i32, i32
  }
  func.func @transform_6(%arg0: i32) -> (i32, i32) {
    %c0_i32 = arith.constant 0 : i32
    %c0_i32_0 = arith.constant 0 : i32
    %c0_i32_1 = arith.constant 0 : i32
    return %c0_i32, %c0_i32_0 : i32, i32
  }
  func.func @transform_7(%arg0: i32) -> (i32, i32) {
    %c0_i32 = arith.constant 0 : i32
    %c0_i32_0 = arith.constant 0 : i32
    return %arg0, %c0_i32 : i32, i32
  }
}

module attributes {stable_mosaic.version = 11 : i64} {
  func.func @_ffn_add_norm_kernel(%arg0: i32, %arg1: memref<16x32xf32, #tpu.memory_space<vmem>>, %arg2: memref<32x64xf32, #tpu.memory_space<vmem>>, %arg3: memref<1x64xf32, #tpu.memory_space<vmem>>, %arg4: memref<64x32xf32, #tpu.memory_space<vmem>>, %arg5: memref<1x32xf32, #tpu.memory_space<vmem>>, %arg6: memref<1x32xf32, #tpu.memory_space<vmem>>, %arg7: memref<1x32xf32, #tpu.memory_space<vmem>>, %arg8: memref<16x32xf32, #tpu.memory_space<vmem>>) attributes {dimension_semantics = [#tpu.dimension_semantics<parallel>], iteration_bounds = array<i64: 1>, scalar_prefetch = 0 : i64, scratch_operands = 0 : i64, tpu.core_type = #tpu.core_type<tc>, window_params = [{transform_indices = @transform_0, window_bounds = array<i64: 16, 32>}, {pipeline_mode = #tpu.pipeline_mode<synchronous>, transform_indices = @transform_1, window_bounds = array<i64: 32, 64>}, {pipeline_mode = #tpu.pipeline_mode<synchronous>, transform_indices = @transform_2, window_bounds = array<i64: 1, 64>}, {pipeline_mode = #tpu.pipeline_mode<synchronous>, transform_indices = @transform_3, window_bounds = array<i64: 64, 32>}, {pipeline_mode = #tpu.pipeline_mode<synchronous>, transform_indices = @transform_4, window_bounds = array<i64: 1, 32>}, {pipeline_mode = #tpu.pipeline_mode<synchronous>, transform_indices = @transform_5, window_bounds = array<i64: 1, 32>}, {pipeline_mode = #tpu.pipeline_mode<synchronous>, transform_indices = @transform_6, window_bounds = array<i64: 1, 32>}, {transform_indices = @transform_7, window_bounds = array<i64: 16, 32>}]} {
    %c0 = arith.constant 0 : index
    %c0_0 = arith.constant 0 : index
    %0 = vector.load %arg1[%c0, %c0_0] : memref<16x32xf32, #tpu.memory_space<vmem>>, vector<16x32xf32>
    %c0_1 = arith.constant 0 : index
    %c0_2 = arith.constant 0 : index
    %1 = vector.load %arg2[%c0_1, %c0_2] : memref<32x64xf32, #tpu.memory_space<vmem>>, vector<32x64xf32>
    %cst = arith.constant dense<0.000000e+00> : vector<16x64xf32>
    %2 = tpu.matmul %0, %1, %cst {dimension_numbers = #tpu.dot_dimension_numbers<[1], [0], [0], [1], [0, 0, 1, 1], [], []>} : vector<16x32xf32>, vector<32x64xf32>, vector<16x64xf32> -> vector<16x64xf32>
    %c0_3 = arith.constant 0 : index
    %c0_4 = arith.constant 0 : index
    %3 = vector.load %arg3[%c0_3, %c0_4] : memref<1x64xf32, #tpu.memory_space<vmem>>, vector<1x64xf32>
    %4 = vector.broadcast %3 : vector<1x64xf32> to vector<16x64xf32>
    %5 = arith.addf %2, %4 : vector<16x64xf32>
    %cst_5 = arith.constant 0.000000e+00 : f32
    %6 = vector.broadcast %cst_5 : f32 to vector<16x64xf32>
    %7 = arith.maximumf %5, %6 : vector<16x64xf32>
    %c0_6 = arith.constant 0 : index
    %c0_7 = arith.constant 0 : index
    %8 = vector.load %arg4[%c0_6, %c0_7] : memref<64x32xf32, #tpu.memory_space<vmem>>, vector<64x32xf32>
    %cst_8 = arith.constant dense<0.000000e+00> : vector<16x32xf32>
    %9 = tpu.matmul %7, %8, %cst_8 {dimension_numbers = #tpu.dot_dimension_numbers<[1], [0], [0], [1], [0, 0, 1, 1], [], []>} : vector<16x64xf32>, vector<64x32xf32>, vector<16x32xf32> -> vector<16x32xf32>
    %c0_9 = arith.constant 0 : index
    %c0_10 = arith.constant 0 : index
    %10 = vector.load %arg5[%c0_9, %c0_10] : memref<1x32xf32, #tpu.memory_space<vmem>>, vector<1x32xf32>
    %11 = vector.broadcast %10 : vector<1x32xf32> to vector<16x32xf32>
    %12 = arith.addf %9, %11 : vector<16x32xf32>
    %13 = arith.addf %0, %12 : vector<16x32xf32>
    %c0_11 = arith.constant 0 : index
    %c0_12 = arith.constant 0 : index
    %14 = vector.load %arg6[%c0_11, %c0_12] : memref<1x32xf32, #tpu.memory_space<vmem>>, vector<1x32xf32>
    %c0_13 = arith.constant 0 : index
    %c0_14 = arith.constant 0 : index
    %15 = vector.load %arg7[%c0_13, %c0_14] : memref<1x32xf32, #tpu.memory_space<vmem>>, vector<1x32xf32>
    %cst_15 = arith.constant dense<0.000000e+00> : vector<16xf32>
    %16 = vector.multi_reduction <add>, %13, %cst_15 [1] : vector<16x32xf32> to vector<16xf32>
    %17 = vector.shape_cast %16 : vector<16xf32> to vector<16x1xf32>
    %cst_16 = arith.constant 3.125000e-02 : f32
    %18 = vector.broadcast %cst_16 : f32 to vector<16x1xf32>
    %19 = arith.mulf %17, %18 : vector<16x1xf32>
    %20 = vector.broadcast %19 : vector<16x1xf32> to vector<16x32xf32>
    %21 = arith.subf %13, %20 : vector<16x32xf32>
    %22 = arith.mulf %21, %21 : vector<16x32xf32>
    %cst_17 = arith.constant dense<0.000000e+00> : vector<16xf32>
    %23 = vector.multi_reduction <add>, %22, %cst_17 [1] : vector<16x32xf32> to vector<16xf32>
    %24 = vector.shape_cast %23 : vector<16xf32> to vector<16x1xf32>
    %cst_18 = arith.constant 3.125000e-02 : f32
    %25 = vector.broadcast %cst_18 : f32 to vector<16x1xf32>
    %26 = arith.mulf %24, %25 : vector<16x1xf32>
    %cst_19 = arith.constant 9.99999974E-6 : f32
    %27 = vector.broadcast %cst_19 : f32 to vector<16x1xf32>
    %28 = arith.addf %26, %27 : vector<16x1xf32>
    %29 = math.rsqrt %28 : vector<16x1xf32>
    %30 = vector.broadcast %29 : vector<16x1xf32> to vector<16x32xf32>
    %31 = arith.mulf %21, %30 : vector<16x32xf32>
    %32 = vector.broadcast %14 : vector<1x32xf32> to vector<16x32xf32>
    %33 = arith.mulf %31, %32 : vector<16x32xf32>
    %34 = vector.broadcast %15 : vector<1x32xf32> to vector<16x32xf32>
    %35 = arith.addf %33, %34 : vector<16x32xf32>
    %c0_20 = arith.constant 0 : index
    %c0_21 = arith.constant 0 : index
    %36 = vector.load %arg8[%c0_20, %c0_21] : memref<16x32xf32, #tpu.memory_space<vmem>>, vector<16x32xf32>
    tpu.vector_store %arg8[%c0_20, %c0_21], %35 {strides = array<i32>} : memref<16x32xf32, #tpu.memory_space<vmem>>, vector<16x32xf32>,
    return
  }
  func.func @transform_0(%arg0: i32) -> (i32, i32) {
    %c0_i32 = arith.constant 0 : i32
    %c0_i32_0 = arith.constant 0 : i32
    return %arg0, %c0_i32 : i32, i32
  }
  func.func @transform_1(%arg0: i32) -> (i32, i32) {
    %c0_i32 = arith.constant 0 : i32
    %c0_i32_0 = arith.constant 0 : i32
    %c0_i32_1 = arith.constant 0 : i32
    return %c0_i32, %c0_i32_0 : i32, i32
  }
  func.func @transform_2(%arg0: i32) -> (i32, i32) {
    %c0_i32 = arith.constant 0 : i32
    %c0_i32_0 = arith.constant 0 : i32
    %c0_i32_1 = arith.constant 0 : i32
    return %c0_i32, %c0_i32_0 : i32, i32
  }
  func.func @transform_3(%arg0: i32) -> (i32, i32) {
    %c0_i32 = arith.constant 0 : i32
    %c0_i32_0 = arith.constant 0 : i32
    %c0_i32_1 = arith.constant 0 : i32
    return %c0_i32, %c0_i32_0 : i32, i32
  }
  func.func @transform_4(%arg0: i32) -> (i32, i32) {
    %c0_i32 = arith.constant 0 : i32
    %c0_i32_0 = arith.constant 0 : i32
    %c0_i32_1 = arith.constant 0 : i32
    return %c0_i32, %c0_i32_0 : i32, i32
  }
  func.func @transform_5(%arg0: i32) -> (i32, i32) {
    %c0_i32 = arith.constant 0 : i32
    %c0_i32_0 = arith.constant 0 : i32
    %c0_i32_1 = arith.constant 0 : i32
    return %c0_i32, %c0_i32_0 : i32, i32
  }
  func.func @transform_6(%arg0: i32) -> (i32, i32) {
    %c0_i32 = arith.constant 0 : i32
    %c0_i32_0 = arith.constant 0 : i32
    %c0_i32_1 = arith.constant 0 : i32
    return %c0_i32, %c0_i32_0 : i32, i32
  }
  func.func @transform_7(%arg0: i32) -> (i32, i32) {
    %c0_i32 = arith.constant 0 : i32
    %c0_i32_0 = arith.constant 0 : i32
    return %arg0, %c0_i32 : i32, i32
  }
}

</mosaic_0001>

<llo_original>
// kernel: transformer_encoder_extractor_forward.8
$region0: #{transformer_encoder_extractor_forward.8}
  #allocation0 [shape = 'u32[]', space=smem, size = 0x4, offset = 0x4, fixed_abs, tag = 'smem constant byte address 0x4 - core index']
  #allocation1 [shape = 'u32[144,128]{1,0:T(1,128)}', space=vmem, size = 0x12000, scoped, tag = 'internal scratch']
  %s0 = inlined_call_operand.vmem [shape: f32[16,32], index: 0, kind: input, shape index: {}]
  %s1 = inlined_call_operand.vmem [shape: f32[32,96], index: 1, kind: input, shape index: {}]
  %s2 = inlined_call_operand.vmem [shape: f32[1,96], index: 2, kind: input, shape index: {}]
  %s3 = inlined_call_operand.vmem [shape: f32[16,96], index: 3, kind: output, shape index: {}]
  %s4 = sld [smem:[#allocation0]]
  $region22: #{transformer_encoder_extractor_forward.8} parent=0
    _
  %s6 = ssub.s32 1, %s4
  %s7 = scalar_select 0, %s6, %s4
  // Predicated region
  $region2: #{transformer_encoder_extractor_forward.8} parent=0 // pred_check
    _
  $region3: #{transformer_encoder_extractor_forward.8} parent=0 // pred_check_branch
    %9 = sbr.rel (0) target = $region5
  $region4: #{transformer_encoder_extractor_forward.8} parent=0 // pred_region
    _
  $region5: #{transformer_encoder_extractor_forward.8} parent=0 // pred_fallthru
    _
  // Predicated region
  $region6: #{transformer_encoder_extractor_forward.8} parent=0 // pred_check
    _
  $region7: #{transformer_encoder_extractor_forward.8} parent=0 // pred_check_branch
    %11 = sbr.rel (0) target = $region9
  $region8: #{transformer_encoder_extractor_forward.8} parent=0 // pred_region
    _
  $region9: #{transformer_encoder_extractor_forward.8} parent=0 // pred_fallthru
    _
  // Predicated region
  $region10: #{transformer_encoder_extractor_forward.8} parent=0 // pred_check
    _
  $region11: #{transformer_encoder_extractor_forward.8} parent=0 // pred_check_branch
    %13 = sbr.rel (0) target = $region13
  $region12: #{transformer_encoder_extractor_forward.8} parent=0 // pred_region
    _
  $region13: #{transformer_encoder_extractor_forward.8} parent=0 // pred_fallthru
    _
  %v14 = vld [vmem:[%s0] sm:$0xff]
  %v15 = vld [vmem:[%s0 + $0x8] sm:$0xff]
  %v16 = vld [vmem:[%s1] sm:$0xff]
  %v17 = vld [vmem:[%s1 + $0x8] sm:$0xff]
  %v18 = vld [vmem:[%s1 + $0x10] sm:$0xff]
  %v19 = vld [vmem:[%s1 + $0x18] sm:$0xff]
  %v20 = vld [vmem:[%s2] sm:$0x1]
  %v22 = vlaneseq
  %v23 = vshrl.u32 %v22, 7
  %v24 = vsub.s32 0, %v23
  %v25 = vrot.slane %v20, %v24
  %vm27 = vcmask 261120
  %v29 = vsel %vm27, %v14, 0
  %v32 = vsel %vm27, %v15, 0
  %34 = vmatprep.subr.mxu0 0.0
  %35 = vmatpush1.msra.mxu0 0.0
  %36 = vmatprep.subr.mxu0 0.0
  %37 = vmatpush1.msra.mxu0 0.0
  %38 = vmatprep.subr.mxu0 0.0
  %39 = vmatpush1.msra.mxu0 0.0
  %40 = vmatprep.subr.mxu0 0.0
  %41 = vmatpush1.msra.mxu0 0.0
  %42 = vmatprep.subr.mxu0 0.0
  %43 = vmatpush1.msra.mxu0 0.0
  %44 = vmatprep.subr.mxu0 0.0
  %45 = vmatpush1.msra.mxu0 0.0
  %46 = vmatprep.subr.mxu0 0.0
  %47 = vmatpush1.msra.mxu0 0.0
  %48 = vmatprep.subr.mxu0 0.0
  %49 = vmatpush1.msra.mxu0 0.0
  %50 = vmatprep.subr.mxu0 0.0
  %51 = vmatpush1.msra.mxu0 0.0
  %52 = vmatprep.subr.mxu0 0.0
  %53 = vmatpush1.msra.mxu0 0.0
  %54 = vmatprep.subr.mxu0 0.0
  %55 = vmatpush1.msra.mxu0 0.0
  %56 = vmatprep.subr.mxu0 0.0
  %57 = vmatpush1.msra.mxu0 0.0
  %58 = vmatprep.subr.mxu0 0.0
  %59 = vmatpush1.msra.mxu0 %v19
  %60 = vmatprep.subr.mxu0 0.0
  %61 = vmatpush1.msra.mxu0 %v18
  %62 = vmatprep.subr.mxu0 0.0
  %63 = vmatpush1.msra.mxu0 %v17
  %64 = vmatprep.subr.mxu0 0.0
  %65 = vmatpush1.msra.mxu0 %v16
  %66 = vmatprep.subr.mxu0 0.0
  %67 = vmatpush2.msra.mxu0 0.0
  %68 = vmatprep.subr.mxu0 0.0
  %69 = vmatpush2.msra.mxu0 0.0
  %70 = vmatprep.subr.mxu0 0.0
  %71 = vmatpush2.msra.mxu0 0.0
  %72 = vmatprep.subr.mxu0 0.0
  %73 = vmatpush2.msra.mxu0 0.0
  %74 = vmatprep.subr.mxu0 0.0
  %75 = vmatpush2.msra.mxu0 0.0
  %76 = vmatprep.subr.mxu0 0.0
  %77 = vmatpush2.msra.mxu0 0.0
  %78 = vmatprep.subr.mxu0 0.0
  %79 = vmatpush2.msra.mxu0 0.0
  %80 = vmatprep.subr.mxu0 0.0
  %81 = vmatpush2.msra.mxu0 0.0
  %82 = vmatprep.subr.mxu0 0.0
  %83 = vmatpush2.msra.mxu0 0.0
  %84 = vmatprep.subr.mxu0 0.0
  %85 = vmatpush2.msra.mxu0 0.0
  %86 = vmatprep.subr.mxu0 0.0
  %87 = vmatpush2.msra.mxu0 0.0
  %88 = vmatprep.subr.mxu0 0.0
  %89 = vmatpush2.msra.mxu0 0.0
  %90 = vmatprep.subr.mxu0 0.0
  %91 = vmatpush2.msra.mxu0 0.0
  %92 = vmatprep.subr.mxu0 0.0
  %93 = vmatpush2.msra.mxu0 0.0
  %94 = vmatprep.subr.mxu0 0.0
  %95 = vmatpush2.msra.mxu0 0.0
  %96 = vmatprep.subr.mxu0 0.0
  %97 = vmatpush2.msra.mxu0 0.0
  %98 = vmatprep.mubr.f32.mxu0 0.0
  %99 = vmatmul.mubr.f32.gmra.mxu0 %v29
  %v100 = vpop.f32.mrf.mxu0
  %v101 = vadd.f32 %v25, %v100
  %v102 = vpop.f32.mrf.mxu0
  %103 = vmatprep.mubr.f32.mxu0 0.0
  %104 = vmatmul.mubr.f32.gmra.mxu0 %v32
  %v105 = vpop.f32.mrf.mxu0
  %v106 = vadd.f32 %v25, %v105
  %v107 = vpop.f32.mrf.mxu0
  %108 = vdwg.mxu0
  %vm109 = vcmask 785408
  %110 = vst.msk [vmem:[%s3] sm:$0xff] %vm109, %v101
  %111 = vst.msk [vmem:[%s3 + $0x8] sm:$0xff] %vm109, %v106
  // Predicated region
  $region14: #{transformer_encoder_extractor_forward.8} parent=0 // pred_check
    _
  $region15: #{transformer_encoder_extractor_forward.8} parent=0 // pred_check_branch
    %113 = sbr.rel (0) target = $region17
  $region16: #{transformer_encoder_extractor_forward.8} parent=0 // pred_region
    _
  $region17: #{transformer_encoder_extractor_forward.8} parent=0 // pred_fallthru
    _
  // Predicated region
  $region18: #{transformer_encoder_extractor_forward.8} parent=0 // pred_check
    _
  $region19: #{transformer_encoder_extractor_forward.8} parent=0 // pred_check_branch
    %115 = sbr.rel (0) target = $region21
  $region20: #{transformer_encoder_extractor_forward.8} parent=0 // pred_region
    _
  $region21: #{transformer_encoder_extractor_forward.8} parent=0 // pred_fallthru
    _

// kernel: transformer_encoder_extractor_forward.7
$region0: #{transformer_encoder_extractor_forward.7}
  #allocation0 [shape = 'u32[]', space=smem, size = 0x4, offset = 0x4, fixed_abs, tag = 'smem constant byte address 0x4 - core index']
  #allocation1 [shape = 'u32[144,128]{1,0:T(1,128)}', space=vmem, size = 0x12000, scoped, tag = 'internal scratch']
  %s0 = inlined_call_operand.vmem [shape: f32[2,8,9], index: 0, kind: input, shape index: {}]
  %s1 = inlined_call_operand.vmem [shape: f32[2,8,45], index: 1, kind: input, shape index: {}]
  %s2 = inlined_call_operand.vmem [shape: f32[2,8,128], index: 2, kind: input, shape index: {}]
  %s3 = inlined_call_operand.vmem [shape: f32[9,32], index: 3, kind: input, shape index: {}]
  %s4 = inlined_call_operand.vmem [shape: f32[45,16], index: 4, kind: input, shape index: {}]
  %s5 = inlined_call_operand.vmem [shape: f32[1,16], index: 5, kind: input, shape index: {}]
  %s6 = inlined_call_operand.vmem [shape: f32[16,32], index: 6, kind: input, shape index: {}]
  %s7 = inlined_call_operand.vmem [shape: f32[128,16], index: 7, kind: input, shape index: {}]
  %s8 = inlined_call_operand.vmem [shape: f32[1,16], index: 8, kind: input, shape index: {}]
  %s9 = inlined_call_operand.vmem [shape: f32[16,32], index: 9, kind: input, shape index: {}]
  %s10 = inlined_call_operand.vmem [shape: f32[1,32], index: 10, kind: input, shape index: {}]
  %s11 = inlined_call_operand.vmem [shape: f32[8,32], index: 11, kind: input, shape index: {}]
  %s12 = inlined_call_operand.vmem [shape: f32[2,8,32], index: 12, kind: output, shape index: {}]
  %s13 = sld [smem:[#allocation0]]
  $region81: #{transformer_encoder_extractor_forward.7} parent=0
    _
  %s15 = ssub.s32 1, %s13
  %s16 = scalar_select 0, %s15, %s13
  loop: start=0, step=1, limit=4
  $region2: #{transformer_encoder_extractor_forward.7} parent=0 // loop_pre_header
    _
  $region3: #{transformer_encoder_extractor_forward.7} parent=0 // loop_header
    %s18 = sphi 0, %s22
    %p19 = scmp.ge.s32.totalorder %s18, 4
    %s28 = sphi 0, %s30
    %s31 = sphi 0, %s28
    %s32 = sphi 0, %s31
    %s48 = sphi 0, %s32
    %s54 = sphi 0, %s56
    %s57 = sphi 0, %s54
    %s58 = sphi 0, %s57
    %s74 = sphi 0, %s58
    %s80 = sphi 0, %s82
    %s83 = sphi 0, %s80
    %s84 = sphi 0, %s83
    %s100 = sphi 0, %s84
    %s104 = sphi 0, %s104
    %s106 = sphi 0, %s104
    %s107 = sphi 0, %s106
    %s121 = sphi 0, %s107
    %s125 = sphi 0, %s125
    %s127 = sphi 0, %s125
    %s128 = sphi 0, %s127
    %s142 = sphi 0, %s128
    %s146 = sphi 0, %s146
    %s148 = sphi 0, %s146
    %s149 = sphi 0, %s148
    %s163 = sphi 0, %s149
    %s167 = sphi 0, %s167
    %s169 = sphi 0, %s167
    %s170 = sphi 0, %s169
    %s184 = sphi 0, %s170
    %s188 = sphi 0, %s188
    %s190 = sphi 0, %s188
    %s191 = sphi 0, %s190
    %s205 = sphi 0, %s191
    %s209 = sphi 0, %s209
    %s211 = sphi 0, %s209
    %s212 = sphi 0, %s211
    %s226 = sphi 0, %s212
    %s230 = sphi 0, %s230
    %s232 = sphi 0, %s230
    %s233 = sphi 0, %s232
    %s247 = sphi 0, %s233
    %s251 = sphi 0, %s251
    %s253 = sphi 0, %s251
    %s254 = sphi 0, %s253
    %s268 = sphi 0, %s254
    %s272 = sphi 0, %s272
    %s274 = sphi 0, %s272
    %s275 = sphi 0, %s274
    %s289 = sphi 0, %s275
    %s295 = sphi 0, %s297
    %s298 = sphi 0, %s295
    %s299 = sphi 0, %s298
    %s315 = sphi 0, %s299
  $region4: #{transformer_encoder_extractor_forward.7} parent=0 // loop_header_branch
    %21 = sbr.rel (%p19) target = $region8
  $region5: #{transformer_encoder_extractor_forward.7} parent=0 // loop_body
    %s23 = ssub.s32 %s18, 1
    %s24 = ssub.s32 %s18, 2
    %s25 = sadd.s32 %s18, 1
    %s26 = ssub.s32 %s18, %s25
    %p27 = scmp.eq.s32.totalorder %s26, 0
    %s29 = sadd.s32 %s28, 1
    %s30 = scalar_select %p27, %s28, %s29
    %p33 = pneg %p27
    %p34 = scmp.eq.s32.totalorder %s18, 1
    %p35 = por %p33, %p34
    %p36 = scmp.ne.s32.totalorder %s28, %s31
    %p37 = scmp.eq.s32.totalorder %s18, 0
    %p38 = por %p36, %p37
    %p39 = scmp.ne.s32.totalorder %s28, %s31
    %p40 = scmp.eq.s32.totalorder %s23, 1
    %p41 = por %p39, %p40
    %p42 = scmp.ne.s32.totalorder %s31, %s32
    %p43 = scmp.eq.s32.totalorder %s23, 0
    %p44 = por %p42, %p43
    %p45 = scmp.ne.s32.totalorder %s31, %s32
    %p46 = scmp.eq.s32.totalorder %s24, 1
    %p47 = por %p45, %p46
    %p49 = scmp.ne.s32.totalorder %s32, %s48
    %p50 = scmp.eq.s32.totalorder %s24, 0
    %p51 = por %p49, %p50
    %s52 = ssub.s32 %s18, %s25
    %p53 = scmp.eq.s32.totalorder %s52, 0
    %s55 = sadd.s32 %s54, 1
    %s56 = scalar_select %p53, %s54, %s55
    %p59 = pneg %p53
    %p60 = scmp.eq.s32.totalorder %s18, 1
    %p61 = por %p59, %p60
    %p62 = scmp.ne.s32.totalorder %s54, %s57
    %p63 = scmp.eq.s32.totalorder %s18, 0
    %p64 = por %p62, %p63
    %p65 = scmp.ne.s32.totalorder %s54, %s57
    %p66 = scmp.eq.s32.totalorder %s23, 1
    %p67 = por %p65, %p66
    %p68 = scmp.ne.s32.totalorder %s57, %s58
    %p69 = scmp.eq.s32.totalorder %s23, 0
    %p70 = por %p68, %p69
    %p71 = scmp.ne.s32.totalorder %s57, %s58
    %p72 = scmp.eq.s32.totalorder %s24, 1
    %p73 = por %p71, %p72
    %p75 = scmp.ne.s32.totalorder %s58, %s74
    %p76 = scmp.eq.s32.totalorder %s24, 0
    %p77 = por %p75, %p76
    %s78 = ssub.s32 %s18, %s25
    %p79 = scmp.eq.s32.totalorder %s78, 0
    %s81 = sadd.s32 %s80, 1
    %s82 = scalar_select %p79, %s80, %s81
    %p85 = pneg %p79
    %p86 = scmp.eq.s32.totalorder %s18, 1
    %p87 = por %p85, %p86
    %p88 = scmp.ne.s32.totalorder %s80, %s83
    %p89 = scmp.eq.s32.totalorder %s18, 0
    %p90 = por %p88, %p89
    %p91 = scmp.ne.s32.totalorder %s80, %s83
    %p92 = scmp.eq.s32.totalorder %s23, 1
    %p93 = por %p91, %p92
    %p94 = scmp.ne.s32.totalorder %s83, %s84
    %p95 = scmp.eq.s32.totalorder %s23, 0
    %p96 = por %p94, %p95
    %p97 = scmp.ne.s32.totalorder %s83, %s84
    %p98 = scmp.eq.s32.totalorder %s24, 1
    %p99 = por %p97, %p98
    %p101 = scmp.ne.s32.totalorder %s84, %s100
    %p102 = scmp.eq.s32.totalorder %s24, 0
    %p103 = por %p101, %p102
    %s105 = sadd.s32 %s104, 1
    %p108 = scmp.eq.s32.totalorder %s18, 1
    %p109 = scmp.ne.s32.totalorder %s104, %s106
    %p110 = scmp.eq.s32.totalorder %s18, 0
    %p111 = por %p109, %p110
    %p112 = scmp.ne.s32.totalorder %s104, %s106
    %p113 = scmp.eq.s32.totalorder %s23, 1
    %p114 = por %p112, %p113
    %p115 = scmp.ne.s32.totalorder %s106, %s107
    %p116 = scmp.eq.s32.totalorder %s23, 0
    %p117 = por %p115, %p116
    %p118 = scmp.ne.s32.totalorder %s106, %s107
    %p119 = scmp.eq.s32.totalorder %s24, 1
    %p120 = por %p118, %p119
    %p122 = scmp.ne.s32.totalorder %s107, %s121
    %p123 = scmp.eq.s32.totalorder %s24, 0
    %p124 = por %p122, %p123
    %s126 = sadd.s32 %s125, 1
    %p129 = scmp.eq.s32.totalorder %s18, 1
    %p130 = scmp.ne.s32.totalorder %s125, %s127
    %p131 = scmp.eq.s32.totalorder %s18, 0
    %p132 = por %p130, %p131
    %p133 = scmp.ne.s32.totalorder %s125, %s127
    %p134 = scmp.eq.s32.totalorder %s23, 1
    %p135 = por %p133, %p134
    %p136 = scmp.ne.s32.totalorder %s127, %s128
    %p137 = scmp.eq.s32.totalorder %s23, 0
    %p138 = por %p136, %p137
    %p139 = scmp.ne.s32.totalorder %s127, %s128
    %p140 = scmp.eq.s32.totalorder %s24, 1
    %p141 = por %p139, %p140
    %p143 = scmp.ne.s32.totalorder %s128, %s142
    %p144 = scmp.eq.s32.totalorder %s24, 0
    %p145 = por %p143, %p144
    %s147 = sadd.s32 %s146, 1
    %p150 = scmp.eq.s32.totalorder %s18, 1
    %p151 = scmp.ne.s32.totalorder %s146, %s148
    %p152 = scmp.eq.s32.totalorder %s18, 0
    %p153 = por %p151, %p152
    %p154 = scmp.ne.s32.totalorder %s146, %s148
    %p155 = scmp.eq.s32.totalorder %s23, 1
    %p156 = por %p154, %p155
    %p157 = scmp.ne.s32.totalorder %s148, %s149
    %p158 = scmp.eq.s32.totalorder %s23, 0
    %p159 = por %p157, %p158
    %p160 = scmp.ne.s32.totalorder %s148, %s149
    %p161 = scmp.eq.s32.totalorder %s24, 1
    %p162 = por %p160, %p161
    %p164 = scmp.ne.s32.totalorder %s149, %s163
    %p165 = scmp.eq.s32.totalorder %s24, 0
    %p166 = por %p164, %p165
    %s168 = sadd.s32 %s167, 1
    %p171 = scmp.eq.s32.totalorder %s18, 1
    %p172 = scmp.ne.s32.totalorder %s167, %s169
    %p173 = scmp.eq.s32.totalorder %s18, 0
    %p174 = por %p172, %p173
    %p175 = scmp.ne.s32.totalorder %s167, %s169
    %p176 = scmp.eq.s32.totalorder %s23, 1
    %p177 = por %p175, %p176
    %p178 = scmp.ne.s32.totalorder %s169, %s170
    %p179 = scmp.eq.s32.totalorder %s23, 0
    %p180 = por %p178, %p179
    %p181 = scmp.ne.s32.totalorder %s169, %s170
    %p182 = scmp.eq.s32.totalorder %s24, 1
    %p183 = por %p181, %p182
    %p185 = scmp.ne.s32.totalorder %s170, %s184
    %p186 = scmp.eq.s32.totalorder %s24, 0
    %p187 = por %p185, %p186
    %s189 = sadd.s32 %s188, 1
    %p192 = scmp.eq.s32.totalorder %s18, 1
    %p193 = scmp.ne.s32.totalorder %s188, %s190
    %p194 = scmp.eq.s32.totalorder %s18, 0
    %p195 = por %p193, %p194
    %p196 = scmp.ne.s32.totalorder %s188, %s190
    %p197 = scmp.eq.s32.totalorder %s23, 1
    %p198 = por %p196, %p197
    %p199 = scmp.ne.s32.totalorder %s190, %s191
    %p200 = scmp.eq.s32.totalorder %s23, 0
    %p201 = por %p199, %p200
    %p202 = scmp.ne.s32.totalorder %s190, %s191
    %p203 = scmp.eq.s32.totalorder %s24, 1
    %p204 = por %p202, %p203
    %p206 = scmp.ne.s32.totalorder %s191, %s205
    %p207 = scmp.eq.s32.totalorder %s24, 0
    %p208 = por %p206, %p207
    %s210 = sadd.s32 %s209, 1
    %p213 = scmp.eq.s32.totalorder %s18, 1
    %p214 = scmp.ne.s32.totalorder %s209, %s211
    %p215 = scmp.eq.s32.totalorder %s18, 0
    %p216 = por %p214, %p215
    %p217 = scmp.ne.s32.totalorder %s209, %s211
    %p218 = scmp.eq.s32.totalorder %s23, 1
    %p219 = por %p217, %p218
    %p220 = scmp.ne.s32.totalorder %s211, %s212
    %p221 = scmp.eq.s32.totalorder %s23, 0
    %p222 = por %p220, %p221
    %p223 = scmp.ne.s32.totalorder %s211, %s212
    %p224 = scmp.eq.s32.totalorder %s24, 1
    %p225 = por %p223, %p224
    %p227 = scmp.ne.s32.totalorder %s212, %s226
    %p228 = scmp.eq.s32.totalorder %s24, 0
    %p229 = por %p227, %p228
    %s231 = sadd.s32 %s230, 1
    %p234 = scmp.eq.s32.totalorder %s18, 1
    %p235 = scmp.ne.s32.totalorder %s230, %s232
    %p236 = scmp.eq.s32.totalorder %s18, 0
    %p237 = por %p235, %p236
    %p238 = scmp.ne.s32.totalorder %s230, %s232
    %p239 = scmp.eq.s32.totalorder %s23, 1
    %p240 = por %p238, %p239
    %p241 = scmp.ne.s32.totalorder %s232, %s233
    %p242 = scmp.eq.s32.totalorder %s23, 0
    %p243 = por %p241, %p242
    %p244 = scmp.ne.s32.totalorder %s232, %s233
    %p245 = scmp.eq.s32.totalorder %s24, 1
    %p246 = por %p244, %p245
    %p248 = scmp.ne.s32.totalorder %s233, %s247
    %p249 = scmp.eq.s32.totalorder %s24, 0
    %p250 = por %p248, %p249
    %s252 = sadd.s32 %s251, 1
    %p255 = scmp.eq.s32.totalorder %s18, 1
    %p256 = scmp.ne.s32.totalorder %s251, %s253
    %p257 = scmp.eq.s32.totalorder %s18, 0
    %p258 = por %p256, %p257
    %p259 = scmp.ne.s32.totalorder %s251, %s253
    %p260 = scmp.eq.s32.totalorder %s23, 1
    %p261 = por %p259, %p260
    %p262 = scmp.ne.s32.totalorder %s253, %s254
    %p263 = scmp.eq.s32.totalorder %s23, 0
    %p264 = por %p262, %p263
    %p265 = scmp.ne.s32.totalorder %s253, %s254
    %p266 = scmp.eq.s32.totalorder %s24, 1
    %p267 = por %p265, %p266
    %p269 = scmp.ne.s32.totalorder %s254, %s268
    %p270 = scmp.eq.s32.totalorder %s24, 0
    %p271 = por %p269, %p270
    %s273 = sadd.s32 %s272, 1
    %p276 = scmp.eq.s32.totalorder %s18, 1
    %p277 = scmp.ne.s32.totalorder %s272, %s274
    %p278 = scmp.eq.s32.totalorder %s18, 0
    %p279 = por %p277, %p278
    %p280 = scmp.ne.s32.totalorder %s272, %s274
    %p281 = scmp.eq.s32.totalorder %s23, 1
    %p282 = por %p280, %p281
    %p283 = scmp.ne.s32.totalorder %s274, %s275
    %p284 = scmp.eq.s32.totalorder %s23, 0
    %p285 = por %p283, %p284
    %p286 = scmp.ne.s32.totalorder %s274, %s275
    %p287 = scmp.eq.s32.totalorder %s24, 1
    %p288 = por %p286, %p287
    %p290 = scmp.ne.s32.totalorder %s275, %s289
    %p291 = scmp.eq.s32.totalorder %s24, 0
    %p292 = por %p290, %p291
    %s293 = ssub.s32 %s18, %s25
    %p294 = scmp.eq.s32.totalorder %s293, 0
    %s296 = sadd.s32 %s295, 1
    %s297 = scalar_select %p294, %s295, %s296
    %p300 = pneg %p294
    %p301 = scmp.eq.s32.totalorder %s18, 1
    %p302 = por %p300, %p301
    %p303 = scmp.ne.s32.totalorder %s295, %s298
    %p304 = scmp.eq.s32.totalorder %s18, 0
    %p305 = por %p303, %p304
    %p306 = scmp.ne.s32.totalorder %s295, %s298
    %p307 = scmp.eq.s32.totalorder %s23, 1
    %p308 = por %p306, %p307
    %p309 = scmp.ne.s32.totalorder %s298, %s299
    %p310 = scmp.eq.s32.totalorder %s23, 0
    %p311 = por %p309, %p310
    %p312 = scmp.ne.s32.totalorder %s298, %s299
    %p313 = scmp.eq.s32.totalorder %s24, 1
    %p314 = por %p312, %p313
    %p316 = scmp.ne.s32.totalorder %s299, %s315
    %p317 = scmp.eq.s32.totalorder %s24, 0
    %p318 = por %p316, %p317
    %p319 = scmp.le.s32.totalorder 1, %s18
    %p320 = scmp.lt.s32.totalorder %s18, 3
    %p321 = pnand %p319, %p320
    %p322 = pneg %p321
    // Predicated region
    $region9: #{transformer_encoder_extractor_forward.7} parent=5 // pred_check
      _
    $region10: #{transformer_encoder_extractor_forward.7} parent=5 // pred_check_branch
      %324 = sbr.rel (%p321) target = $region12
    $region11: #{transformer_encoder_extractor_forward.7} parent=5 // pred_region
      %s325 = ssub.s32 %s18, 1
      // Predicated region
      $region13: #{transformer_encoder_extractor_forward.7} parent=11 // pred_check
        %p326 = pneg %p117
      $region14: #{transformer_encoder_extractor_forward.7} parent=11 // pred_check_branch
        %328 = sbr.rel (%p326) target = $region16
      $region15: #{transformer_encoder_extractor_forward.7} parent=11 // pred_region
        _
      $region16: #{transformer_encoder_extractor_forward.7} parent=11 // pred_fallthru
        _
      // Predicated region
      $region17: #{transformer_encoder_extractor_forward.7} parent=11 // pred_check
        %p329 = pneg %p138
      $region18: #{transformer_encoder_extractor_forward.7} parent=11 // pred_check_branch
        %331 = sbr.rel (%p329) target = $region20
      $region19: #{transformer_encoder_extractor_forward.7} parent=11 // pred_region
        _
      $region20: #{transformer_encoder_extractor_forward.7} parent=11 // pred_fallthru
        _
      // Predicated region
      $region21: #{transformer_encoder_extractor_forward.7} parent=11 // pred_check
        %p332 = pneg %p159
      $region22: #{transformer_encoder_extractor_forward.7} parent=11 // pred_check_branch
        %334 = sbr.rel (%p332) target = $region24
      $region23: #{transformer_encoder_extractor_forward.7} parent=11 // pred_region
        _
      $region24: #{transformer_encoder_extractor_forward.7} parent=11 // pred_fallthru
        _
      // Predicated region
      $region25: #{transformer_encoder_extractor_forward.7} parent=11 // pred_check
        %p335 = pneg %p180
      $region26: #{transformer_encoder_extractor_forward.7} parent=11 // pred_check_branch
        %337 = sbr.rel (%p335) target = $region28
      $region27: #{transformer_encoder_extractor_forward.7} parent=11 // pred_region
        _
      $region28: #{transformer_encoder_extractor_forward.7} parent=11 // pred_fallthru
        _
      // Predicated region
      $region29: #{transformer_encoder_extractor_forward.7} parent=11 // pred_check
        %p338 = pneg %p201
      $region30: #{transformer_encoder_extractor_forward.7} parent=11 // pred_check_branch
        %340 = sbr.rel (%p338) target = $region32
      $region31: #{transformer_encoder_extractor_forward.7} parent=11 // pred_region
        _
      $region32: #{transformer_encoder_extractor_forward.7} parent=11 // pred_fallthru
        _
      // Predicated region
      $region33: #{transformer_encoder_extractor_forward.7} parent=11 // pred_check
        %p341 = pneg %p222
      $region34: #{transformer_encoder_extractor_forward.7} parent=11 // pred_check_branch
        %343 = sbr.rel (%p341) target = $region36
      $region35: #{transformer_encoder_extractor_forward.7} parent=11 // pred_region
        _
      $region36: #{transformer_encoder_extractor_forward.7} parent=11 // pred_fallthru
        _
      // Predicated region
      $region37: #{transformer_encoder_extractor_forward.7} parent=11 // pred_check
        %p344 = pneg %p243
      $region38: #{transformer_encoder_extractor_forward.7} parent=11 // pred_check_branch
        %346 = sbr.rel (%p344) target = $region40
      $region39: #{transformer_encoder_extractor_forward.7} parent=11 // pred_region
        _
      $region40: #{transformer_encoder_extractor_forward.7} parent=11 // pred_fallthru
        _
      // Predicated region
      $region41: #{transformer_encoder_extractor_forward.7} parent=11 // pred_check
        %p347 = pneg %p264
      $region42: #{transformer_encoder_extractor_forward.7} parent=11 // pred_check_branch
        %349 = sbr.rel (%p347) target = $region44
      $region43: #{transformer_encoder_extractor_forward.7} parent=11 // pred_region
        _
      $region44: #{transformer_encoder_extractor_forward.7} parent=11 // pred_fallthru
        _
      // Predicated region
      $region45: #{transformer_encoder_extractor_forward.7} parent=11 // pred_check
        %p350 = pneg %p285
      $region46: #{transformer_encoder_extractor_forward.7} parent=11 // pred_check_branch
        %352 = sbr.rel (%p350) target = $region48
      $region47: #{transformer_encoder_extractor_forward.7} parent=11 // pred_region
        _
      $region48: #{transformer_encoder_extractor_forward.7} parent=11 // pred_fallthru
        _
    $region12: #{transformer_encoder_extractor_forward.7} parent=5 // pred_fallthru
      _
    %p353 = scmp.lt.s32.totalorder %s18, 2
    // Predicated region
    $region49: #{transformer_encoder_extractor_forward.7} parent=5 // pred_check
      %p354 = pneg %p353
    $region50: #{transformer_encoder_extractor_forward.7} parent=5 // pred_check_branch
      %356 = sbr.rel (%p354) target = $region52
    $region51: #{transformer_encoder_extractor_forward.7} parent=5 // pred_region
      // Predicated region
      $region53: #{transformer_encoder_extractor_forward.7} parent=51 // pred_check
        %p357 = pneg %p38
      $region54: #{transformer_encoder_extractor_forward.7} parent=51 // pred_check_branch
        %359 = sbr.rel (%p357) target = $region56
      $region55: #{transformer_encoder_extractor_forward.7} parent=51 // pred_region
        %p360 = scmp.lt.s32.totalorder %s18, 1
        %s361 = scalar_select %p360, %s18, 1
        %s362 = smul.addr %s361, 8
        %s363 = scalar_lea.vmem %s0, %s362
      $region56: #{transformer_encoder_extractor_forward.7} parent=51 // pred_fallthru
        _
      // Predicated region
      $region57: #{transformer_encoder_extractor_forward.7} parent=51 // pred_check
        %p364 = pneg %p64
      $region58: #{transformer_encoder_extractor_forward.7} parent=51 // pred_check_branch
        %366 = sbr.rel (%p364) target = $region60
      $region59: #{transformer_encoder_extractor_forward.7} parent=51 // pred_region
        %p367 = scmp.lt.s32.totalorder %s18, 1
        %s368 = scalar_select %p367, %s18, 1
        %s369 = smul.addr %s368, 8
        %s370 = scalar_lea.vmem %s1, %s369
      $region60: #{transformer_encoder_extractor_forward.7} parent=51 // pred_fallthru
        _
      // Predicated region
      $region61: #{transformer_encoder_extractor_forward.7} parent=51 // pred_check
        %p371 = pneg %p90
      $region62: #{transformer_encoder_extractor_forward.7} parent=51 // pred_check_branch
        %373 = sbr.rel (%p371) target = $region64
      $region63: #{transformer_encoder_extractor_forward.7} parent=51 // pred_region
        %p374 = scmp.lt.s32.totalorder %s18, 1
        %s375 = scalar_select %p374, %s18, 1
        %s376 = smul.addr %s375, 8
        %s377 = scalar_lea.vmem %s2, %s376
      $region64: #{transformer_encoder_extractor_forward.7} parent=51 // pred_fallthru
        _
    $region52: #{transformer_encoder_extractor_forward.7} parent=5 // pred_fallthru
      _
    %p378 = scmp.le.s32.totalorder 1, %s18
    %p379 = scmp.lt.s32.totalorder %s18, 3
    %p380 = pnand %p378, %p379
    %p381 = pneg %p380
    // Predicated region
    $region65: #{transformer_encoder_extractor_forward.7} parent=5 // pred_check
      _
    $region66: #{transformer_encoder_extractor_forward.7} parent=5 // pred_check_branch
      %383 = sbr.rel (%p380) target = $region68
    $region67: #{transformer_encoder_extractor_forward.7} parent=5 // pred_region
      %s384 = ssub.s32 %s18, 1
      %p385 = scmp.lt.s32.totalorder %s23, 1
      %s386 = scalar_select %p385, %s23, 1
      %s387 = smul.addr %s386, 8
      %s388 = scalar_lea.vmem %s0, %s387
      %p389 = pneg %p44
      %p390 = pneg %p41
      %p391 = scmp.lt.s32.totalorder %s23, 1
      %s392 = scalar_select %p391, %s23, 1
      %s393 = smul.addr %s392, 8
      %s394 = scalar_lea.vmem %s1, %s393
      %p395 = pneg %p70
      %p396 = pneg %p67
      %p397 = scmp.lt.s32.totalorder %s23, 1
      %s398 = scalar_select %p397, %s23, 1
      %s399 = smul.addr %s398, 8
      %s400 = scalar_lea.vmem %s2, %s399
      %p401 = pneg %p96
      %p402 = pneg %p93
      %p403 = pneg %p117
      %p404 = pneg %p114
      %p405 = pneg %p138
      %p406 = pneg %p135
      %p407 = pneg %p159
      %p408 = pneg %p156
      %p409 = pneg %p180
      %p410 = pneg %p177
      %p411 = pneg %p201
      %p412 = pneg %p198
      %p413 = pneg %p222
      %p414 = pneg %p219
      %p415 = pneg %p243
      %p416 = pneg %p240
      %p417 = pneg %p264
      %p418 = pneg %p261
      %p419 = pneg %p285
      %p420 = pneg %p282
      %p421 = pneg %p311
      %p422 = pneg %p308
      %p423 = scmp.lt.s32.totalorder %s23, 1
      %s424 = scalar_select %p423, %s23, 1
      %s425 = smul.addr %s424, 8
      %s426 = scalar_lea.vmem %s12, %s425
      %p427 = scmp.lt.s32.totalorder %s23, 1
      %s428 = scalar_select %p427, %s23, 1
      %s429 = smul.addr %s428, 8
      %s430 = scalar_lea.vmem %s0, %s429
      %p431 = scmp.lt.s32.totalorder %s23, 1
      %s432 = scalar_select %p431, %s23, 1
      %s433 = smul.addr %s432, 8
      %s434 = scalar_lea.vmem %s1, %s433
      %p435 = scmp.lt.s32.totalorder %s23, 1
      %s436 = scalar_select %p435, %s23, 1
      %s437 = smul.addr %s436, 8
      %s438 = scalar_lea.vmem %s2, %s437
      %p439 = scmp.lt.s32.totalorder %s23, 1
      %s440 = scalar_select %p439, %s23, 1
      %s441 = smul.addr %s440, 8
      %s442 = scalar_lea.vmem %s12, %s441
      %v443 = vld [vmem:[%s430] sm:$0xff]
      %v444 = vld [vmem:[%s434] sm:$0xff]
      %v445 = vld [vmem:[%s438] sm:$0xff]
      %v446 = vld [vmem:[%s4] sm:$0xff]
      %v447 = vld [vmem:[%s4 + $0x8] sm:$0xff]
      %v448 = vld [vmem:[%s4 + $0x10] sm:$0xff]
      %v449 = vld [vmem:[%s4 + $0x18] sm:$0xff]
      %v450 = vld [vmem:[%s4 + $0x20] sm:$0xff]
      %v451 = vld [vmem:[%s4 + $0x28] sm:$0x1f]
      %v452 = vld [vmem:[%s5] sm:$0x1]
      %v454 = vlaneseq
      %v455 = vshrl.u32 %v454, 7
      %v456 = vsub.s32 0, %v455
      %v457 = vrot.slane %v452, %v456
      %vm459 = vcmask 367616
      %v461 = vsel %vm459, %v444, 0
      %vm463 = vcmask 1044480
      %v465 = vsel %vm463, %v451, 0
      %467 = vmatprep.subr.mxu0 0.0
      %468 = vmatpush1.msra.mxu0 0.0
      %469 = vmatprep.subr.mxu0 0.0
      %470 = vmatpush1.msra.mxu0 0.0
      %471 = vmatprep.subr.mxu0 0.0
      %472 = vmatpush1.msra.mxu0 0.0
      %473 = vmatprep.subr.mxu0 0.0
      %474 = vmatpush1.msra.mxu0 0.0
      %475 = vmatprep.subr.mxu0 0.0
      %476 = vmatpush1.msra.mxu0 0.0
      %477 = vmatprep.subr.mxu0 0.0
      %478 = vmatpush1.msra.mxu0 0.0
      %479 = vmatprep.subr.mxu0 0.0
      %480 = vmatpush1.msra.mxu0 0.0
      %481 = vmatprep.subr.mxu0 0.0
      %482 = vmatpush1.msra.mxu0 0.0
      %483 = vmatprep.subr.mxu0 0.0
      %484 = vmatpush1.msra.mxu0 0.0
      %485 = vmatprep.subr.mxu0 0.0
      %486 = vmatpush1.msra.mxu0 0.0
      %487 = vmatprep.subr.mxu0 0.0
      %488 = vmatpush1.msra.mxu0 %v465
      %489 = vmatprep.subr.mxu0 0.0
      %490 = vmatpush1.msra.mxu0 %v450
      %491 = vmatprep.subr.mxu0 0.0
      %492 = vmatpush1.msra.mxu0 %v449
      %493 = vmatprep.subr.mxu0 0.0
      %494 = vmatpush1.msra.mxu0 %v448
      %495 = vmatprep.subr.mxu0 0.0
      %496 = vmatpush1.msra.mxu0 %v447
      %497 = vmatprep.subr.mxu0 0.0
      %498 = vmatpush1.msra.mxu0 %v446
      %499 = vmatprep.subr.mxu0 0.0
      %500 = vmatpush2.msra.mxu0 0.0
      %501 = vmatprep.subr.mxu0 0.0
      %502 = vmatpush2.msra.mxu0 0.0
      %503 = vmatprep.subr.mxu0 0.0
      %504 = vmatpush2.msra.mxu0 0.0
      %505 = vmatprep.subr.mxu0 0.0
      %506 = vmatpush2.msra.mxu0 0.0
      %507 = vmatprep.subr.mxu0 0.0
      %508 = vmatpush2.msra.mxu0 0.0
      %509 = vmatprep.subr.mxu0 0.0
      %510 = vmatpush2.msra.mxu0 0.0
      %511 = vmatprep.subr.mxu0 0.0
      %512 = vmatpush2.msra.mxu0 0.0
      %513 = vmatprep.subr.mxu0 0.0
      %514 = vmatpush2.msra.mxu0 0.0
      %515 = vmatprep.subr.mxu0 0.0
      %516 = vmatpush2.msra.mxu0 0.0
      %517 = vmatprep.subr.mxu0 0.0
      %518 = vmatpush2.msra.mxu0 0.0
      %519 = vmatprep.subr.mxu0 0.0
      %520 = vmatpush2.msra.mxu0 0.0
      %521 = vmatprep.subr.mxu0 0.0
      %522 = vmatpush2.msra.mxu0 0.0
      %523 = vmatprep.subr.mxu0 0.0
      %524 = vmatpush2.msra.mxu0 0.0
      %525 = vmatprep.subr.mxu0 0.0
      %526 = vmatpush2.msra.mxu0 0.0
      %527 = vmatprep.subr.mxu0 0.0
      %528 = vmatpush2.msra.mxu0 0.0
      %529 = vmatprep.subr.mxu0 0.0
      %530 = vmatpush2.msra.mxu0 0.0
      %531 = vmatprep.mubr.f32.mxu0 0.0
      %532 = vmatmul.mubr.f32.gmra.mxu0 %v461
      %v533 = vpop.f32.mrf.mxu0
      %v534 = vadd.f32 %v457, %v533
      %v535 = vpop.f32.mrf.mxu0
      %536 = vdwg.mxu0
      %v537 = vld [vmem:[%s7] sm:$0xff]
      %v538 = vld [vmem:[%s7 + $0x8] sm:$0xff]
      %v539 = vld [vmem:[%s7 + $0x10] sm:$0xff]
      %v540 = vld [vmem:[%s7 + $0x18] sm:$0xff]
      %v541 = vld [vmem:[%s7 + $0x20] sm:$0xff]
      %v542 = vld [vmem:[%s7 + $0x28] sm:$0xff]
      %v543 = vld [vmem:[%s7 + $0x30] sm:$0xff]
      %v544 = vld [vmem:[%s7 + $0x38] sm:$0xff]
      %v545 = vld [vmem:[%s7 + $0x40] sm:$0xff]
      %v546 = vld [vmem:[%s7 + $0x48] sm:$0xff]
      %v547 = vld [vmem:[%s7 + $0x50] sm:$0xff]
      %v548 = vld [vmem:[%s7 + $0x58] sm:$0xff]
      %v549 = vld [vmem:[%s7 + $0x60] sm:$0xff]
      %v550 = vld [vmem:[%s7 + $0x68] sm:$0xff]
      %v551 = vld [vmem:[%s7 + $0x70] sm:$0xff]
      %v552 = vld [vmem:[%s7 + $0x78] sm:$0xff]
      %v553 = vld [vmem:[%s8] sm:$0x1]
      %v555 = vlaneseq
      %v556 = vshrl.u32 %v555, 7
      %v557 = vsub.s32 0, %v556
      %v558 = vrot.slane %v553, %v557
      %560 = vmatprep.subr.mxu0 0.0
      %561 = vmatpush1.msra.mxu0 %v552
      %562 = vmatprep.subr.mxu0 0.0
      %563 = vmatpush1.msra.mxu0 %v551
      %564 = vmatprep.subr.mxu0 0.0
      %565 = vmatpush1.msra.mxu0 %v550
      %566 = vmatprep.subr.mxu0 0.0
      %567 = vmatpush1.msra.mxu0 %v549
      %568 = vmatprep.subr.mxu0 0.0
      %569 = vmatpush1.msra.mxu0 %v548
      %570 = vmatprep.subr.mxu0 0.0
      %571 = vmatpush1.msra.mxu0 %v547
      %572 = vmatprep.subr.mxu0 0.0
      %573 = vmatpush1.msra.mxu0 %v546
      %574 = vmatprep.subr.mxu0 0.0
      %575 = vmatpush1.msra.mxu0 %v545
      %576 = vmatprep.subr.mxu0 0.0
      %577 = vmatpush1.msra.mxu0 %v544
      %578 = vmatprep.subr.mxu0 0.0
      %579 = vmatpush1.msra.mxu0 %v543
      %580 = vmatprep.subr.mxu0 0.0
      %581 = vmatpush1.msra.mxu0 %v542
      %582 = vmatprep.subr.mxu0 0.0
      %583 = vmatpush1.msra.mxu0 %v541
      %584 = vmatprep.subr.mxu0 0.0
      %585 = vmatpush1.msra.mxu0 %v540
      %586 = vmatprep.subr.mxu0 0.0
      %587 = vmatpush1.msra.mxu0 %v539
      %588 = vmatprep.subr.mxu0 0.0
      %589 = vmatpush1.msra.mxu0 %v538
      %590 = vmatprep.subr.mxu0 0.0
      %591 = vmatpush1.msra.mxu0 %v537
      %592 = vmatprep.subr.mxu0 0.0
      %593 = vmatpush2.msra.mxu0 0.0
      %594 = vmatprep.subr.mxu0 0.0
      %595 = vmatpush2.msra.mxu0 0.0
      %596 = vmatprep.subr.mxu0 0.0
      %597 = vmatpush2.msra.mxu0 0.0
      %598 = vmatprep.subr.mxu0 0.0
      %599 = vmatpush2.msra.mxu0 0.0
      %600 = vmatprep.subr.mxu0 0.0
      %601 = vmatpush2.msra.mxu0 0.0
      %602 = vmatprep.subr.mxu0 0.0
      %603 = vmatpush2.msra.mxu0 0.0
      %604 = vmatprep.subr.mxu0 0.0
      %605 = vmatpush2.msra.mxu0 0.0
      %606 = vmatprep.subr.mxu0 0.0
      %607 = vmatpush2.msra.mxu0 0.0
      %608 = vmatprep.subr.mxu0 0.0
      %609 = vmatpush2.msra.mxu0 0.0
      %610 = vmatprep.subr.mxu0 0.0
      %611 = vmatpush2.msra.mxu0 0.0
      %612 = vmatprep.subr.mxu0 0.0
      %613 = vmatpush2.msra.mxu0 0.0
      %614 = vmatprep.subr.mxu0 0.0
      %615 = vmatpush2.msra.mxu0 0.0
      %616 = vmatprep.subr.mxu0 0.0
      %617 = vmatpush2.msra.mxu0 0.0
      %618 = vmatprep.subr.mxu0 0.0
      %619 = vmatpush2.msra.mxu0 0.0
      %620 = vmatprep.subr.mxu0 0.0
      %621 = vmatpush2.msra.mxu0 0.0
      %622 = vmatprep.subr.mxu0 0.0
      %623 = vmatpush2.msra.mxu0 0.0
      %624 = vmatprep.mubr.f32.mxu0 0.0
      %625 = vmatmul.mubr.f32.gmra.mxu0 %v445
      %v626 = vpop.f32.mrf.mxu0
      %v627 = vadd.f32 %v558, %v626
      %v628 = vpop.f32.mrf.mxu0
      %629 = vdwg.mxu0
      %v630 = vld [vmem:[%s3] sm:$0xff]
      %v631 = vld [vmem:[%s3 + $0x8] sm:$0x1]
      %v632 = vld [vmem:[%s6] sm:$0xff]
      %v633 = vld [vmem:[%s6 + $0x8] sm:$0xff]
      %vm634 = vcmask 130048
      %v636 = vsel %vm634, %v534, 0
      %638 = vmatprep.subr.mxu0 0.0
      %639 = vmatpush1.msra.mxu0 0.0
      %640 = vmatprep.subr.mxu0 0.0
      %641 = vmatpush1.msra.mxu0 0.0
      %642 = vmatprep.subr.mxu0 0.0
      %643 = vmatpush1.msra.mxu0 0.0
      %644 = vmatprep.subr.mxu0 0.0
      %645 = vmatpush1.msra.mxu0 0.0
      %646 = vmatprep.subr.mxu0 0.0
      %647 = vmatpush1.msra.mxu0 0.0
      %648 = vmatprep.subr.mxu0 0.0
      %649 = vmatpush1.msra.mxu0 0.0
      %650 = vmatprep.subr.mxu0 0.0
      %651 = vmatpush1.msra.mxu0 0.0
      %652 = vmatprep.subr.mxu0 0.0
      %653 = vmatpush1.msra.mxu0 0.0
      %654 = vmatprep.subr.mxu0 0.0
      %655 = vmatpush1.msra.mxu0 0.0
      %656 = vmatprep.subr.mxu0 0.0
      %657 = vmatpush1.msra.mxu0 0.0
      %658 = vmatprep.subr.mxu0 0.0
      %659 = vmatpush1.msra.mxu0 0.0
      %660 = vmatprep.subr.mxu0 0.0
      %661 = vmatpush1.msra.mxu0 0.0
      %662 = vmatprep.subr.mxu0 0.0
      %663 = vmatpush1.msra.mxu0 0.0
      %664 = vmatprep.subr.mxu0 0.0
      %665 = vmatpush1.msra.mxu0 0.0
      %666 = vmatprep.subr.mxu0 0.0
      %667 = vmatpush1.msra.mxu0 %v633
      %668 = vmatprep.subr.mxu0 0.0
      %669 = vmatpush1.msra.mxu0 %v632
      %670 = vmatprep.subr.mxu0 0.0
      %671 = vmatpush2.msra.mxu0 0.0
      %672 = vmatprep.subr.mxu0 0.0
      %673 = vmatpush2.msra.mxu0 0.0
      %674 = vmatprep.subr.mxu0 0.0
      %675 = vmatpush2.msra.mxu0 0.0
      %676 = vmatprep.subr.mxu0 0.0
      %677 = vmatpush2.msra.mxu0 0.0
      %678 = vmatprep.subr.mxu0 0.0
      %679 = vmatpush2.msra.mxu0 0.0
      %680 = vmatprep.subr.mxu0 0.0
      %681 = vmatpush2.msra.mxu0 0.0
      %682 = vmatprep.subr.mxu0 0.0
      %683 = vmatpush2.msra.mxu0 0.0
      %684 = vmatprep.subr.mxu0 0.0
      %685 = vmatpush2.msra.mxu0 0.0
      %686 = vmatprep.subr.mxu0 0.0
      %687 = vmatpush2.msra.mxu0 0.0
      %688 = vmatprep.subr.mxu0 0.0
      %689 = vmatpush2.msra.mxu0 0.0
      %690 = vmatprep.subr.mxu0 0.0
      %691 = vmatpush2.msra.mxu0 0.0
      %692 = vmatprep.subr.mxu0 0.0
      %693 = vmatpush2.msra.mxu0 0.0
      %694 = vmatprep.subr.mxu0 0.0
      %695 = vmatpush2.msra.mxu0 0.0
      %696 = vmatprep.subr.mxu0 0.0
      %697 = vmatpush2.msra.mxu0 0.0
      %698 = vmatprep.subr.mxu0 0.0
      %699 = vmatpush2.msra.mxu0 0.0
      %700 = vmatprep.subr.mxu0 0.0
      %701 = vmatpush2.msra.mxu0 0.0
      %702 = vmatprep.mubr.f32.mxu0 0.0
      %703 = vmatmul.mubr.f32.gmra.mxu0 %v636
      %v704 = vpop.f32.mrf.mxu0
      %v705 = vadd.f32 0.0, %v704
      %v706 = vpop.f32.mrf.mxu0
      %707 = vdwg.mxu0
      %vm708 = vcmask 72704
      %v710 = vsel %vm708, %v443, 0
      %vm712 = vcmask 1040384
      %v714 = vsel %vm712, %v631, 0
      %716 = vmatprep.subr.mxu0 0.0
      %717 = vmatpush1.msra.mxu0 0.0
      %718 = vmatprep.subr.mxu0 0.0
      %719 = vmatpush1.msra.mxu0 0.0
      %720 = vmatprep.subr.mxu0 0.0
      %721 = vmatpush1.msra.mxu0 0.0
      %722 = vmatprep.subr.mxu0 0.0
      %723 = vmatpush1.msra.mxu0 0.0
      %724 = vmatprep.subr.mxu0 0.0
      %725 = vmatpush1.msra.mxu0 0.0
      %726 = vmatprep.subr.mxu0 0.0
      %727 = vmatpush1.msra.mxu0 0.0
      %728 = vmatprep.subr.mxu0 0.0
      %729 = vmatpush1.msra.mxu0 0.0
      %730 = vmatprep.subr.mxu0 0.0
      %731 = vmatpush1.msra.mxu0 0.0
      %732 = vmatprep.subr.mxu0 0.0
      %733 = vmatpush1.msra.mxu0 0.0
      %734 = vmatprep.subr.mxu0 0.0
      %735 = vmatpush1.msra.mxu0 0.0
      %736 = vmatprep.subr.mxu0 0.0
      %737 = vmatpush1.msra.mxu0 0.0
      %738 = vmatprep.subr.mxu0 0.0
      %739 = vmatpush1.msra.mxu0 0.0
      %740 = vmatprep.subr.mxu0 0.0
      %741 = vmatpush1.msra.mxu0 0.0
      %742 = vmatprep.subr.mxu0 0.0
      %743 = vmatpush1.msra.mxu0 0.0
      %744 = vmatprep.subr.mxu0 0.0
      %745 = vmatpush1.msra.mxu0 %v714
      %746 = vmatprep.subr.mxu0 0.0
      %747 = vmatpush1.msra.mxu0 %v630
      %748 = vmatprep.subr.mxu0 0.0
      %749 = vmatpush2.msra.mxu0 0.0
      %750 = vmatprep.subr.mxu0 0.0
      %751 = vmatpush2.msra.mxu0 0.0
      %752 = vmatprep.subr.mxu0 0.0
      %753 = vmatpush2.msra.mxu0 0.0
      %754 = vmatprep.subr.mxu0 0.0
      %755 = vmatpush2.msra.mxu0 0.0
      %756 = vmatprep.subr.mxu0 0.0
      %757 = vmatpush2.msra.mxu0 0.0
      %758 = vmatprep.subr.mxu0 0.0
      %759 = vmatpush2.msra.mxu0 0.0
      %760 = vmatprep.subr.mxu0 0.0
      %761 = vmatpush2.msra.mxu0 0.0
      %762 = vmatprep.subr.mxu0 0.0
      %763 = vmatpush2.msra.mxu0 0.0
      %764 = vmatprep.subr.mxu0 0.0
      %765 = vmatpush2.msra.mxu0 0.0
      %766 = vmatprep.subr.mxu0 0.0
      %767 = vmatpush2.msra.mxu0 0.0
      %768 = vmatprep.subr.mxu0 0.0
      %769 = vmatpush2.msra.mxu0 0.0
      %770 = vmatprep.subr.mxu0 0.0
      %771 = vmatpush2.msra.mxu0 0.0
      %772 = vmatprep.subr.mxu0 0.0
      %773 = vmatpush2.msra.mxu0 0.0
      %774 = vmatprep.subr.mxu0 0.0
      %775 = vmatpush2.msra.mxu0 0.0
      %776 = vmatprep.subr.mxu0 0.0
      %777 = vmatpush2.msra.mxu0 0.0
      %778 = vmatprep.subr.mxu0 0.0
      %779 = vmatpush2.msra.mxu0 0.0
      %780 = vmatprep.mubr.f32.mxu0 0.0
      %781 = vmatmul.mubr.f32.gmra.mxu0 %v710
      %v782 = vpop.f32.mrf.mxu0
      %v783 = vadd.f32 %v705, %v782
      %v784 = vpop.f32.mrf.mxu0
      %785 = vdwg.mxu0
      %v786 = vld [vmem:[%s9] sm:$0xff]
      %v787 = vld [vmem:[%s9 + $0x8] sm:$0xff]
      %v789 = vsel %vm634, %v627, 0
      %791 = vmatprep.subr.mxu0 0.0
      %792 = vmatpush1.msra.mxu0 0.0
      %793 = vmatprep.subr.mxu0 0.0
      %794 = vmatpush1.msra.mxu0 0.0
      %795 = vmatprep.subr.mxu0 0.0
      %796 = vmatpush1.msra.mxu0 0.0
      %797 = vmatprep.subr.mxu0 0.0
      %798 = vmatpush1.msra.mxu0 0.0
      %799 = vmatprep.subr.mxu0 0.0
      %800 = vmatpush1.msra.mxu0 0.0
      %801 = vmatprep.subr.mxu0 0.0
      %802 = vmatpush1.msra.mxu0 0.0
      %803 = vmatprep.subr.mxu0 0.0
      %804 = vmatpush1.msra.mxu0 0.0
      %805 = vmatprep.subr.mxu0 0.0
      %806 = vmatpush1.msra.mxu0 0.0
      %807 = vmatprep.subr.mxu0 0.0
      %808 = vmatpush1.msra.mxu0 0.0
      %809 = vmatprep.subr.mxu0 0.0
      %810 = vmatpush1.msra.mxu0 0.0
      %811 = vmatprep.subr.mxu0 0.0
      %812 = vmatpush1.msra.mxu0 0.0
      %813 = vmatprep.subr.mxu0 0.0
      %814 = vmatpush1.msra.mxu0 0.0
      %815 = vmatprep.subr.mxu0 0.0
      %816 = vmatpush1.msra.mxu0 0.0
      %817 = vmatprep.subr.mxu0 0.0
      %818 = vmatpush1.msra.mxu0 0.0
      %819 = vmatprep.subr.mxu0 0.0
      %820 = vmatpush1.msra.mxu0 %v787
      %821 = vmatprep.subr.mxu0 0.0
      %822 = vmatpush1.msra.mxu0 %v786
      %823 = vmatprep.subr.mxu0 0.0
      %824 = vmatpush2.msra.mxu0 0.0
      %825 = vmatprep.subr.mxu0 0.0
      %826 = vmatpush2.msra.mxu0 0.0
      %827 = vmatprep.subr.mxu0 0.0
      %828 = vmatpush2.msra.mxu0 0.0
      %829 = vmatprep.subr.mxu0 0.0
      %830 = vmatpush2.msra.mxu0 0.0
      %831 = vmatprep.subr.mxu0 0.0
      %832 = vmatpush2.msra.mxu0 0.0
      %833 = vmatprep.subr.mxu0 0.0
      %834 = vmatpush2.msra.mxu0 0.0
      %835 = vmatprep.subr.mxu0 0.0
      %836 = vmatpush2.msra.mxu0 0.0
      %837 = vmatprep.subr.mxu0 0.0
      %838 = vmatpush2.msra.mxu0 0.0
      %839 = vmatprep.subr.mxu0 0.0
      %840 = vmatpush2.msra.mxu0 0.0
      %841 = vmatprep.subr.mxu0 0.0
      %842 = vmatpush2.msra.mxu0 0.0
      %843 = vmatprep.subr.mxu0 0.0
      %844 = vmatpush2.msra.mxu0 0.0
      %845 = vmatprep.subr.mxu0 0.0
      %846 = vmatpush2.msra.mxu0 0.0
      %847 = vmatprep.subr.mxu0 0.0
      %848 = vmatpush2.msra.mxu0 0.0
      %849 = vmatprep.subr.mxu0 0.0
      %850 = vmatpush2.msra.mxu0 0.0
      %851 = vmatprep.subr.mxu0 0.0
      %852 = vmatpush2.msra.mxu0 0.0
      %853 = vmatprep.subr.mxu0 0.0
      %854 = vmatpush2.msra.mxu0 0.0
      %855 = vmatprep.mubr.f32.mxu0 0.0
      %856 = vmatmul.mubr.f32.gmra.mxu0 %v789
      %v857 = vpop.f32.mrf.mxu0
      %v858 = vadd.f32 0.0, %v857
      %v859 = vpop.f32.mrf.mxu0
      %860 = vdwg.mxu0
      %v861 = vadd.f32 %v783, %v858
      %v862 = vld [vmem:[%s10] sm:$0x1]
      %v864 = vlaneseq
      %v865 = vshrl.u32 %v864, 7
      %v866 = vsub.s32 0, %v865
      %v867 = vrot.slane %v862, %v866
      %v869 = vadd.f32 %v861, %v867
      %v870 = vld [vmem:[%s11] sm:$0xff]
      %v871 = vadd.f32 %v869, %v870
      %vm872 = vcmask 261120
      %873 = vst.msk [vmem:[%s442] sm:$0xff] %vm872, %v871
      %p874 = scmp.lt.s32.totalorder %s23, 1
      %s875 = scalar_select %p874, %s23, 1
      %s876 = smul.addr %s875, 8
      %s877 = scalar_lea.vmem %s12, %s876
      // Predicated region
      $region69: #{transformer_encoder_extractor_forward.7} parent=67 // pred_check
        %p878 = pneg %p308
      $region70: #{transformer_encoder_extractor_forward.7} parent=67 // pred_check_branch
        %880 = sbr.rel (%p878) target = $region72
      $region71: #{transformer_encoder_extractor_forward.7} parent=67 // pred_region
        _
      $region72: #{transformer_encoder_extractor_forward.7} parent=67 // pred_fallthru
        _
    $region68: #{transformer_encoder_extractor_forward.7} parent=5 // pred_fallthru
      _
    %p881 = scmp.le.s32.totalorder 2, %s18
    // Predicated region
    $region73: #{transformer_encoder_extractor_forward.7} parent=5 // pred_check
      %p882 = pneg %p881
    $region74: #{transformer_encoder_extractor_forward.7} parent=5 // pred_check_branch
      %884 = sbr.rel (%p882) target = $region76
    $region75: #{transformer_encoder_extractor_forward.7} parent=5 // pred_region
      %s885 = ssub.s32 %s18, 2
      // Predicated region
      $region77: #{transformer_encoder_extractor_forward.7} parent=75 // pred_check
        %p886 = pneg %p314
      $region78: #{transformer_encoder_extractor_forward.7} parent=75 // pred_check_branch
        %888 = sbr.rel (%p886) target = $region80
      $region79: #{transformer_encoder_extractor_forward.7} parent=75 // pred_region
        %p889 = scmp.lt.s32.totalorder %s24, 1
        %s890 = scalar_select %p889, %s24, 1
        %s891 = smul.addr %s890, 8
        %s892 = scalar_lea.vmem %s12, %s891
      $region80: #{transformer_encoder_extractor_forward.7} parent=75 // pred_fallthru
        _
    $region76: #{transformer_encoder_extractor_forward.7} parent=5 // pred_fallthru
      _
  $region6: #{transformer_encoder_extractor_forward.7} parent=0 // loop_footer
    %s22 = sadd.s32 1, %s18
  $region7: #{transformer_encoder_extractor_forward.7} parent=0 // loop_footer_branch
    %17 = sbr.rel target = $region3
  $region8: #{transformer_encoder_extractor_forward.7} parent=0 // loop_exit
    _

// kernel: transformer_encoder_extractor_forward.10
$region0: #{transformer_encoder_extractor_forward.10}
  #allocation0 [shape = 'u32[]', space=smem, size = 0x4, offset = 0x4, fixed_abs, tag = 'smem constant byte address 0x4 - core index']
  #allocation1 [shape = 'u32[144,128]{1,0:T(1,128)}', space=vmem, size = 0x12000, scoped, tag = 'internal scratch']
  %s0 = inlined_call_operand.vmem [shape: f32[16,32], index: 0, kind: input, shape index: {}]
  %s1 = inlined_call_operand.vmem [shape: f32[32,64], index: 1, kind: input, shape index: {}]
  %s2 = inlined_call_operand.vmem [shape: f32[1,64], index: 2, kind: input, shape index: {}]
  %s3 = inlined_call_operand.vmem [shape: f32[64,32], index: 3, kind: input, shape index: {}]
  %s4 = inlined_call_operand.vmem [shape: f32[1,32], index: 4, kind: input, shape index: {}]
  %s5 = inlined_call_operand.vmem [shape: f32[1,32], index: 5, kind: input, shape index: {}]
  %s6 = inlined_call_operand.vmem [shape: f32[1,32], index: 6, kind: input, shape index: {}]
  %s7 = inlined_call_operand.vmem [shape: f32[16,32], index: 7, kind: output, shape index: {}]
  %s8 = sld [smem:[#allocation0]]
  $region38: #{transformer_encoder_extractor_forward.10} parent=0
    _
  %s10 = ssub.s32 1, %s8
  %s11 = scalar_select 0, %s10, %s8
  // Predicated region
  $region2: #{transformer_encoder_extractor_forward.10} parent=0 // pred_check
    _
  $region3: #{transformer_encoder_extractor_forward.10} parent=0 // pred_check_branch
    %13 = sbr.rel (0) target = $region5
  $region4: #{transformer_encoder_extractor_forward.10} parent=0 // pred_region
    _
  $region5: #{transformer_encoder_extractor_forward.10} parent=0 // pred_fallthru
    _
  // Predicated region
  $region6: #{transformer_encoder_extractor_forward.10} parent=0 // pred_check
    _
  $region7: #{transformer_encoder_extractor_forward.10} parent=0 // pred_check_branch
    %15 = sbr.rel (0) target = $region9
  $region8: #{transformer_encoder_extractor_forward.10} parent=0 // pred_region
    _
  $region9: #{transformer_encoder_extractor_forward.10} parent=0 // pred_fallthru
    _
  // Predicated region
  $region10: #{transformer_encoder_extractor_forward.10} parent=0 // pred_check
    _
  $region11: #{transformer_encoder_extractor_forward.10} parent=0 // pred_check_branch
    %17 = sbr.rel (0) target = $region13
  $region12: #{transformer_encoder_extractor_forward.10} parent=0 // pred_region
    _
  $region13: #{transformer_encoder_extractor_forward.10} parent=0 // pred_fallthru
    _
  // Predicated region
  $region14: #{transformer_encoder_extractor_forward.10} parent=0 // pred_check
    _
  $region15: #{transformer_encoder_extractor_forward.10} parent=0 // pred_check_branch
    %19 = sbr.rel (0) target = $region17
  $region16: #{transformer_encoder_extractor_forward.10} parent=0 // pred_region
    _
  $region17: #{transformer_encoder_extractor_forward.10} parent=0 // pred_fallthru
    _
  // Predicated region
  $region18: #{transformer_encoder_extractor_forward.10} parent=0 // pred_check
    _
  $region19: #{transformer_encoder_extractor_forward.10} parent=0 // pred_check_branch
    %21 = sbr.rel (0) target = $region21
  $region20: #{transformer_encoder_extractor_forward.10} parent=0 // pred_region
    _
  $region21: #{transformer_encoder_extractor_forward.10} parent=0 // pred_fallthru
    _
  // Predicated region
  $region22: #{transformer_encoder_extractor_forward.10} parent=0 // pred_check
    _
  $region23: #{transformer_encoder_extractor_forward.10} parent=0 // pred_check_branch
    %23 = sbr.rel (0) target = $region25
  $region24: #{transformer_encoder_extractor_forward.10} parent=0 // pred_region
    _
  $region25: #{transformer_encoder_extractor_forward.10} parent=0 // pred_fallthru
    _
  // Predicated region
  $region26: #{transformer_encoder_extractor_forward.10} parent=0 // pred_check
    _
  $region27: #{transformer_encoder_extractor_forward.10} parent=0 // pred_check_branch
    %25 = sbr.rel (0) target = $region29
  $region28: #{transformer_encoder_extractor_forward.10} parent=0 // pred_region
    _
  $region29: #{transformer_encoder_extractor_forward.10} parent=0 // pred_fallthru
    _
  %v26 = vld [vmem:[%s0] sm:$0xff]
  %v27 = vld [vmem:[%s0 + $0x8] sm:$0xff]
  %v28 = vld [vmem:[%s1] sm:$0xff]
  %v29 = vld [vmem:[%s1 + $0x8] sm:$0xff]
  %v30 = vld [vmem:[%s1 + $0x10] sm:$0xff]
  %v31 = vld [vmem:[%s1 + $0x18] sm:$0xff]
  %v32 = vld [vmem:[%s2] sm:$0x1]
  %v34 = vlaneseq
  %v35 = vshrl.u32 %v34, 7
  %v36 = vsub.s32 0, %v35
  %v37 = vrot.slane %v32, %v36
  %vm39 = vcmask 261120
  %v41 = vsel %vm39, %v26, 0
  %v44 = vsel %vm39, %v27, 0
  %46 = vmatprep.subr.mxu0 0.0
  %47 = vmatpush1.msra.mxu0 0.0
  %48 = vmatprep.subr.mxu0 0.0
  %49 = vmatpush1.msra.mxu0 0.0
  %50 = vmatprep.subr.mxu0 0.0
  %51 = vmatpush1.msra.mxu0 0.0
  %52 = vmatprep.subr.mxu0 0.0
  %53 = vmatpush1.msra.mxu0 0.0
  %54 = vmatprep.subr.mxu0 0.0
  %55 = vmatpush1.msra.mxu0 0.0
  %56 = vmatprep.subr.mxu0 0.0
  %57 = vmatpush1.msra.mxu0 0.0
  %58 = vmatprep.subr.mxu0 0.0
  %59 = vmatpush1.msra.mxu0 0.0
  %60 = vmatprep.subr.mxu0 0.0
  %61 = vmatpush1.msra.mxu0 0.0
  %62 = vmatprep.subr.mxu0 0.0
  %63 = vmatpush1.msra.mxu0 0.0
  %64 = vmatprep.subr.mxu0 0.0
  %65 = vmatpush1.msra.mxu0 0.0
  %66 = vmatprep.subr.mxu0 0.0
  %67 = vmatpush1.msra.mxu0 0.0
  %68 = vmatprep.subr.mxu0 0.0
  %69 = vmatpush1.msra.mxu0 0.0
  %70 = vmatprep.subr.mxu0 0.0
  %71 = vmatpush1.msra.mxu0 %v31
  %72 = vmatprep.subr.mxu0 0.0
  %73 = vmatpush1.msra.mxu0 %v30
  %74 = vmatprep.subr.mxu0 0.0
  %75 = vmatpush1.msra.mxu0 %v29
  %76 = vmatprep.subr.mxu0 0.0
  %77 = vmatpush1.msra.mxu0 %v28
  %78 = vmatprep.subr.mxu0 0.0
  %79 = vmatpush2.msra.mxu0 0.0
  %80 = vmatprep.subr.mxu0 0.0
  %81 = vmatpush2.msra.mxu0 0.0
  %82 = vmatprep.subr.mxu0 0.0
  %83 = vmatpush2.msra.mxu0 0.0
  %84 = vmatprep.subr.mxu0 0.0
  %85 = vmatpush2.msra.mxu0 0.0
  %86 = vmatprep.subr.mxu0 0.0
  %87 = vmatpush2.msra.mxu0 0.0
  %88 = vmatprep.subr.mxu0 0.0
  %89 = vmatpush2.msra.mxu0 0.0
  %90 = vmatprep.subr.mxu0 0.0
  %91 = vmatpush2.msra.mxu0 0.0
  %92 = vmatprep.subr.mxu0 0.0
  %93 = vmatpush2.msra.mxu0 0.0
  %94 = vmatprep.subr.mxu0 0.0
  %95 = vmatpush2.msra.mxu0 0.0
  %96 = vmatprep.subr.mxu0 0.0
  %97 = vmatpush2.msra.mxu0 0.0
  %98 = vmatprep.subr.mxu0 0.0
  %99 = vmatpush2.msra.mxu0 0.0
  %100 = vmatprep.subr.mxu0 0.0
  %101 = vmatpush2.msra.mxu0 0.0
  %102 = vmatprep.subr.mxu0 0.0
  %103 = vmatpush2.msra.mxu0 0.0
  %104 = vmatprep.subr.mxu0 0.0
  %105 = vmatpush2.msra.mxu0 0.0
  %106 = vmatprep.subr.mxu0 0.0
  %107 = vmatpush2.msra.mxu0 0.0
  %108 = vmatprep.subr.mxu0 0.0
  %109 = vmatpush2.msra.mxu0 0.0
  %110 = vmatprep.mubr.f32.mxu0 0.0
  %111 = vmatmul.mubr.f32.gmra.mxu0 %v41
  %v112 = vpop.f32.mrf.mxu0
  %v113 = vadd.f32 %v37, %v112
  %v114 = vpop.f32.mrf.mxu0
  %115 = vmatprep.mubr.f32.mxu0 0.0
  %116 = vmatmul.mubr.f32.gmra.mxu0 %v44
  %v117 = vpop.f32.mrf.mxu0
  %v118 = vadd.f32 %v37, %v117
  %v119 = vpop.f32.mrf.mxu0
  %120 = vdwg.mxu0
  %v121 = vmax.f32 %v113, 0.0
  %v122 = vmax.f32 %v118, 0.0
  %v123 = vld [vmem:[%s3] sm:$0xff]
  %v124 = vld [vmem:[%s3 + $0x8] sm:$0xff]
  %v125 = vld [vmem:[%s3 + $0x10] sm:$0xff]
  %v126 = vld [vmem:[%s3 + $0x18] sm:$0xff]
  %v127 = vld [vmem:[%s3 + $0x20] sm:$0xff]
  %v128 = vld [vmem:[%s3 + $0x28] sm:$0xff]
  %v129 = vld [vmem:[%s3 + $0x30] sm:$0xff]
  %v130 = vld [vmem:[%s3 + $0x38] sm:$0xff]
  %v131 = vld [vmem:[%s4] sm:$0x1]
  %v133 = vlaneseq
  %v134 = vshrl.u32 %v133, 7
  %v135 = vsub.s32 0, %v134
  %v136 = vrot.slane %v131, %v135
  %vm138 = vcmask 523264
  %v140 = vsel %vm138, %v121, 0
  %v143 = vsel %vm138, %v122, 0
  %145 = vmatprep.subr.mxu0 0.0
  %146 = vmatpush1.msra.mxu0 0.0
  %147 = vmatprep.subr.mxu0 0.0
  %148 = vmatpush1.msra.mxu0 0.0
  %149 = vmatprep.subr.mxu0 0.0
  %150 = vmatpush1.msra.mxu0 0.0
  %151 = vmatprep.subr.mxu0 0.0
  %152 = vmatpush1.msra.mxu0 0.0
  %153 = vmatprep.subr.mxu0 0.0
  %154 = vmatpush1.msra.mxu0 0.0
  %155 = vmatprep.subr.mxu0 0.0
  %156 = vmatpush1.msra.mxu0 0.0
  %157 = vmatprep.subr.mxu0 0.0
  %158 = vmatpush1.msra.mxu0 0.0
  %159 = vmatprep.subr.mxu0 0.0
  %160 = vmatpush1.msra.mxu0 0.0
  %161 = vmatprep.subr.mxu0 0.0
  %162 = vmatpush1.msra.mxu0 %v130
  %163 = vmatprep.subr.mxu0 0.0
  %164 = vmatpush1.msra.mxu0 %v129
  %165 = vmatprep.subr.mxu0 0.0
  %166 = vmatpush1.msra.mxu0 %v128
  %167 = vmatprep.subr.mxu0 0.0
  %168 = vmatpush1.msra.mxu0 %v127
  %169 = vmatprep.subr.mxu0 0.0
  %170 = vmatpush1.msra.mxu0 %v126
  %171 = vmatprep.subr.mxu0 0.0
  %172 = vmatpush1.msra.mxu0 %v125
  %173 = vmatprep.subr.mxu0 0.0
  %174 = vmatpush1.msra.mxu0 %v124
  %175 = vmatprep.subr.mxu0 0.0
  %176 = vmatpush1.msra.mxu0 %v123
  %177 = vmatprep.subr.mxu0 0.0
  %178 = vmatpush2.msra.mxu0 0.0
  %179 = vmatprep.subr.mxu0 0.0
  %180 = vmatpush2.msra.mxu0 0.0
  %181 = vmatprep.subr.mxu0 0.0
  %182 = vmatpush2.msra.mxu0 0.0
  %183 = vmatprep.subr.mxu0 0.0
  %184 = vmatpush2.msra.mxu0 0.0
  %185 = vmatprep.subr.mxu0 0.0
  %186 = vmatpush2.msra.mxu0 0.0
  %187 = vmatprep.subr.mxu0 0.0
  %188 = vmatpush2.msra.mxu0 0.0
  %189 = vmatprep.subr.mxu0 0.0
  %190 = vmatpush2.msra.mxu0 0.0
  %191 = vmatprep.subr.mxu0 0.0
  %192 = vmatpush2.msra.mxu0 0.0
  %193 = vmatprep.subr.mxu0 0.0
  %194 = vmatpush2.msra.mxu0 0.0
  %195 = vmatprep.subr.mxu0 0.0
  %196 = vmatpush2.msra.mxu0 0.0
  %197 = vmatprep.subr.mxu0 0.0
  %198 = vmatpush2.msra.mxu0 0.0
  %199 = vmatprep.subr.mxu0 0.0
  %200 = vmatpush2.msra.mxu0 0.0
  %201 = vmatprep.subr.mxu0 0.0
  %202 = vmatpush2.msra.mxu0 0.0
  %203 = vmatprep.subr.mxu0 0.0
  %204 = vmatpush2.msra.mxu0 0.0
  %205 = vmatprep.subr.mxu0 0.0
  %206 = vmatpush2.msra.mxu0 0.0
  %207 = vmatprep.subr.mxu0 0.0
  %208 = vmatpush2.msra.mxu0 0.0
  %209 = vmatprep.mubr.f32.mxu0 0.0
  %210 = vmatmul.mubr.f32.gmra.mxu0 %v140
  %v211 = vpop.f32.mrf.mxu0
  %v212 = vadd.f32 %v136, %v211
  %v213 = vpop.f32.mrf.mxu0
  %214 = vmatprep.mubr.f32.mxu0 0.0
  %215 = vmatmul.mubr.f32.gmra.mxu0 %v143
  %v216 = vpop.f32.mrf.mxu0
  %v217 = vadd.f32 %v136, %v216
  %v218 = vpop.f32.mrf.mxu0
  %219 = vdwg.mxu0
  %v220 = vadd.f32 %v26, %v212
  %v221 = vadd.f32 %v27, %v217
  %v222 = vld [vmem:[%s5] sm:$0x1]
  %v223 = vld [vmem:[%s6] sm:$0x1]
  %v224 = vsel %vm39, %v220, 0.0
  %225 = vadd.xlane.f32.xlu0 %v224
  %v226 = vpop.xlane.xlu0 %225
  %v227 = vsel %vm39, %v221, 0.0
  %228 = vadd.xlane.f32.xlu0 %v227
  %v229 = vpop.xlane.xlu0 %228
  %v230 = vmul.f32 %v226, 0.03125
  %v231 = vmul.f32 %v229, 0.03125
  %v232 = vsub.f32 %v220, %v230
  %v233 = vsub.f32 %v221, %v231
  %v234 = vmul.f32 %v232, %v232
  %v235 = vmul.f32 %v233, %v233
  %v236 = vsel %vm39, %v234, 0.0
  %237 = vadd.xlane.f32.xlu0 %v236
  %v238 = vpop.xlane.xlu0 %237
  %v239 = vsel %vm39, %v235, 0.0
  %240 = vadd.xlane.f32.xlu0 %v239
  %v241 = vpop.xlane.xlu0 %240
  %v242 = vmul.f32 %v238, 0.03125
  %v243 = vmul.f32 %v241, 0.03125
  %v244 = vadd.f32 %v242, 1e-05
  %v245 = vadd.f32 %v243, 1e-05
  %v246 = vrsqrt.pop %v244
  %v247 = vrsqrt.pop %v245
  %v248 = vmul.f32 %v232, %v246
  %v249 = vmul.f32 %v233, %v247
  %v251 = vlaneseq
  %v252 = vshrl.u32 %v251, 7
  %v253 = vsub.s32 0, %v252
  %v254 = vrot.slane %v222, %v253
  %v256 = vmul.f32 %v248, %v254
  %v257 = vmul.f32 %v249, %v254
  %v259 = vlaneseq
  %v260 = vshrl.u32 %v259, 7
  %v261 = vsub.s32 0, %v260
  %v262 = vrot.slane %v223, %v261
  %v264 = vadd.f32 %v256, %v262
  %v265 = vadd.f32 %v257, %v262
  %266 = vst.msk [vmem:[%s7] sm:$0xff] %vm39, %v264
  %267 = vst.msk [vmem:[%s7 + $0x8] sm:$0xff] %vm39, %v265
  // Predicated region
  $region30: #{transformer_encoder_extractor_forward.10} parent=0 // pred_check
    _
  $region31: #{transformer_encoder_extractor_forward.10} parent=0 // pred_check_branch
    %269 = sbr.rel (0) target = $region33
  $region32: #{transformer_encoder_extractor_forward.10} parent=0 // pred_region
    _
  $region33: #{transformer_encoder_extractor_forward.10} parent=0 // pred_fallthru
    _
  // Predicated region
  $region34: #{transformer_encoder_extractor_forward.10} parent=0 // pred_check
    _
  $region35: #{transformer_encoder_extractor_forward.10} parent=0 // pred_check_branch
    %271 = sbr.rel (0) target = $region37
  $region36: #{transformer_encoder_extractor_forward.10} parent=0 // pred_region
    _
  $region37: #{transformer_encoder_extractor_forward.10} parent=0 // pred_fallthru
    _

// kernel: transformer_encoder_extractor_forward.9
$region0: #{transformer_encoder_extractor_forward.9}
  #allocation0 [shape = 'u32[]', space=smem, size = 0x4, offset = 0x4, fixed_abs, tag = 'smem constant byte address 0x4 - core index']
  #allocation1 [shape = 'u32[144,128]{1,0:T(1,128)}', space=vmem, size = 0x12000, scoped, tag = 'internal scratch']
  %s0 = inlined_call_operand.vmem [shape: f32[2,8,32], index: 0, kind: input, shape index: {}]
  %s1 = inlined_call_operand.vmem [shape: f32[2,4,8,8], index: 1, kind: input, shape index: {}]
  %s2 = inlined_call_operand.vmem [shape: f32[2,4,8,8], index: 2, kind: input, shape index: {}]
  %s3 = inlined_call_operand.vmem [shape: f32[2,4,8,8], index: 3, kind: input, shape index: {}]
  %s4 = inlined_call_operand.vmem [shape: f32[4,8,32], index: 4, kind: input, shape index: {}]
  %s5 = inlined_call_operand.vmem [shape: f32[1,32], index: 5, kind: input, shape index: {}]
  %s6 = inlined_call_operand.vmem [shape: f32[1,32], index: 6, kind: input, shape index: {}]
  %s7 = inlined_call_operand.vmem [shape: f32[1,32], index: 7, kind: input, shape index: {}]
  %s8 = inlined_call_operand.vmem [shape: f32[2,8,32], index: 8, kind: output, shape index: {}]
  %s9 = sld [smem:[#allocation0]]
  $region65: #{transformer_encoder_extractor_forward.9} parent=0
    _
  %s11 = ssub.s32 1, %s9
  %s12 = scalar_select 0, %s11, %s9
  loop: start=0, step=1, limit=4
  $region2: #{transformer_encoder_extractor_forward.9} parent=0 // loop_pre_header
    _
  $region3: #{transformer_encoder_extractor_forward.9} parent=0 // loop_header
    %s14 = sphi 0, %s18
    %p15 = scmp.ge.s32.totalorder %s14, 4
    %s24 = sphi 0, %s26
    %s27 = sphi 0, %s24
    %s28 = sphi 0, %s27
    %s44 = sphi 0, %s28
    %s50 = sphi 0, %s52
    %s53 = sphi 0, %s50
    %s54 = sphi 0, %s53
    %s70 = sphi 0, %s54
    %s76 = sphi 0, %s78
    %s79 = sphi 0, %s76
    %s80 = sphi 0, %s79
    %s96 = sphi 0, %s80
    %s102 = sphi 0, %s104
    %s105 = sphi 0, %s102
    %s106 = sphi 0, %s105
    %s122 = sphi 0, %s106
    %s126 = sphi 0, %s126
    %s128 = sphi 0, %s126
    %s129 = sphi 0, %s128
    %s143 = sphi 0, %s129
    %s147 = sphi 0, %s147
    %s149 = sphi 0, %s147
    %s150 = sphi 0, %s149
    %s164 = sphi 0, %s150
    %s168 = sphi 0, %s168
    %s170 = sphi 0, %s168
    %s171 = sphi 0, %s170
    %s185 = sphi 0, %s171
    %s189 = sphi 0, %s189
    %s191 = sphi 0, %s189
    %s192 = sphi 0, %s191
    %s206 = sphi 0, %s192
    %s212 = sphi 0, %s214
    %s215 = sphi 0, %s212
    %s216 = sphi 0, %s215
    %s232 = sphi 0, %s216
  $region4: #{transformer_encoder_extractor_forward.9} parent=0 // loop_header_branch
    %17 = sbr.rel (%p15) target = $region8
  $region5: #{transformer_encoder_extractor_forward.9} parent=0 // loop_body
    %s19 = ssub.s32 %s14, 1
    %s20 = ssub.s32 %s14, 2
    %s21 = sadd.s32 %s14, 1
    %s22 = ssub.s32 %s14, %s21
    %p23 = scmp.eq.s32.totalorder %s22, 0
    %s25 = sadd.s32 %s24, 1
    %s26 = scalar_select %p23, %s24, %s25
    %p29 = pneg %p23
    %p30 = scmp.eq.s32.totalorder %s14, 1
    %p31 = por %p29, %p30
    %p32 = scmp.ne.s32.totalorder %s24, %s27
    %p33 = scmp.eq.s32.totalorder %s14, 0
    %p34 = por %p32, %p33
    %p35 = scmp.ne.s32.totalorder %s24, %s27
    %p36 = scmp.eq.s32.totalorder %s19, 1
    %p37 = por %p35, %p36
    %p38 = scmp.ne.s32.totalorder %s27, %s28
    %p39 = scmp.eq.s32.totalorder %s19, 0
    %p40 = por %p38, %p39
    %p41 = scmp.ne.s32.totalorder %s27, %s28
    %p42 = scmp.eq.s32.totalorder %s20, 1
    %p43 = por %p41, %p42
    %p45 = scmp.ne.s32.totalorder %s28, %s44
    %p46 = scmp.eq.s32.totalorder %s20, 0
    %p47 = por %p45, %p46
    %s48 = ssub.s32 %s14, %s21
    %p49 = scmp.eq.s32.totalorder %s48, 0
    %s51 = sadd.s32 %s50, 1
    %s52 = scalar_select %p49, %s50, %s51
    %p55 = pneg %p49
    %p56 = scmp.eq.s32.totalorder %s14, 1
    %p57 = por %p55, %p56
    %p58 = scmp.ne.s32.totalorder %s50, %s53
    %p59 = scmp.eq.s32.totalorder %s14, 0
    %p60 = por %p58, %p59
    %p61 = scmp.ne.s32.totalorder %s50, %s53
    %p62 = scmp.eq.s32.totalorder %s19, 1
    %p63 = por %p61, %p62
    %p64 = scmp.ne.s32.totalorder %s53, %s54
    %p65 = scmp.eq.s32.totalorder %s19, 0
    %p66 = por %p64, %p65
    %p67 = scmp.ne.s32.totalorder %s53, %s54
    %p68 = scmp.eq.s32.totalorder %s20, 1
    %p69 = por %p67, %p68
    %p71 = scmp.ne.s32.totalorder %s54, %s70
    %p72 = scmp.eq.s32.totalorder %s20, 0
    %p73 = por %p71, %p72
    %s74 = ssub.s32 %s14, %s21
    %p75 = scmp.eq.s32.totalorder %s74, 0
    %s77 = sadd.s32 %s76, 1
    %s78 = scalar_select %p75, %s76, %s77
    %p81 = pneg %p75
    %p82 = scmp.eq.s32.totalorder %s14, 1
    %p83 = por %p81, %p82
    %p84 = scmp.ne.s32.totalorder %s76, %s79
    %p85 = scmp.eq.s32.totalorder %s14, 0
    %p86 = por %p84, %p85
    %p87 = scmp.ne.s32.totalorder %s76, %s79
    %p88 = scmp.eq.s32.totalorder %s19, 1
    %p89 = por %p87, %p88
    %p90 = scmp.ne.s32.totalorder %s79, %s80
    %p91 = scmp.eq.s32.totalorder %s19, 0
    %p92 = por %p90, %p91
    %p93 = scmp.ne.s32.totalorder %s79, %s80
    %p94 = scmp.eq.s32.totalorder %s20, 1
    %p95 = por %p93, %p94
    %p97 = scmp.ne.s32.totalorder %s80, %s96
    %p98 = scmp.eq.s32.totalorder %s20, 0
    %p99 = por %p97, %p98
    %s100 = ssub.s32 %s14, %s21
    %p101 = scmp.eq.s32.totalorder %s100, 0
    %s103 = sadd.s32 %s102, 1
    %s104 = scalar_select %p101, %s102, %s103
    %p107 = pneg %p101
    %p108 = scmp.eq.s32.totalorder %s14, 1
    %p109 = por %p107, %p108
    %p110 = scmp.ne.s32.totalorder %s102, %s105
    %p111 = scmp.eq.s32.totalorder %s14, 0
    %p112 = por %p110, %p111
    %p113 = scmp.ne.s32.totalorder %s102, %s105
    %p114 = scmp.eq.s32.totalorder %s19, 1
    %p115 = por %p113, %p114
    %p116 = scmp.ne.s32.totalorder %s105, %s106
    %p117 = scmp.eq.s32.totalorder %s19, 0
    %p118 = por %p116, %p117
    %p119 = scmp.ne.s32.totalorder %s105, %s106
    %p120 = scmp.eq.s32.totalorder %s20, 1
    %p121 = por %p119, %p120
    %p123 = scmp.ne.s32.totalorder %s106, %s122
    %p124 = scmp.eq.s32.totalorder %s20, 0
    %p125 = por %p123, %p124
    %s127 = sadd.s32 %s126, 1
    %p130 = scmp.eq.s32.totalorder %s14, 1
    %p131 = scmp.ne.s32.totalorder %s126, %s128
    %p132 = scmp.eq.s32.totalorder %s14, 0
    %p133 = por %p131, %p132
    %p134 = scmp.ne.s32.totalorder %s126, %s128
    %p135 = scmp.eq.s32.totalorder %s19, 1
    %p136 = por %p134, %p135
    %p137 = scmp.ne.s32.totalorder %s128, %s129
    %p138 = scmp.eq.s32.totalorder %s19, 0
    %p139 = por %p137, %p138
    %p140 = scmp.ne.s32.totalorder %s128, %s129
    %p141 = scmp.eq.s32.totalorder %s20, 1
    %p142 = por %p140, %p141
    %p144 = scmp.ne.s32.totalorder %s129, %s143
    %p145 = scmp.eq.s32.totalorder %s20, 0
    %p146 = por %p144, %p145
    %s148 = sadd.s32 %s147, 1
    %p151 = scmp.eq.s32.totalorder %s14, 1
    %p152 = scmp.ne.s32.totalorder %s147, %s149
    %p153 = scmp.eq.s32.totalorder %s14, 0
    %p154 = por %p152, %p153
    %p155 = scmp.ne.s32.totalorder %s147, %s149
    %p156 = scmp.eq.s32.totalorder %s19, 1
    %p157 = por %p155, %p156
    %p158 = scmp.ne.s32.totalorder %s149, %s150
    %p159 = scmp.eq.s32.totalorder %s19, 0
    %p160 = por %p158, %p159
    %p161 = scmp.ne.s32.totalorder %s149, %s150
    %p162 = scmp.eq.s32.totalorder %s20, 1
    %p163 = por %p161, %p162
    %p165 = scmp.ne.s32.totalorder %s150, %s164
    %p166 = scmp.eq.s32.totalorder %s20, 0
    %p167 = por %p165, %p166
    %s169 = sadd.s32 %s168, 1
    %p172 = scmp.eq.s32.totalorder %s14, 1
    %p173 = scmp.ne.s32.totalorder %s168, %s170
    %p174 = scmp.eq.s32.totalorder %s14, 0
    %p175 = por %p173, %p174
    %p176 = scmp.ne.s32.totalorder %s168, %s170
    %p177 = scmp.eq.s32.totalorder %s19, 1
    %p178 = por %p176, %p177
    %p179 = scmp.ne.s32.totalorder %s170, %s171
    %p180 = scmp.eq.s32.totalorder %s19, 0
    %p181 = por %p179, %p180
    %p182 = scmp.ne.s32.totalorder %s170, %s171
    %p183 = scmp.eq.s32.totalorder %s20, 1
    %p184 = por %p182, %p183
    %p186 = scmp.ne.s32.totalorder %s171, %s185
    %p187 = scmp.eq.s32.totalorder %s20, 0
    %p188 = por %p186, %p187
    %s190 = sadd.s32 %s189, 1
    %p193 = scmp.eq.s32.totalorder %s14, 1
    %p194 = scmp.ne.s32.totalorder %s189, %s191
    %p195 = scmp.eq.s32.totalorder %s14, 0
    %p196 = por %p194, %p195
    %p197 = scmp.ne.s32.totalorder %s189, %s191
    %p198 = scmp.eq.s32.totalorder %s19, 1
    %p199 = por %p197, %p198
    %p200 = scmp.ne.s32.totalorder %s191, %s192
    %p201 = scmp.eq.s32.totalorder %s19, 0
    %p202 = por %p200, %p201
    %p203 = scmp.ne.s32.totalorder %s191, %s192
    %p204 = scmp.eq.s32.totalorder %s20, 1
    %p205 = por %p203, %p204
    %p207 = scmp.ne.s32.totalorder %s192, %s206
    %p208 = scmp.eq.s32.totalorder %s20, 0
    %p209 = por %p207, %p208
    %s210 = ssub.s32 %s14, %s21
    %p211 = scmp.eq.s32.totalorder %s210, 0
    %s213 = sadd.s32 %s212, 1
    %s214 = scalar_select %p211, %s212, %s213
    %p217 = pneg %p211
    %p218 = scmp.eq.s32.totalorder %s14, 1
    %p219 = por %p217, %p218
    %p220 = scmp.ne.s32.totalorder %s212, %s215
    %p221 = scmp.eq.s32.totalorder %s14, 0
    %p222 = por %p220, %p221
    %p223 = scmp.ne.s32.totalorder %s212, %s215
    %p224 = scmp.eq.s32.totalorder %s19, 1
    %p225 = por %p223, %p224
    %p226 = scmp.ne.s32.totalorder %s215, %s216
    %p227 = scmp.eq.s32.totalorder %s19, 0
    %p228 = por %p226, %p227
    %p229 = scmp.ne.s32.totalorder %s215, %s216
    %p230 = scmp.eq.s32.totalorder %s20, 1
    %p231 = por %p229, %p230
    %p233 = scmp.ne.s32.totalorder %s216, %s232
    %p234 = scmp.eq.s32.totalorder %s20, 0
    %p235 = por %p233, %p234
    %p236 = scmp.le.s32.totalorder 1, %s14
    %p237 = scmp.lt.s32.totalorder %s14, 3
    %p238 = pnand %p236, %p237
    %p239 = pneg %p238
    // Predicated region
    $region9: #{transformer_encoder_extractor_forward.9} parent=5 // pred_check
      _
    $region10: #{transformer_encoder_extractor_forward.9} parent=5 // pred_check_branch
      %241 = sbr.rel (%p238) target = $region12
    $region11: #{transformer_encoder_extractor_forward.9} parent=5 // pred_region
      %s242 = ssub.s32 %s14, 1
      // Predicated region
      $region13: #{transformer_encoder_extractor_forward.9} parent=11 // pred_check
        %p243 = pneg %p139
      $region14: #{transformer_encoder_extractor_forward.9} parent=11 // pred_check_branch
        %245 = sbr.rel (%p243) target = $region16
      $region15: #{transformer_encoder_extractor_forward.9} parent=11 // pred_region
        _
      $region16: #{transformer_encoder_extractor_forward.9} parent=11 // pred_fallthru
        _
      // Predicated region
      $region17: #{transformer_encoder_extractor_forward.9} parent=11 // pred_check
        %p246 = pneg %p160
      $region18: #{transformer_encoder_extractor_forward.9} parent=11 // pred_check_branch
        %248 = sbr.rel (%p246) target = $region20
      $region19: #{transformer_encoder_extractor_forward.9} parent=11 // pred_region
        _
      $region20: #{transformer_encoder_extractor_forward.9} parent=11 // pred_fallthru
        _
      // Predicated region
      $region21: #{transformer_encoder_extractor_forward.9} parent=11 // pred_check
        %p249 = pneg %p181
      $region22: #{transformer_encoder_extractor_forward.9} parent=11 // pred_check_branch
        %251 = sbr.rel (%p249) target = $region24
      $region23: #{transformer_encoder_extractor_forward.9} parent=11 // pred_region
        _
      $region24: #{transformer_encoder_extractor_forward.9} parent=11 // pred_fallthru
        _
      // Predicated region
      $region25: #{transformer_encoder_extractor_forward.9} parent=11 // pred_check
        %p252 = pneg %p202
      $region26: #{transformer_encoder_extractor_forward.9} parent=11 // pred_check_branch
        %254 = sbr.rel (%p252) target = $region28
      $region27: #{transformer_encoder_extractor_forward.9} parent=11 // pred_region
        _
      $region28: #{transformer_encoder_extractor_forward.9} parent=11 // pred_fallthru
        _
    $region12: #{transformer_encoder_extractor_forward.9} parent=5 // pred_fallthru
      _
    %p255 = scmp.lt.s32.totalorder %s14, 2
    // Predicated region
    $region29: #{transformer_encoder_extractor_forward.9} parent=5 // pred_check
      %p256 = pneg %p255
    $region30: #{transformer_encoder_extractor_forward.9} parent=5 // pred_check_branch
      %258 = sbr.rel (%p256) target = $region32
    $region31: #{transformer_encoder_extractor_forward.9} parent=5 // pred_region
      // Predicated region
      $region33: #{transformer_encoder_extractor_forward.9} parent=31 // pred_check
        %p259 = pneg %p34
      $region34: #{transformer_encoder_extractor_forward.9} parent=31 // pred_check_branch
        %261 = sbr.rel (%p259) target = $region36
      $region35: #{transformer_encoder_extractor_forward.9} parent=31 // pred_region
        %p262 = scmp.lt.s32.totalorder %s14, 1
        %s263 = scalar_select %p262, %s14, 1
        %s264 = smul.addr %s263, 8
        %s265 = scalar_lea.vmem %s0, %s264
      $region36: #{transformer_encoder_extractor_forward.9} parent=31 // pred_fallthru
        _
      // Predicated region
      $region37: #{transformer_encoder_extractor_forward.9} parent=31 // pred_check
        %p266 = pneg %p60
      $region38: #{transformer_encoder_extractor_forward.9} parent=31 // pred_check_branch
        %268 = sbr.rel (%p266) target = $region40
      $region39: #{transformer_encoder_extractor_forward.9} parent=31 // pred_region
        %p269 = scmp.lt.s32.totalorder %s14, 1
        %s270 = scalar_select %p269, %s14, 1
        %s271 = smul.addr %s270, 4
        %s272 = smul.addr %s271, 8
        %s273 = scalar_lea.vmem %s1, %s272
      $region40: #{transformer_encoder_extractor_forward.9} parent=31 // pred_fallthru
        _
      // Predicated region
      $region41: #{transformer_encoder_extractor_forward.9} parent=31 // pred_check
        %p274 = pneg %p86
      $region42: #{transformer_encoder_extractor_forward.9} parent=31 // pred_check_branch
        %276 = sbr.rel (%p274) target = $region44
      $region43: #{transformer_encoder_extractor_forward.9} parent=31 // pred_region
        %p277 = scmp.lt.s32.totalorder %s14, 1
        %s278 = scalar_select %p277, %s14, 1
        %s279 = smul.addr %s278, 4
        %s280 = smul.addr %s279, 8
        %s281 = scalar_lea.vmem %s2, %s280
      $region44: #{transformer_encoder_extractor_forward.9} parent=31 // pred_fallthru
        _
      // Predicated region
      $region45: #{transformer_encoder_extractor_forward.9} parent=31 // pred_check
        %p282 = pneg %p112
      $region46: #{transformer_encoder_extractor_forward.9} parent=31 // pred_check_branch
        %284 = sbr.rel (%p282) target = $region48
      $region47: #{transformer_encoder_extractor_forward.9} parent=31 // pred_region
        %p285 = scmp.lt.s32.totalorder %s14, 1
        %s286 = scalar_select %p285, %s14, 1
        %s287 = smul.addr %s286, 4
        %s288 = smul.addr %s287, 8
        %s289 = scalar_lea.vmem %s3, %s288
      $region48: #{transformer_encoder_extractor_forward.9} parent=31 // pred_fallthru
        _
    $region32: #{transformer_encoder_extractor_forward.9} parent=5 // pred_fallthru
      _
    %p290 = scmp.le.s32.totalorder 1, %s14
    %p291 = scmp.lt.s32.totalorder %s14, 3
    %p292 = pnand %p290, %p291
    %p293 = pneg %p292
    // Predicated region
    $region49: #{transformer_encoder_extractor_forward.9} parent=5 // pred_check
      _
    $region50: #{transformer_encoder_extractor_forward.9} parent=5 // pred_check_branch
      %295 = sbr.rel (%p292) target = $region52
    $region51: #{transformer_encoder_extractor_forward.9} parent=5 // pred_region
      %s296 = ssub.s32 %s14, 1
      %p297 = scmp.lt.s32.totalorder %s19, 1
      %s298 = scalar_select %p297, %s19, 1
      %s299 = smul.addr %s298, 8
      %s300 = scalar_lea.vmem %s0, %s299
      %p301 = pneg %p40
      %p302 = pneg %p37
      %p303 = scmp.lt.s32.totalorder %s19, 1
      %s304 = scalar_select %p303, %s19, 1
      %s305 = smul.addr %s304, 4
      %s306 = smul.addr %s305, 8
      %s307 = scalar_lea.vmem %s1, %s306
      %p308 = pneg %p66
      %p309 = pneg %p63
      %p310 = scmp.lt.s32.totalorder %s19, 1
      %s311 = scalar_select %p310, %s19, 1
      %s312 = smul.addr %s311, 4
      %s313 = smul.addr %s312, 8
      %s314 = scalar_lea.vmem %s2, %s313
      %p315 = pneg %p92
      %p316 = pneg %p89
      %p317 = scmp.lt.s32.totalorder %s19, 1
      %s318 = scalar_select %p317, %s19, 1
      %s319 = smul.addr %s318, 4
      %s320 = smul.addr %s319, 8
      %s321 = scalar_lea.vmem %s3, %s320
      %p322 = pneg %p118
      %p323 = pneg %p115
      %p324 = pneg %p139
      %p325 = pneg %p136
      %p326 = pneg %p160
      %p327 = pneg %p157
      %p328 = pneg %p181
      %p329 = pneg %p178
      %p330 = pneg %p202
      %p331 = pneg %p199
      %p332 = pneg %p228
      %p333 = pneg %p225
      %p334 = scmp.lt.s32.totalorder %s19, 1
      %s335 = scalar_select %p334, %s19, 1
      %s336 = smul.addr %s335, 8
      %s337 = scalar_lea.vmem %s8, %s336
      %p338 = scmp.lt.s32.totalorder %s19, 1
      %s339 = scalar_select %p338, %s19, 1
      %s340 = smul.addr %s339, 8
      %s341 = scalar_lea.vmem %s0, %s340
      %p342 = scmp.lt.s32.totalorder %s19, 1
      %s343 = scalar_select %p342, %s19, 1
      %s344 = smul.addr %s343, 4
      %s345 = smul.addr %s344, 8
      %s346 = scalar_lea.vmem %s1, %s345
      %p347 = scmp.lt.s32.totalorder %s19, 1
      %s348 = scalar_select %p347, %s19, 1
      %s349 = smul.addr %s348, 4
      %s350 = smul.addr %s349, 8
      %s351 = scalar_lea.vmem %s2, %s350
      %p352 = scmp.lt.s32.totalorder %s19, 1
      %s353 = scalar_select %p352, %s19, 1
      %s354 = smul.addr %s353, 4
      %s355 = smul.addr %s354, 8
      %s356 = scalar_lea.vmem %s3, %s355
      %p357 = scmp.lt.s32.totalorder %s19, 1
      %s358 = scalar_select %p357, %s19, 1
      %s359 = smul.addr %s358, 8
      %s360 = scalar_lea.vmem %s8, %s359
      %v361 = vld [vmem:[%s341] sm:$0xff]
      %v362 = vld [vmem:[%s346] sm:$0xff]
      %v363 = vld [vmem:[%s346 + $0x8] sm:$0xff]
      %v364 = vld [vmem:[%s346 + $0x10] sm:$0xff]
      %v365 = vld [vmem:[%s346 + $0x18] sm:$0xff]
      %v366 = vld [vmem:[%s351] sm:$0xff]
      %v367 = vld [vmem:[%s351 + $0x8] sm:$0xff]
      %v368 = vld [vmem:[%s351 + $0x10] sm:$0xff]
      %v369 = vld [vmem:[%s351 + $0x18] sm:$0xff]
      %v370 = vld [vmem:[%s356] sm:$0xff]
      %v371 = vld [vmem:[%s356 + $0x8] sm:$0xff]
      %v372 = vld [vmem:[%s356 + $0x10] sm:$0xff]
      %v373 = vld [vmem:[%s356 + $0x18] sm:$0xff]
      %v374 = vld [vmem:[%s5] sm:$0x1]
      %vm375 = vcmask 64512
      %v377 = vsel %vm375, %v362, 0
      %v380 = vsel %vm375, %v366, 0
      %382 = vmatprep.subr.mxu0 0.0
      %383 = vmatpush1.xpose.msra.mxu0 0.0
      %384 = vmatprep.subr.mxu0 0.0
      %385 = vmatpush1.xpose.msra.mxu0 0.0
      %386 = vmatprep.subr.mxu0 0.0
      %387 = vmatpush1.xpose.msra.mxu0 0.0
      %388 = vmatprep.subr.mxu0 0.0
      %389 = vmatpush1.xpose.msra.mxu0 0.0
      %390 = vmatprep.subr.mxu0 0.0
      %391 = vmatpush1.xpose.msra.mxu0 0.0
      %392 = vmatprep.subr.mxu0 0.0
      %393 = vmatpush1.xpose.msra.mxu0 0.0
      %394 = vmatprep.subr.mxu0 0.0
      %395 = vmatpush1.xpose.msra.mxu0 0.0
      %396 = vmatprep.subr.mxu0 0.0
      %397 = vmatpush1.xpose.msra.mxu0 0.0
      %398 = vmatprep.subr.mxu0 0.0
      %399 = vmatpush1.xpose.msra.mxu0 0.0
      %400 = vmatprep.subr.mxu0 0.0
      %401 = vmatpush1.xpose.msra.mxu0 0.0
      %402 = vmatprep.subr.mxu0 0.0
      %403 = vmatpush1.xpose.msra.mxu0 0.0
      %404 = vmatprep.subr.mxu0 0.0
      %405 = vmatpush1.xpose.msra.mxu0 0.0
      %406 = vmatprep.subr.mxu0 0.0
      %407 = vmatpush1.xpose.msra.mxu0 0.0
      %408 = vmatprep.subr.mxu0 0.0
      %409 = vmatpush1.xpose.msra.mxu0 0.0
      %410 = vmatprep.subr.mxu0 0.0
      %411 = vmatpush1.xpose.msra.mxu0 0.0
      %412 = vmatprep.subr.mxu0 0.0
      %413 = vmatpush1.xpose.msra.mxu0 %v380
      %414 = vmatprep.subr.mxu0 0.0
      %415 = vmatpush2.xpose.msra.mxu0 0.0
      %416 = vmatprep.subr.mxu0 0.0
      %417 = vmatpush2.xpose.msra.mxu0 0.0
      %418 = vmatprep.subr.mxu0 0.0
      %419 = vmatpush2.xpose.msra.mxu0 0.0
      %420 = vmatprep.subr.mxu0 0.0
      %421 = vmatpush2.xpose.msra.mxu0 0.0
      %422 = vmatprep.subr.mxu0 0.0
      %423 = vmatpush2.xpose.msra.mxu0 0.0
      %424 = vmatprep.subr.mxu0 0.0
      %425 = vmatpush2.xpose.msra.mxu0 0.0
      %426 = vmatprep.subr.mxu0 0.0
      %427 = vmatpush2.xpose.msra.mxu0 0.0
      %428 = vmatprep.subr.mxu0 0.0
      %429 = vmatpush2.xpose.msra.mxu0 0.0
      %430 = vmatprep.subr.mxu0 0.0
      %431 = vmatpush2.xpose.msra.mxu0 0.0
      %432 = vmatprep.subr.mxu0 0.0
      %433 = vmatpush2.xpose.msra.mxu0 0.0
      %434 = vmatprep.subr.mxu0 0.0
      %435 = vmatpush2.xpose.msra.mxu0 0.0
      %436 = vmatprep.subr.mxu0 0.0
      %437 = vmatpush2.xpose.msra.mxu0 0.0
      %438 = vmatprep.subr.mxu0 0.0
      %439 = vmatpush2.xpose.msra.mxu0 0.0
      %440 = vmatprep.subr.mxu0 0.0
      %441 = vmatpush2.xpose.msra.mxu0 0.0
      %442 = vmatprep.subr.mxu0 0.0
      %443 = vmatpush2.xpose.msra.mxu0 0.0
      %444 = vmatprep.subr.mxu0 0.0
      %445 = vmatpush2.xpose.msra.mxu0 0.0
      %446 = vmatprep.mubr.f32.mxu0 0.0
      %447 = vmatmul.mubr.f32.gmra.mxu0 %v377
      %v448 = vpop.f32.mrf.mxu0
      %v449 = vadd.f32 0.0, %v448
      %v450 = vpop.f32.mrf.mxu0
      %451 = vdwg.mxu0
      %v452 = vmul.f32 %v449, 0.35355338
      %v453 = vsel %vm375, %v452, -inf
      %454 = vmax.xlane.f32.xlu0 %v453
      %v455 = vpop.xlane.xlu0 %454
      %v456 = vsub.f32 %v452, %v455
      %v457 = vmul.f32 %v456, 1.442695
      %v458 = vpow.pop %v457
      %v459 = vsel %vm375, %v458, 0.0
      %460 = vadd.xlane.f32.xlu0 %v459
      %v461 = vpop.xlane.xlu0 %460
      %v462 = vrcp.pop %v461
      %v463 = vmul.f32 %v458, %v462
      %v465 = vsel %vm375, %v463, 0
      %467 = vmatprep.subr.mxu0 0.0
      %468 = vmatpush1.msra.mxu0 0.0
      %469 = vmatprep.subr.mxu0 0.0
      %470 = vmatpush1.msra.mxu0 0.0
      %471 = vmatprep.subr.mxu0 0.0
      %472 = vmatpush1.msra.mxu0 0.0
      %473 = vmatprep.subr.mxu0 0.0
      %474 = vmatpush1.msra.mxu0 0.0
      %475 = vmatprep.subr.mxu0 0.0
      %476 = vmatpush1.msra.mxu0 0.0
      %477 = vmatprep.subr.mxu0 0.0
      %478 = vmatpush1.msra.mxu0 0.0
      %479 = vmatprep.subr.mxu0 0.0
      %480 = vmatpush1.msra.mxu0 0.0
      %481 = vmatprep.subr.mxu0 0.0
      %482 = vmatpush1.msra.mxu0 0.0
      %483 = vmatprep.subr.mxu0 0.0
      %484 = vmatpush1.msra.mxu0 0.0
      %485 = vmatprep.subr.mxu0 0.0
      %486 = vmatpush1.msra.mxu0 0.0
      %487 = vmatprep.subr.mxu0 0.0
      %488 = vmatpush1.msra.mxu0 0.0
      %489 = vmatprep.subr.mxu0 0.0
      %490 = vmatpush1.msra.mxu0 0.0
      %491 = vmatprep.subr.mxu0 0.0
      %492 = vmatpush1.msra.mxu0 0.0
      %493 = vmatprep.subr.mxu0 0.0
      %494 = vmatpush1.msra.mxu0 0.0
      %495 = vmatprep.subr.mxu0 0.0
      %496 = vmatpush1.msra.mxu0 0.0
      %497 = vmatprep.subr.mxu0 0.0
      %498 = vmatpush1.msra.mxu0 %v370
      %499 = vmatprep.subr.mxu0 0.0
      %500 = vmatpush2.msra.mxu0 0.0
      %501 = vmatprep.subr.mxu0 0.0
      %502 = vmatpush2.msra.mxu0 0.0
      %503 = vmatprep.subr.mxu0 0.0
      %504 = vmatpush2.msra.mxu0 0.0
      %505 = vmatprep.subr.mxu0 0.0
      %506 = vmatpush2.msra.mxu0 0.0
      %507 = vmatprep.subr.mxu0 0.0
      %508 = vmatpush2.msra.mxu0 0.0
      %509 = vmatprep.subr.mxu0 0.0
      %510 = vmatpush2.msra.mxu0 0.0
      %511 = vmatprep.subr.mxu0 0.0
      %512 = vmatpush2.msra.mxu0 0.0
      %513 = vmatprep.subr.mxu0 0.0
      %514 = vmatpush2.msra.mxu0 0.0
      %515 = vmatprep.subr.mxu0 0.0
      %516 = vmatpush2.msra.mxu0 0.0
      %517 = vmatprep.subr.mxu0 0.0
      %518 = vmatpush2.msra.mxu0 0.0
      %519 = vmatprep.subr.mxu0 0.0
      %520 = vmatpush2.msra.mxu0 0.0
      %521 = vmatprep.subr.mxu0 0.0
      %522 = vmatpush2.msra.mxu0 0.0
      %523 = vmatprep.subr.mxu0 0.0
      %524 = vmatpush2.msra.mxu0 0.0
      %525 = vmatprep.subr.mxu0 0.0
      %526 = vmatpush2.msra.mxu0 0.0
      %527 = vmatprep.subr.mxu0 0.0
      %528 = vmatpush2.msra.mxu0 0.0
      %529 = vmatprep.subr.mxu0 0.0
      %530 = vmatpush2.msra.mxu0 0.0
      %531 = vmatprep.mubr.f32.mxu0 0.0
      %532 = vmatmul.mubr.f32.gmra.mxu0 %v465
      %v533 = vpop.f32.mrf.mxu0
      %v534 = vadd.f32 0.0, %v533
      %v535 = vpop.f32.mrf.mxu0
      %536 = vdwg.mxu0
      %v537 = vld [vmem:[%s4] sm:$0xff]
      %v539 = vsel %vm375, %v534, 0
      %541 = vmatprep.subr.mxu0 0.0
      %542 = vmatpush1.msra.mxu0 0.0
      %543 = vmatprep.subr.mxu0 0.0
      %544 = vmatpush1.msra.mxu0 0.0
      %545 = vmatprep.subr.mxu0 0.0
      %546 = vmatpush1.msra.mxu0 0.0
      %547 = vmatprep.subr.mxu0 0.0
      %548 = vmatpush1.msra.mxu0 0.0
      %549 = vmatprep.subr.mxu0 0.0
      %550 = vmatpush1.msra.mxu0 0.0
      %551 = vmatprep.subr.mxu0 0.0
      %552 = vmatpush1.msra.mxu0 0.0
      %553 = vmatprep.subr.mxu0 0.0
      %554 = vmatpush1.msra.mxu0 0.0
      %555 = vmatprep.subr.mxu0 0.0
      %556 = vmatpush1.msra.mxu0 0.0
      %557 = vmatprep.subr.mxu0 0.0
      %558 = vmatpush1.msra.mxu0 0.0
      %559 = vmatprep.subr.mxu0 0.0
      %560 = vmatpush1.msra.mxu0 0.0
      %561 = vmatprep.subr.mxu0 0.0
      %562 = vmatpush1.msra.mxu0 0.0
      %563 = vmatprep.subr.mxu0 0.0
      %564 = vmatpush1.msra.mxu0 0.0
      %565 = vmatprep.subr.mxu0 0.0
      %566 = vmatpush1.msra.mxu0 0.0
      %567 = vmatprep.subr.mxu0 0.0
      %568 = vmatpush1.msra.mxu0 0.0
      %569 = vmatprep.subr.mxu0 0.0
      %570 = vmatpush1.msra.mxu0 0.0
      %571 = vmatprep.subr.mxu0 0.0
      %572 = vmatpush1.msra.mxu0 %v537
      %573 = vmatprep.subr.mxu0 0.0
      %574 = vmatpush2.msra.mxu0 0.0
      %575 = vmatprep.subr.mxu0 0.0
      %576 = vmatpush2.msra.mxu0 0.0
      %577 = vmatprep.subr.mxu0 0.0
      %578 = vmatpush2.msra.mxu0 0.0
      %579 = vmatprep.subr.mxu0 0.0
      %580 = vmatpush2.msra.mxu0 0.0
      %581 = vmatprep.subr.mxu0 0.0
      %582 = vmatpush2.msra.mxu0 0.0
      %583 = vmatprep.subr.mxu0 0.0
      %584 = vmatpush2.msra.mxu0 0.0
      %585 = vmatprep.subr.mxu0 0.0
      %586 = vmatpush2.msra.mxu0 0.0
      %587 = vmatprep.subr.mxu0 0.0
      %588 = vmatpush2.msra.mxu0 0.0
      %589 = vmatprep.subr.mxu0 0.0
      %590 = vmatpush2.msra.mxu0 0.0
      %591 = vmatprep.subr.mxu0 0.0
      %592 = vmatpush2.msra.mxu0 0.0
      %593 = vmatprep.subr.mxu0 0.0
      %594 = vmatpush2.msra.mxu0 0.0
      %595 = vmatprep.subr.mxu0 0.0
      %596 = vmatpush2.msra.mxu0 0.0
      %597 = vmatprep.subr.mxu0 0.0
      %598 = vmatpush2.msra.mxu0 0.0
      %599 = vmatprep.subr.mxu0 0.0
      %600 = vmatpush2.msra.mxu0 0.0
      %601 = vmatprep.subr.mxu0 0.0
      %602 = vmatpush2.msra.mxu0 0.0
      %603 = vmatprep.subr.mxu0 0.0
      %604 = vmatpush2.msra.mxu0 0.0
      %605 = vmatprep.mubr.f32.mxu0 0.0
      %606 = vmatmul.mubr.f32.gmra.mxu0 %v539
      %v607 = vpop.f32.mrf.mxu0
      %v608 = vadd.f32 0.0, %v607
      %v609 = vpop.f32.mrf.mxu0
      %610 = vdwg.mxu0
      %v612 = vlaneseq
      %v613 = vshrl.u32 %v612, 7
      %v614 = vsub.s32 0, %v613
      %v615 = vrot.slane %v374, %v614
      %v617 = vadd.f32 %v615, %v608
      %v619 = vsel %vm375, %v363, 0
      %v622 = vsel %vm375, %v367, 0
      %624 = vmatprep.subr.mxu0 0.0
      %625 = vmatpush1.xpose.msra.mxu0 0.0
      %626 = vmatprep.subr.mxu0 0.0
      %627 = vmatpush1.xpose.msra.mxu0 0.0
      %628 = vmatprep.subr.mxu0 0.0
      %629 = vmatpush1.xpose.msra.mxu0 0.0
      %630 = vmatprep.subr.mxu0 0.0
      %631 = vmatpush1.xpose.msra.mxu0 0.0
      %632 = vmatprep.subr.mxu0 0.0
      %633 = vmatpush1.xpose.msra.mxu0 0.0
      %634 = vmatprep.subr.mxu0 0.0
      %635 = vmatpush1.xpose.msra.mxu0 0.0
      %636 = vmatprep.subr.mxu0 0.0
      %637 = vmatpush1.xpose.msra.mxu0 0.0
      %638 = vmatprep.subr.mxu0 0.0
      %639 = vmatpush1.xpose.msra.mxu0 0.0
      %640 = vmatprep.subr.mxu0 0.0
      %641 = vmatpush1.xpose.msra.mxu0 0.0
      %642 = vmatprep.subr.mxu0 0.0
      %643 = vmatpush1.xpose.msra.mxu0 0.0
      %644 = vmatprep.subr.mxu0 0.0
      %645 = vmatpush1.xpose.msra.mxu0 0.0
      %646 = vmatprep.subr.mxu0 0.0
      %647 = vmatpush1.xpose.msra.mxu0 0.0
      %648 = vmatprep.subr.mxu0 0.0
      %649 = vmatpush1.xpose.msra.mxu0 0.0
      %650 = vmatprep.subr.mxu0 0.0
      %651 = vmatpush1.xpose.msra.mxu0 0.0
      %652 = vmatprep.subr.mxu0 0.0
      %653 = vmatpush1.xpose.msra.mxu0 0.0
      %654 = vmatprep.subr.mxu0 0.0
      %655 = vmatpush1.xpose.msra.mxu0 %v622
      %656 = vmatprep.subr.mxu0 0.0
      %657 = vmatpush2.xpose.msra.mxu0 0.0
      %658 = vmatprep.subr.mxu0 0.0
      %659 = vmatpush2.xpose.msra.mxu0 0.0
      %660 = vmatprep.subr.mxu0 0.0
      %661 = vmatpush2.xpose.msra.mxu0 0.0
      %662 = vmatprep.subr.mxu0 0.0
      %663 = vmatpush2.xpose.msra.mxu0 0.0
      %664 = vmatprep.subr.mxu0 0.0
      %665 = vmatpush2.xpose.msra.mxu0 0.0
      %666 = vmatprep.subr.mxu0 0.0
      %667 = vmatpush2.xpose.msra.mxu0 0.0
      %668 = vmatprep.subr.mxu0 0.0
      %669 = vmatpush2.xpose.msra.mxu0 0.0
      %670 = vmatprep.subr.mxu0 0.0
      %671 = vmatpush2.xpose.msra.mxu0 0.0
      %672 = vmatprep.subr.mxu0 0.0
      %673 = vmatpush2.xpose.msra.mxu0 0.0
      %674 = vmatprep.subr.mxu0 0.0
      %675 = vmatpush2.xpose.msra.mxu0 0.0
      %676 = vmatprep.subr.mxu0 0.0
      %677 = vmatpush2.xpose.msra.mxu0 0.0
      %678 = vmatprep.subr.mxu0 0.0
      %679 = vmatpush2.xpose.msra.mxu0 0.0
      %680 = vmatprep.subr.mxu0 0.0
      %681 = vmatpush2.xpose.msra.mxu0 0.0
      %682 = vmatprep.subr.mxu0 0.0
      %683 = vmatpush2.xpose.msra.mxu0 0.0
      %684 = vmatprep.subr.mxu0 0.0
      %685 = vmatpush2.xpose.msra.mxu0 0.0
      %686 = vmatprep.subr.mxu0 0.0
      %687 = vmatpush2.xpose.msra.mxu0 0.0
      %688 = vmatprep.mubr.f32.mxu0 0.0
      %689 = vmatmul.mubr.f32.gmra.mxu0 %v619
      %v690 = vpop.f32.mrf.mxu0
      %v691 = vadd.f32 0.0, %v690
      %v692 = vpop.f32.mrf.mxu0
      %693 = vdwg.mxu0
      %v694 = vmul.f32 %v691, 0.35355338
      %v695 = vsel %vm375, %v694, -inf
      %696 = vmax.xlane.f32.xlu0 %v695
      %v697 = vpop.xlane.xlu0 %696
      %v698 = vsub.f32 %v694, %v697
      %v699 = vmul.f32 %v698, 1.442695
      %v700 = vpow.pop %v699
      %v701 = vsel %vm375, %v700, 0.0
      %702 = vadd.xlane.f32.xlu0 %v701
      %v703 = vpop.xlane.xlu0 %702
      %v704 = vrcp.pop %v703
      %v705 = vmul.f32 %v700, %v704
      %v707 = vsel %vm375, %v705, 0
      %709 = vmatprep.subr.mxu0 0.0
      %710 = vmatpush1.msra.mxu0 0.0
      %711 = vmatprep.subr.mxu0 0.0
      %712 = vmatpush1.msra.mxu0 0.0
      %713 = vmatprep.subr.mxu0 0.0
      %714 = vmatpush1.msra.mxu0 0.0
      %715 = vmatprep.subr.mxu0 0.0
      %716 = vmatpush1.msra.mxu0 0.0
      %717 = vmatprep.subr.mxu0 0.0
      %718 = vmatpush1.msra.mxu0 0.0
      %719 = vmatprep.subr.mxu0 0.0
      %720 = vmatpush1.msra.mxu0 0.0
      %721 = vmatprep.subr.mxu0 0.0
      %722 = vmatpush1.msra.mxu0 0.0
      %723 = vmatprep.subr.mxu0 0.0
      %724 = vmatpush1.msra.mxu0 0.0
      %725 = vmatprep.subr.mxu0 0.0
      %726 = vmatpush1.msra.mxu0 0.0
      %727 = vmatprep.subr.mxu0 0.0
      %728 = vmatpush1.msra.mxu0 0.0
      %729 = vmatprep.subr.mxu0 0.0
      %730 = vmatpush1.msra.mxu0 0.0
      %731 = vmatprep.subr.mxu0 0.0
      %732 = vmatpush1.msra.mxu0 0.0
      %733 = vmatprep.subr.mxu0 0.0
      %734 = vmatpush1.msra.mxu0 0.0
      %735 = vmatprep.subr.mxu0 0.0
      %736 = vmatpush1.msra.mxu0 0.0
      %737 = vmatprep.subr.mxu0 0.0
      %738 = vmatpush1.msra.mxu0 0.0
      %739 = vmatprep.subr.mxu0 0.0
      %740 = vmatpush1.msra.mxu0 %v371
      %741 = vmatprep.subr.mxu0 0.0
      %742 = vmatpush2.msra.mxu0 0.0
      %743 = vmatprep.subr.mxu0 0.0
      %744 = vmatpush2.msra.mxu0 0.0
      %745 = vmatprep.subr.mxu0 0.0
      %746 = vmatpush2.msra.mxu0 0.0
      %747 = vmatprep.subr.mxu0 0.0
      %748 = vmatpush2.msra.mxu0 0.0
      %749 = vmatprep.subr.mxu0 0.0
      %750 = vmatpush2.msra.mxu0 0.0
      %751 = vmatprep.subr.mxu0 0.0
      %752 = vmatpush2.msra.mxu0 0.0
      %753 = vmatprep.subr.mxu0 0.0
      %754 = vmatpush2.msra.mxu0 0.0
      %755 = vmatprep.subr.mxu0 0.0
      %756 = vmatpush2.msra.mxu0 0.0
      %757 = vmatprep.subr.mxu0 0.0
      %758 = vmatpush2.msra.mxu0 0.0
      %759 = vmatprep.subr.mxu0 0.0
      %760 = vmatpush2.msra.mxu0 0.0
      %761 = vmatprep.subr.mxu0 0.0
      %762 = vmatpush2.msra.mxu0 0.0
      %763 = vmatprep.subr.mxu0 0.0
      %764 = vmatpush2.msra.mxu0 0.0
      %765 = vmatprep.subr.mxu0 0.0
      %766 = vmatpush2.msra.mxu0 0.0
      %767 = vmatprep.subr.mxu0 0.0
      %768 = vmatpush2.msra.mxu0 0.0
      %769 = vmatprep.subr.mxu0 0.0
      %770 = vmatpush2.msra.mxu0 0.0
      %771 = vmatprep.subr.mxu0 0.0
      %772 = vmatpush2.msra.mxu0 0.0
      %773 = vmatprep.mubr.f32.mxu0 0.0
      %774 = vmatmul.mubr.f32.gmra.mxu0 %v707
      %v775 = vpop.f32.mrf.mxu0
      %v776 = vadd.f32 0.0, %v775
      %v777 = vpop.f32.mrf.mxu0
      %778 = vdwg.mxu0
      %s779 = scalar_lea.vmem %s4, 8
      %v780 = vld [vmem:[%s779] sm:$0xff]
      %v782 = vsel %vm375, %v776, 0
      %784 = vmatprep.subr.mxu0 0.0
      %785 = vmatpush1.msra.mxu0 0.0
      %786 = vmatprep.subr.mxu0 0.0
      %787 = vmatpush1.msra.mxu0 0.0
      %788 = vmatprep.subr.mxu0 0.0
      %789 = vmatpush1.msra.mxu0 0.0
      %790 = vmatprep.subr.mxu0 0.0
      %791 = vmatpush1.msra.mxu0 0.0
      %792 = vmatprep.subr.mxu0 0.0
      %793 = vmatpush1.msra.mxu0 0.0
      %794 = vmatprep.subr.mxu0 0.0
      %795 = vmatpush1.msra.mxu0 0.0
      %796 = vmatprep.subr.mxu0 0.0
      %797 = vmatpush1.msra.mxu0 0.0
      %798 = vmatprep.subr.mxu0 0.0
      %799 = vmatpush1.msra.mxu0 0.0
      %800 = vmatprep.subr.mxu0 0.0
      %801 = vmatpush1.msra.mxu0 0.0
      %802 = vmatprep.subr.mxu0 0.0
      %803 = vmatpush1.msra.mxu0 0.0
      %804 = vmatprep.subr.mxu0 0.0
      %805 = vmatpush1.msra.mxu0 0.0
      %806 = vmatprep.subr.mxu0 0.0
      %807 = vmatpush1.msra.mxu0 0.0
      %808 = vmatprep.subr.mxu0 0.0
      %809 = vmatpush1.msra.mxu0 0.0
      %810 = vmatprep.subr.mxu0 0.0
      %811 = vmatpush1.msra.mxu0 0.0
      %812 = vmatprep.subr.mxu0 0.0
      %813 = vmatpush1.msra.mxu0 0.0
      %814 = vmatprep.subr.mxu0 0.0
      %815 = vmatpush1.msra.mxu0 %v780
      %816 = vmatprep.subr.mxu0 0.0
      %817 = vmatpush2.msra.mxu0 0.0
      %818 = vmatprep.subr.mxu0 0.0
      %819 = vmatpush2.msra.mxu0 0.0
      %820 = vmatprep.subr.mxu0 0.0
      %821 = vmatpush2.msra.mxu0 0.0
      %822 = vmatprep.subr.mxu0 0.0
      %823 = vmatpush2.msra.mxu0 0.0
      %824 = vmatprep.subr.mxu0 0.0
      %825 = vmatpush2.msra.mxu0 0.0
      %826 = vmatprep.subr.mxu0 0.0
      %827 = vmatpush2.msra.mxu0 0.0
      %828 = vmatprep.subr.mxu0 0.0
      %829 = vmatpush2.msra.mxu0 0.0
      %830 = vmatprep.subr.mxu0 0.0
      %831 = vmatpush2.msra.mxu0 0.0
      %832 = vmatprep.subr.mxu0 0.0
      %833 = vmatpush2.msra.mxu0 0.0
      %834 = vmatprep.subr.mxu0 0.0
      %835 = vmatpush2.msra.mxu0 0.0
      %836 = vmatprep.subr.mxu0 0.0
      %837 = vmatpush2.msra.mxu0 0.0
      %838 = vmatprep.subr.mxu0 0.0
      %839 = vmatpush2.msra.mxu0 0.0
      %840 = vmatprep.subr.mxu0 0.0
      %841 = vmatpush2.msra.mxu0 0.0
      %842 = vmatprep.subr.mxu0 0.0
      %843 = vmatpush2.msra.mxu0 0.0
      %844 = vmatprep.subr.mxu0 0.0
      %845 = vmatpush2.msra.mxu0 0.0
      %846 = vmatprep.subr.mxu0 0.0
      %847 = vmatpush2.msra.mxu0 0.0
      %848 = vmatprep.mubr.f32.mxu0 0.0
      %849 = vmatmul.mubr.f32.gmra.mxu0 %v782
      %v850 = vpop.f32.mrf.mxu0
      %v851 = vadd.f32 0.0, %v850
      %v852 = vpop.f32.mrf.mxu0
      %853 = vdwg.mxu0
      %v854 = vadd.f32 %v617, %v851
      %v856 = vsel %vm375, %v364, 0
      %v859 = vsel %vm375, %v368, 0
      %861 = vmatprep.subr.mxu0 0.0
      %862 = vmatpush1.xpose.msra.mxu0 0.0
      %863 = vmatprep.subr.mxu0 0.0
      %864 = vmatpush1.xpose.msra.mxu0 0.0
      %865 = vmatprep.subr.mxu0 0.0
      %866 = vmatpush1.xpose.msra.mxu0 0.0
      %867 = vmatprep.subr.mxu0 0.0
      %868 = vmatpush1.xpose.msra.mxu0 0.0
      %869 = vmatprep.subr.mxu0 0.0
      %870 = vmatpush1.xpose.msra.mxu0 0.0
      %871 = vmatprep.subr.mxu0 0.0
      %872 = vmatpush1.xpose.msra.mxu0 0.0
      %873 = vmatprep.subr.mxu0 0.0
      %874 = vmatpush1.xpose.msra.mxu0 0.0
      %875 = vmatprep.subr.mxu0 0.0
      %876 = vmatpush1.xpose.msra.mxu0 0.0
      %877 = vmatprep.subr.mxu0 0.0
      %878 = vmatpush1.xpose.msra.mxu0 0.0
      %879 = vmatprep.subr.mxu0 0.0
      %880 = vmatpush1.xpose.msra.mxu0 0.0
      %881 = vmatprep.subr.mxu0 0.0
      %882 = vmatpush1.xpose.msra.mxu0 0.0
      %883 = vmatprep.subr.mxu0 0.0
      %884 = vmatpush1.xpose.msra.mxu0 0.0
      %885 = vmatprep.subr.mxu0 0.0
      %886 = vmatpush1.xpose.msra.mxu0 0.0
      %887 = vmatprep.subr.mxu0 0.0
      %888 = vmatpush1.xpose.msra.mxu0 0.0
      %889 = vmatprep.subr.mxu0 0.0
      %890 = vmatpush1.xpose.msra.mxu0 0.0
      %891 = vmatprep.subr.mxu0 0.0
      %892 = vmatpush1.xpose.msra.mxu0 %v859
      %893 = vmatprep.subr.mxu0 0.0
      %894 = vmatpush2.xpose.msra.mxu0 0.0
      %895 = vmatprep.subr.mxu0 0.0
      %896 = vmatpush2.xpose.msra.mxu0 0.0
      %897 = vmatprep.subr.mxu0 0.0
      %898 = vmatpush2.xpose.msra.mxu0 0.0
      %899 = vmatprep.subr.mxu0 0.0
      %900 = vmatpush2.xpose.msra.mxu0 0.0
      %901 = vmatprep.subr.mxu0 0.0
      %902 = vmatpush2.xpose.msra.mxu0 0.0
      %903 = vmatprep.subr.mxu0 0.0
      %904 = vmatpush2.xpose.msra.mxu0 0.0
      %905 = vmatprep.subr.mxu0 0.0
      %906 = vmatpush2.xpose.msra.mxu0 0.0
      %907 = vmatprep.subr.mxu0 0.0
      %908 = vmatpush2.xpose.msra.mxu0 0.0
      %909 = vmatprep.subr.mxu0 0.0
      %910 = vmatpush2.xpose.msra.mxu0 0.0
      %911 = vmatprep.subr.mxu0 0.0
      %912 = vmatpush2.xpose.msra.mxu0 0.0
      %913 = vmatprep.subr.mxu0 0.0
      %914 = vmatpush2.xpose.msra.mxu0 0.0
      %915 = vmatprep.subr.mxu0 0.0
      %916 = vmatpush2.xpose.msra.mxu0 0.0
      %917 = vmatprep.subr.mxu0 0.0
      %918 = vmatpush2.xpose.msra.mxu0 0.0
      %919 = vmatprep.subr.mxu0 0.0
      %920 = vmatpush2.xpose.msra.mxu0 0.0
      %921 = vmatprep.subr.mxu0 0.0
      %922 = vmatpush2.xpose.msra.mxu0 0.0
      %923 = vmatprep.subr.mxu0 0.0
      %924 = vmatpush2.xpose.msra.mxu0 0.0
      %925 = vmatprep.mubr.f32.mxu0 0.0
      %926 = vmatmul.mubr.f32.gmra.mxu0 %v856
      %v927 = vpop.f32.mrf.mxu0
      %v928 = vadd.f32 0.0, %v927
      %v929 = vpop.f32.mrf.mxu0
      %930 = vdwg.mxu0
      %v931 = vmul.f32 %v928, 0.35355338
      %v932 = vsel %vm375, %v931, -inf
      %933 = vmax.xlane.f32.xlu0 %v932
      %v934 = vpop.xlane.xlu0 %933
      %v935 = vsub.f32 %v931, %v934
      %v936 = vmul.f32 %v935, 1.442695
      %v937 = vpow.pop %v936
      %v938 = vsel %vm375, %v937, 0.0
      %939 = vadd.xlane.f32.xlu0 %v938
      %v940 = vpop.xlane.xlu0 %939
      %v941 = vrcp.pop %v940
      %v942 = vmul.f32 %v937, %v941
      %v944 = vsel %vm375, %v942, 0
      %946 = vmatprep.subr.mxu0 0.0
      %947 = vmatpush1.msra.mxu0 0.0
      %948 = vmatprep.subr.mxu0 0.0
      %949 = vmatpush1.msra.mxu0 0.0
      %950 = vmatprep.subr.mxu0 0.0
      %951 = vmatpush1.msra.mxu0 0.0
      %952 = vmatprep.subr.mxu0 0.0
      %953 = vmatpush1.msra.mxu0 0.0
      %954 = vmatprep.subr.mxu0 0.0
      %955 = vmatpush1.msra.mxu0 0.0
      %956 = vmatprep.subr.mxu0 0.0
      %957 = vmatpush1.msra.mxu0 0.0
      %958 = vmatprep.subr.mxu0 0.0
      %959 = vmatpush1.msra.mxu0 0.0
      %960 = vmatprep.subr.mxu0 0.0
      %961 = vmatpush1.msra.mxu0 0.0
      %962 = vmatprep.subr.mxu0 0.0
      %963 = vmatpush1.msra.mxu0 0.0
      %964 = vmatprep.subr.mxu0 0.0
      %965 = vmatpush1.msra.mxu0 0.0
      %966 = vmatprep.subr.mxu0 0.0
      %967 = vmatpush1.msra.mxu0 0.0
      %968 = vmatprep.subr.mxu0 0.0
      %969 = vmatpush1.msra.mxu0 0.0
      %970 = vmatprep.subr.mxu0 0.0
      %971 = vmatpush1.msra.mxu0 0.0
      %972 = vmatprep.subr.mxu0 0.0
      %973 = vmatpush1.msra.mxu0 0.0
      %974 = vmatprep.subr.mxu0 0.0
      %975 = vmatpush1.msra.mxu0 0.0
      %976 = vmatprep.subr.mxu0 0.0
      %977 = vmatpush1.msra.mxu0 %v372
      %978 = vmatprep.subr.mxu0 0.0
      %979 = vmatpush2.msra.mxu0 0.0
      %980 = vmatprep.subr.mxu0 0.0
      %981 = vmatpush2.msra.mxu0 0.0
      %982 = vmatprep.subr.mxu0 0.0
      %983 = vmatpush2.msra.mxu0 0.0
      %984 = vmatprep.subr.mxu0 0.0
      %985 = vmatpush2.msra.mxu0 0.0
      %986 = vmatprep.subr.mxu0 0.0
      %987 = vmatpush2.msra.mxu0 0.0
      %988 = vmatprep.subr.mxu0 0.0
      %989 = vmatpush2.msra.mxu0 0.0
      %990 = vmatprep.subr.mxu0 0.0
      %991 = vmatpush2.msra.mxu0 0.0
      %992 = vmatprep.subr.mxu0 0.0
      %993 = vmatpush2.msra.mxu0 0.0
      %994 = vmatprep.subr.mxu0 0.0
      %995 = vmatpush2.msra.mxu0 0.0
      %996 = vmatprep.subr.mxu0 0.0
      %997 = vmatpush2.msra.mxu0 0.0
      %998 = vmatprep.subr.mxu0 0.0
      %999 = vmatpush2.msra.mxu0 0.0
      %1000 = vmatprep.subr.mxu0 0.0
      %1001 = vmatpush2.msra.mxu0 0.0
      %1002 = vmatprep.subr.mxu0 0.0
      %1003 = vmatpush2.msra.mxu0 0.0
      %1004 = vmatprep.subr.mxu0 0.0
      %1005 = vmatpush2.msra.mxu0 0.0
      %1006 = vmatprep.subr.mxu0 0.0
      %1007 = vmatpush2.msra.mxu0 0.0
      %1008 = vmatprep.subr.mxu0 0.0
      %1009 = vmatpush2.msra.mxu0 0.0
      %1010 = vmatprep.mubr.f32.mxu0 0.0
      %1011 = vmatmul.mubr.f32.gmra.mxu0 %v944
      %v1012 = vpop.f32.mrf.mxu0
      %v1013 = vadd.f32 0.0, %v1012
      %v1014 = vpop.f32.mrf.mxu0
      %1015 = vdwg.mxu0
      %s1016 = scalar_lea.vmem %s4, 16
      %v1017 = vld [vmem:[%s1016] sm:$0xff]
      %v1019 = vsel %vm375, %v1013, 0
      %1021 = vmatprep.subr.mxu0 0.0
      %1022 = vmatpush1.msra.mxu0 0.0
      %1023 = vmatprep.subr.mxu0 0.0
      %1024 = vmatpush1.msra.mxu0 0.0
      %1025 = vmatprep.subr.mxu0 0.0
      %1026 = vmatpush1.msra.mxu0 0.0
      %1027 = vmatprep.subr.mxu0 0.0
      %1028 = vmatpush1.msra.mxu0 0.0
      %1029 = vmatprep.subr.mxu0 0.0
      %1030 = vmatpush1.msra.mxu0 0.0
      %1031 = vmatprep.subr.mxu0 0.0
      %1032 = vmatpush1.msra.mxu0 0.0
      %1033 = vmatprep.subr.mxu0 0.0
      %1034 = vmatpush1.msra.mxu0 0.0
      %1035 = vmatprep.subr.mxu0 0.0
      %1036 = vmatpush1.msra.mxu0 0.0
      %1037 = vmatprep.subr.mxu0 0.0
      %1038 = vmatpush1.msra.mxu0 0.0
      %1039 = vmatprep.subr.mxu0 0.0
      %1040 = vmatpush1.msra.mxu0 0.0
      %1041 = vmatprep.subr.mxu0 0.0
      %1042 = vmatpush1.msra.mxu0 0.0
      %1043 = vmatprep.subr.mxu0 0.0
      %1044 = vmatpush1.msra.mxu0 0.0
      %1045 = vmatprep.subr.mxu0 0.0
      %1046 = vmatpush1.msra.mxu0 0.0
      %1047 = vmatprep.subr.mxu0 0.0
      %1048 = vmatpush1.msra.mxu0 0.0
      %1049 = vmatprep.subr.mxu0 0.0
      %1050 = vmatpush1.msra.mxu0 0.0
      %1051 = vmatprep.subr.mxu0 0.0
      %1052 = vmatpush1.msra.mxu0 %v1017
      %1053 = vmatprep.subr.mxu0 0.0
      %1054 = vmatpush2.msra.mxu0 0.0
      %1055 = vmatprep.subr.mxu0 0.0
      %1056 = vmatpush2.msra.mxu0 0.0
      %1057 = vmatprep.subr.mxu0 0.0
      %1058 = vmatpush2.msra.mxu0 0.0
      %1059 = vmatprep.subr.mxu0 0.0
      %1060 = vmatpush2.msra.mxu0 0.0
      %1061 = vmatprep.subr.mxu0 0.0
      %1062 = vmatpush2.msra.mxu0 0.0
      %1063 = vmatprep.subr.mxu0 0.0
      %1064 = vmatpush2.msra.mxu0 0.0
      %1065 = vmatprep.subr.mxu0 0.0
      %1066 = vmatpush2.msra.mxu0 0.0
      %1067 = vmatprep.subr.mxu0 0.0
      %1068 = vmatpush2.msra.mxu0 0.0
      %1069 = vmatprep.subr.mxu0 0.0
      %1070 = vmatpush2.msra.mxu0 0.0
      %1071 = vmatprep.subr.mxu0 0.0
      %1072 = vmatpush2.msra.mxu0 0.0
      %1073 = vmatprep.subr.mxu0 0.0
      %1074 = vmatpush2.msra.mxu0 0.0
      %1075 = vmatprep.subr.mxu0 0.0
      %1076 = vmatpush2.msra.mxu0 0.0
      %1077 = vmatprep.subr.mxu0 0.0
      %1078 = vmatpush2.msra.mxu0 0.0
      %1079 = vmatprep.subr.mxu0 0.0
      %1080 = vmatpush2.msra.mxu0 0.0
      %1081 = vmatprep.subr.mxu0 0.0
      %1082 = vmatpush2.msra.mxu0 0.0
      %1083 = vmatprep.subr.mxu0 0.0
      %1084 = vmatpush2.msra.mxu0 0.0
      %1085 = vmatprep.mubr.f32.mxu0 0.0
      %1086 = vmatmul.mubr.f32.gmra.mxu0 %v1019
      %v1087 = vpop.f32.mrf.mxu0
      %v1088 = vadd.f32 0.0, %v1087
      %v1089 = vpop.f32.mrf.mxu0
      %1090 = vdwg.mxu0
      %v1091 = vadd.f32 %v854, %v1088
      %v1093 = vsel %vm375, %v365, 0
      %v1096 = vsel %vm375, %v369, 0
      %1098 = vmatprep.subr.mxu0 0.0
      %1099 = vmatpush1.xpose.msra.mxu0 0.0
      %1100 = vmatprep.subr.mxu0 0.0
      %1101 = vmatpush1.xpose.msra.mxu0 0.0
      %1102 = vmatprep.subr.mxu0 0.0
      %1103 = vmatpush1.xpose.msra.mxu0 0.0
      %1104 = vmatprep.subr.mxu0 0.0
      %1105 = vmatpush1.xpose.msra.mxu0 0.0
      %1106 = vmatprep.subr.mxu0 0.0
      %1107 = vmatpush1.xpose.msra.mxu0 0.0
      %1108 = vmatprep.subr.mxu0 0.0
      %1109 = vmatpush1.xpose.msra.mxu0 0.0
      %1110 = vmatprep.subr.mxu0 0.0
      %1111 = vmatpush1.xpose.msra.mxu0 0.0
      %1112 = vmatprep.subr.mxu0 0.0
      %1113 = vmatpush1.xpose.msra.mxu0 0.0
      %1114 = vmatprep.subr.mxu0 0.0
      %1115 = vmatpush1.xpose.msra.mxu0 0.0
      %1116 = vmatprep.subr.mxu0 0.0
      %1117 = vmatpush1.xpose.msra.mxu0 0.0
      %1118 = vmatprep.subr.mxu0 0.0
      %1119 = vmatpush1.xpose.msra.mxu0 0.0
      %1120 = vmatprep.subr.mxu0 0.0
      %1121 = vmatpush1.xpose.msra.mxu0 0.0
      %1122 = vmatprep.subr.mxu0 0.0
      %1123 = vmatpush1.xpose.msra.mxu0 0.0
      %1124 = vmatprep.subr.mxu0 0.0
      %1125 = vmatpush1.xpose.msra.mxu0 0.0
      %1126 = vmatprep.subr.mxu0 0.0
      %1127 = vmatpush1.xpose.msra.mxu0 0.0
      %1128 = vmatprep.subr.mxu0 0.0
      %1129 = vmatpush1.xpose.msra.mxu0 %v1096
      %1130 = vmatprep.subr.mxu0 0.0
      %1131 = vmatpush2.xpose.msra.mxu0 0.0
      %1132 = vmatprep.subr.mxu0 0.0
      %1133 = vmatpush2.xpose.msra.mxu0 0.0
      %1134 = vmatprep.subr.mxu0 0.0
      %1135 = vmatpush2.xpose.msra.mxu0 0.0
      %1136 = vmatprep.subr.mxu0 0.0
      %1137 = vmatpush2.xpose.msra.mxu0 0.0
      %1138 = vmatprep.subr.mxu0 0.0
      %1139 = vmatpush2.xpose.msra.mxu0 0.0
      %1140 = vmatprep.subr.mxu0 0.0
      %1141 = vmatpush2.xpose.msra.mxu0 0.0
      %1142 = vmatprep.subr.mxu0 0.0
      %1143 = vmatpush2.xpose.msra.mxu0 0.0
      %1144 = vmatprep.subr.mxu0 0.0
      %1145 = vmatpush2.xpose.msra.mxu0 0.0
      %1146 = vmatprep.subr.mxu0 0.0
      %1147 = vmatpush2.xpose.msra.mxu0 0.0
      %1148 = vmatprep.subr.mxu0 0.0
      %1149 = vmatpush2.xpose.msra.mxu0 0.0
      %1150 = vmatprep.subr.mxu0 0.0
      %1151 = vmatpush2.xpose.msra.mxu0 0.0
      %1152 = vmatprep.subr.mxu0 0.0
      %1153 = vmatpush2.xpose.msra.mxu0 0.0
      %1154 = vmatprep.subr.mxu0 0.0
      %1155 = vmatpush2.xpose.msra.mxu0 0.0
      %1156 = vmatprep.subr.mxu0 0.0
      %1157 = vmatpush2.xpose.msra.mxu0 0.0
      %1158 = vmatprep.subr.mxu0 0.0
      %1159 = vmatpush2.xpose.msra.mxu0 0.0
      %1160 = vmatprep.subr.mxu0 0.0
      %1161 = vmatpush2.xpose.msra.mxu0 0.0
      %1162 = vmatprep.mubr.f32.mxu0 0.0
      %1163 = vmatmul.mubr.f32.gmra.mxu0 %v1093
      %v1164 = vpop.f32.mrf.mxu0
      %v1165 = vadd.f32 0.0, %v1164
      %v1166 = vpop.f32.mrf.mxu0
      %1167 = vdwg.mxu0
      %v1168 = vmul.f32 %v1165, 0.35355338
      %v1169 = vsel %vm375, %v1168, -inf
      %1170 = vmax.xlane.f32.xlu0 %v1169
      %v1171 = vpop.xlane.xlu0 %1170
      %v1172 = vsub.f32 %v1168, %v1171
      %v1173 = vmul.f32 %v1172, 1.442695
      %v1174 = vpow.pop %v1173
      %v1175 = vsel %vm375, %v1174, 0.0
      %1176 = vadd.xlane.f32.xlu0 %v1175
      %v1177 = vpop.xlane.xlu0 %1176
      %v1178 = vrcp.pop %v1177
      %v1179 = vmul.f32 %v1174, %v1178
      %v1181 = vsel %vm375, %v1179, 0
      %1183 = vmatprep.subr.mxu0 0.0
      %1184 = vmatpush1.msra.mxu0 0.0
      %1185 = vmatprep.subr.mxu0 0.0
      %1186 = vmatpush1.msra.mxu0 0.0
      %1187 = vmatprep.subr.mxu0 0.0
      %1188 = vmatpush1.msra.mxu0 0.0
      %1189 = vmatprep.subr.mxu0 0.0
      %1190 = vmatpush1.msra.mxu0 0.0
      %1191 = vmatprep.subr.mxu0 0.0
      %1192 = vmatpush1.msra.mxu0 0.0
      %1193 = vmatprep.subr.mxu0 0.0
      %1194 = vmatpush1.msra.mxu0 0.0
      %1195 = vmatprep.subr.mxu0 0.0
      %1196 = vmatpush1.msra.mxu0 0.0
      %1197 = vmatprep.subr.mxu0 0.0
      %1198 = vmatpush1.msra.mxu0 0.0
      %1199 = vmatprep.subr.mxu0 0.0
      %1200 = vmatpush1.msra.mxu0 0.0
      %1201 = vmatprep.subr.mxu0 0.0
      %1202 = vmatpush1.msra.mxu0 0.0
      %1203 = vmatprep.subr.mxu0 0.0
      %1204 = vmatpush1.msra.mxu0 0.0
      %1205 = vmatprep.subr.mxu0 0.0
      %1206 = vmatpush1.msra.mxu0 0.0
      %1207 = vmatprep.subr.mxu0 0.0
      %1208 = vmatpush1.msra.mxu0 0.0
      %1209 = vmatprep.subr.mxu0 0.0
      %1210 = vmatpush1.msra.mxu0 0.0
      %1211 = vmatprep.subr.mxu0 0.0
      %1212 = vmatpush1.msra.mxu0 0.0
      %1213 = vmatprep.subr.mxu0 0.0
      %1214 = vmatpush1.msra.mxu0 %v373
      %1215 = vmatprep.subr.mxu0 0.0
      %1216 = vmatpush2.msra.mxu0 0.0
      %1217 = vmatprep.subr.mxu0 0.0
      %1218 = vmatpush2.msra.mxu0 0.0
      %1219 = vmatprep.subr.mxu0 0.0
      %1220 = vmatpush2.msra.mxu0 0.0
      %1221 = vmatprep.subr.mxu0 0.0
      %1222 = vmatpush2.msra.mxu0 0.0
      %1223 = vmatprep.subr.mxu0 0.0
      %1224 = vmatpush2.msra.mxu0 0.0
      %1225 = vmatprep.subr.mxu0 0.0
      %1226 = vmatpush2.msra.mxu0 0.0
      %1227 = vmatprep.subr.mxu0 0.0
      %1228 = vmatpush2.msra.mxu0 0.0
      %1229 = vmatprep.subr.mxu0 0.0
      %1230 = vmatpush2.msra.mxu0 0.0
      %1231 = vmatprep.subr.mxu0 0.0
      %1232 = vmatpush2.msra.mxu0 0.0
      %1233 = vmatprep.subr.mxu0 0.0
      %1234 = vmatpush2.msra.mxu0 0.0
      %1235 = vmatprep.subr.mxu0 0.0
      %1236 = vmatpush2.msra.mxu0 0.0
      %1237 = vmatprep.subr.mxu0 0.0
      %1238 = vmatpush2.msra.mxu0 0.0
      %1239 = vmatprep.subr.mxu0 0.0
      %1240 = vmatpush2.msra.mxu0 0.0
      %1241 = vmatprep.subr.mxu0 0.0
      %1242 = vmatpush2.msra.mxu0 0.0
      %1243 = vmatprep.subr.mxu0 0.0
      %1244 = vmatpush2.msra.mxu0 0.0
      %1245 = vmatprep.subr.mxu0 0.0
      %1246 = vmatpush2.msra.mxu0 0.0
      %1247 = vmatprep.mubr.f32.mxu0 0.0
      %1248 = vmatmul.mubr.f32.gmra.mxu0 %v1181
      %v1249 = vpop.f32.mrf.mxu0
      %v1250 = vadd.f32 0.0, %v1249
      %v1251 = vpop.f32.mrf.mxu0
      %1252 = vdwg.mxu0
      %s1253 = scalar_lea.vmem %s4, 24
      %v1254 = vld [vmem:[%s1253] sm:$0xff]
      %v1256 = vsel %vm375, %v1250, 0
      %1258 = vmatprep.subr.mxu0 0.0
      %1259 = vmatpush1.msra.mxu0 0.0
      %1260 = vmatprep.subr.mxu0 0.0
      %1261 = vmatpush1.msra.mxu0 0.0
      %1262 = vmatprep.subr.mxu0 0.0
      %1263 = vmatpush1.msra.mxu0 0.0
      %1264 = vmatprep.subr.mxu0 0.0
      %1265 = vmatpush1.msra.mxu0 0.0
      %1266 = vmatprep.subr.mxu0 0.0
      %1267 = vmatpush1.msra.mxu0 0.0
      %1268 = vmatprep.subr.mxu0 0.0
      %1269 = vmatpush1.msra.mxu0 0.0
      %1270 = vmatprep.subr.mxu0 0.0
      %1271 = vmatpush1.msra.mxu0 0.0
      %1272 = vmatprep.subr.mxu0 0.0
      %1273 = vmatpush1.msra.mxu0 0.0
      %1274 = vmatprep.subr.mxu0 0.0
      %1275 = vmatpush1.msra.mxu0 0.0
      %1276 = vmatprep.subr.mxu0 0.0
      %1277 = vmatpush1.msra.mxu0 0.0
      %1278 = vmatprep.subr.mxu0 0.0
      %1279 = vmatpush1.msra.mxu0 0.0
      %1280 = vmatprep.subr.mxu0 0.0
      %1281 = vmatpush1.msra.mxu0 0.0
      %1282 = vmatprep.subr.mxu0 0.0
      %1283 = vmatpush1.msra.mxu0 0.0
      %1284 = vmatprep.subr.mxu0 0.0
      %1285 = vmatpush1.msra.mxu0 0.0
      %1286 = vmatprep.subr.mxu0 0.0
      %1287 = vmatpush1.msra.mxu0 0.0
      %1288 = vmatprep.subr.mxu0 0.0
      %1289 = vmatpush1.msra.mxu0 %v1254
      %1290 = vmatprep.subr.mxu0 0.0
      %1291 = vmatpush2.msra.mxu0 0.0
      %1292 = vmatprep.subr.mxu0 0.0
      %1293 = vmatpush2.msra.mxu0 0.0
      %1294 = vmatprep.subr.mxu0 0.0
      %1295 = vmatpush2.msra.mxu0 0.0
      %1296 = vmatprep.subr.mxu0 0.0
      %1297 = vmatpush2.msra.mxu0 0.0
      %1298 = vmatprep.subr.mxu0 0.0
      %1299 = vmatpush2.msra.mxu0 0.0
      %1300 = vmatprep.subr.mxu0 0.0
      %1301 = vmatpush2.msra.mxu0 0.0
      %1302 = vmatprep.subr.mxu0 0.0
      %1303 = vmatpush2.msra.mxu0 0.0
      %1304 = vmatprep.subr.mxu0 0.0
      %1305 = vmatpush2.msra.mxu0 0.0
      %1306 = vmatprep.subr.mxu0 0.0
      %1307 = vmatpush2.msra.mxu0 0.0
      %1308 = vmatprep.subr.mxu0 0.0
      %1309 = vmatpush2.msra.mxu0 0.0
      %1310 = vmatprep.subr.mxu0 0.0
      %1311 = vmatpush2.msra.mxu0 0.0
      %1312 = vmatprep.subr.mxu0 0.0
      %1313 = vmatpush2.msra.mxu0 0.0
      %1314 = vmatprep.subr.mxu0 0.0
      %1315 = vmatpush2.msra.mxu0 0.0
      %1316 = vmatprep.subr.mxu0 0.0
      %1317 = vmatpush2.msra.mxu0 0.0
      %1318 = vmatprep.subr.mxu0 0.0
      %1319 = vmatpush2.msra.mxu0 0.0
      %1320 = vmatprep.subr.mxu0 0.0
      %1321 = vmatpush2.msra.mxu0 0.0
      %1322 = vmatprep.mubr.f32.mxu0 0.0
      %1323 = vmatmul.mubr.f32.gmra.mxu0 %v1256
      %v1324 = vpop.f32.mrf.mxu0
      %v1325 = vadd.f32 0.0, %v1324
      %v1326 = vpop.f32.mrf.mxu0
      %1327 = vdwg.mxu0
      %v1328 = vadd.f32 %v1091, %v1325
      %v1329 = vadd.f32 %v361, %v1328
      %v1330 = vld [vmem:[%s6] sm:$0x1]
      %v1331 = vld [vmem:[%s7] sm:$0x1]
      %vm1332 = vcmask 261120
      %v1333 = vsel %vm1332, %v1329, 0.0
      %1334 = vadd.xlane.f32.xlu0 %v1333
      %v1335 = vpop.xlane.xlu0 %1334
      %v1336 = vmul.f32 %v1335, 0.03125
      %v1337 = vsub.f32 %v1329, %v1336
      %v1338 = vmul.f32 %v1337, %v1337
      %v1339 = vsel %vm1332, %v1338, 0.0
      %1340 = vadd.xlane.f32.xlu0 %v1339
      %v1341 = vpop.xlane.xlu0 %1340
      %v1342 = vmul.f32 %v1341, 0.03125
      %v1343 = vadd.f32 %v1342, 1e-05
      %v1344 = vrsqrt.pop %v1343
      %v1345 = vmul.f32 %v1337, %v1344
      %v1347 = vlaneseq
      %v1348 = vshrl.u32 %v1347, 7
      %v1349 = vsub.s32 0, %v1348
      %v1350 = vrot.slane %v1330, %v1349
      %v1352 = vmul.f32 %v1345, %v1350
      %v1354 = vlaneseq
      %v1355 = vshrl.u32 %v1354, 7
      %v1356 = vsub.s32 0, %v1355
      %v1357 = vrot.slane %v1331, %v1356
      %v1359 = vadd.f32 %v1352, %v1357
      %1360 = vst.msk [vmem:[%s360] sm:$0xff] %vm1332, %v1359
      %p1361 = scmp.lt.s32.totalorder %s19, 1
      %s1362 = scalar_select %p1361, %s19, 1
      %s1363 = smul.addr %s1362, 8
      %s1364 = scalar_lea.vmem %s8, %s1363
      // Predicated region
      $region53: #{transformer_encoder_extractor_forward.9} parent=51 // pred_check
        %p1365 = pneg %p225
      $region54: #{transformer_encoder_extractor_forward.9} parent=51 // pred_check_branch
        %1367 = sbr.rel (%p1365) target = $region56
      $region55: #{transformer_encoder_extractor_forward.9} parent=51 // pred_region
        _
      $region56: #{transformer_encoder_extractor_forward.9} parent=51 // pred_fallthru
        _
    $region52: #{transformer_encoder_extractor_forward.9} parent=5 // pred_fallthru
      _
    %p1368 = scmp.le.s32.totalorder 2, %s14
    // Predicated region
    $region57: #{transformer_encoder_extractor_forward.9} parent=5 // pred_check
      %p1369 = pneg %p1368
    $region58: #{transformer_encoder_extractor_forward.9} parent=5 // pred_check_branch
      %1371 = sbr.rel (%p1369) target = $region60
    $region59: #{transformer_encoder_extractor_forward.9} parent=5 // pred_region
      %s1372 = ssub.s32 %s14, 2
      // Predicated region
      $region61: #{transformer_encoder_extractor_forward.9} parent=59 // pred_check
        %p1373 = pneg %p231
      $region62: #{transformer_encoder_extractor_forward.9} parent=59 // pred_check_branch
        %1375 = sbr.rel (%p1373) target = $region64
      $region63: #{transformer_encoder_extractor_forward.9} parent=59 // pred_region
        %p1376 = scmp.lt.s32.totalorder %s20, 1
        %s1377 = scalar_select %p1376, %s20, 1
        %s1378 = smul.addr %s1377, 8
        %s1379 = scalar_lea.vmem %s8, %s1378
      $region64: #{transformer_encoder_extractor_forward.9} parent=59 // pred_fallthru
        _
    $region60: #{transformer_encoder_extractor_forward.9} parent=5 // pred_fallthru
      _
  $region6: #{transformer_encoder_extractor_forward.9} parent=0 // loop_footer
    %s18 = sadd.s32 1, %s14
  $region7: #{transformer_encoder_extractor_forward.9} parent=0 // loop_footer_branch
    %13 = sbr.rel target = $region3
  $region8: #{transformer_encoder_extractor_forward.9} parent=0 // loop_exit
    _

// kernel: transformer_encoder_extractor_forward.13
$region0: #{transformer_encoder_extractor_forward.13}
  #allocation0 [shape = 'u32[]', space=smem, size = 0x4, offset = 0x4, fixed_abs, tag = 'smem constant byte address 0x4 - core index']
  #allocation1 [shape = 'u32[144,128]{1,0:T(1,128)}', space=vmem, size = 0x12000, scoped, tag = 'internal scratch']
  %s0 = inlined_call_operand.vmem [shape: f32[16,32], index: 0, kind: input, shape index: {}]
  %s1 = inlined_call_operand.vmem [shape: f32[32,64], index: 1, kind: input, shape index: {}]
  %s2 = inlined_call_operand.vmem [shape: f32[1,64], index: 2, kind: input, shape index: {}]
  %s3 = inlined_call_operand.vmem [shape: f32[64,32], index: 3, kind: input, shape index: {}]
  %s4 = inlined_call_operand.vmem [shape: f32[1,32], index: 4, kind: input, shape index: {}]
  %s5 = inlined_call_operand.vmem [shape: f32[1,32], index: 5, kind: input, shape index: {}]
  %s6 = inlined_call_operand.vmem [shape: f32[1,32], index: 6, kind: input, shape index: {}]
  %s7 = inlined_call_operand.hbm [shape: f32[16,32], index: 7, kind: output, shape index: {}]
  %s8 = sld [smem:[#allocation0]]
  $region38: #{transformer_encoder_extractor_forward.13} parent=0
    _
  %s10 = ssub.s32 1, %s8
  %s11 = scalar_select 0, %s10, %s8
  $region1: #{transformer_encoder_extractor_forward.13} parent=0
    #allocation2 [shape = 'u8[8192]{0}', space=vmem, size = 0x2000, scoped, tag = 'output window, operand 0, single buffered']
    #allocation3 [shape = 's32[1]{0}', space=sflag, size = 0x4, scoped, tag = 'scoped memory for transformer_encoder_extractor_forward.13']
    %12 = vsyncpa [#allocation3], 0
    // Predicated region
    $region2: #{transformer_encoder_extractor_forward.13} parent=1 // pred_check
      _
    $region3: #{transformer_encoder_extractor_forward.13} parent=1 // pred_check_branch
      %14 = sbr.rel (0) target = $region5
    $region4: #{transformer_encoder_extractor_forward.13} parent=1 // pred_region
      _
    $region5: #{transformer_encoder_extractor_forward.13} parent=1 // pred_fallthru
      _
    // Predicated region
    $region6: #{transformer_encoder_extractor_forward.13} parent=1 // pred_check
      _
    $region7: #{transformer_encoder_extractor_forward.13} parent=1 // pred_check_branch
      %16 = sbr.rel (0) target = $region9
    $region8: #{transformer_encoder_extractor_forward.13} parent=1 // pred_region
      _
    $region9: #{transformer_encoder_extractor_forward.13} parent=1 // pred_fallthru
      _
    // Predicated region
    $region10: #{transformer_encoder_extractor_forward.13} parent=1 // pred_check
      _
    $region11: #{transformer_encoder_extractor_forward.13} parent=1 // pred_check_branch
      %18 = sbr.rel (0) target = $region13
    $region12: #{transformer_encoder_extractor_forward.13} parent=1 // pred_region
      _
    $region13: #{transformer_encoder_extractor_forward.13} parent=1 // pred_fallthru
      _
    // Predicated region
    $region14: #{transformer_encoder_extractor_forward.13} parent=1 // pred_check
      _
    $region15: #{transformer_encoder_extractor_forward.13} parent=1 // pred_check_branch
      %20 = sbr.rel (0) target = $region17
    $region16: #{transformer_encoder_extractor_forward.13} parent=1 // pred_region
      _
    $region17: #{transformer_encoder_extractor_forward.13} parent=1 // pred_fallthru
      _
    // Predicated region
    $region18: #{transformer_encoder_extractor_forward.13} parent=1 // pred_check
      _
    $region19: #{transformer_encoder_extractor_forward.13} parent=1 // pred_check_branch
      %22 = sbr.rel (0) target = $region21
    $region20: #{transformer_encoder_extractor_forward.13} parent=1 // pred_region
      _
    $region21: #{transformer_encoder_extractor_forward.13} parent=1 // pred_fallthru
      _
    // Predicated region
    $region22: #{transformer_encoder_extractor_forward.13} parent=1 // pred_check
      _
    $region23: #{transformer_encoder_extractor_forward.13} parent=1 // pred_check_branch
      %24 = sbr.rel (0) target = $region25
    $region24: #{transformer_encoder_extractor_forward.13} parent=1 // pred_region
      _
    $region25: #{transformer_encoder_extractor_forward.13} parent=1 // pred_fallthru
      _
    // Predicated region
    $region26: #{transformer_encoder_extractor_forward.13} parent=1 // pred_check
      _
    $region27: #{transformer_encoder_extractor_forward.13} parent=1 // pred_check_branch
      %26 = sbr.rel (0) target = $region29
    $region28: #{transformer_encoder_extractor_forward.13} parent=1 // pred_region
      _
    $region29: #{transformer_encoder_extractor_forward.13} parent=1 // pred_fallthru
      _
    %v27 = vld [vmem:[%s0] sm:$0xff]
    %v28 = vld [vmem:[%s0 + $0x8] sm:$0xff]
    %v29 = vld [vmem:[%s1] sm:$0xff]
    %v30 = vld [vmem:[%s1 + $0x8] sm:$0xff]
    %v31 = vld [vmem:[%s1 + $0x10] sm:$0xff]
    %v32 = vld [vmem:[%s1 + $0x18] sm:$0xff]
    %v33 = vld [vmem:[%s2] sm:$0x1]
    %v35 = vlaneseq
    %v36 = vshrl.u32 %v35, 7
    %v37 = vsub.s32 0, %v36
    %v38 = vrot.slane %v33, %v37
    %vm40 = vcmask 261120
    %v42 = vsel %vm40, %v27, 0
    %v45 = vsel %vm40, %v28, 0
    %47 = vmatprep.subr.mxu0 0.0
    %48 = vmatpush1.msra.mxu0 0.0
    %49 = vmatprep.subr.mxu0 0.0
    %50 = vmatpush1.msra.mxu0 0.0
    %51 = vmatprep.subr.mxu0 0.0
    %52 = vmatpush1.msra.mxu0 0.0
    %53 = vmatprep.subr.mxu0 0.0
    %54 = vmatpush1.msra.mxu0 0.0
    %55 = vmatprep.subr.mxu0 0.0
    %56 = vmatpush1.msra.mxu0 0.0
    %57 = vmatprep.subr.mxu0 0.0
    %58 = vmatpush1.msra.mxu0 0.0
    %59 = vmatprep.subr.mxu0 0.0
    %60 = vmatpush1.msra.mxu0 0.0
    %61 = vmatprep.subr.mxu0 0.0
    %62 = vmatpush1.msra.mxu0 0.0
    %63 = vmatprep.subr.mxu0 0.0
    %64 = vmatpush1.msra.mxu0 0.0
    %65 = vmatprep.subr.mxu0 0.0
    %66 = vmatpush1.msra.mxu0 0.0
    %67 = vmatprep.subr.mxu0 0.0
    %68 = vmatpush1.msra.mxu0 0.0
    %69 = vmatprep.subr.mxu0 0.0
    %70 = vmatpush1.msra.mxu0 0.0
    %71 = vmatprep.subr.mxu0 0.0
    %72 = vmatpush1.msra.mxu0 %v32
    %73 = vmatprep.subr.mxu0 0.0
    %74 = vmatpush1.msra.mxu0 %v31
    %75 = vmatprep.subr.mxu0 0.0
    %76 = vmatpush1.msra.mxu0 %v30
    %77 = vmatprep.subr.mxu0 0.0
    %78 = vmatpush1.msra.mxu0 %v29
    %79 = vmatprep.subr.mxu0 0.0
    %80 = vmatpush2.msra.mxu0 0.0
    %81 = vmatprep.subr.mxu0 0.0
    %82 = vmatpush2.msra.mxu0 0.0
    %83 = vmatprep.subr.mxu0 0.0
    %84 = vmatpush2.msra.mxu0 0.0
    %85 = vmatprep.subr.mxu0 0.0
    %86 = vmatpush2.msra.mxu0 0.0
    %87 = vmatprep.subr.mxu0 0.0
    %88 = vmatpush2.msra.mxu0 0.0
    %89 = vmatprep.subr.mxu0 0.0
    %90 = vmatpush2.msra.mxu0 0.0
    %91 = vmatprep.subr.mxu0 0.0
    %92 = vmatpush2.msra.mxu0 0.0
    %93 = vmatprep.subr.mxu0 0.0
    %94 = vmatpush2.msra.mxu0 0.0
    %95 = vmatprep.subr.mxu0 0.0
    %96 = vmatpush2.msra.mxu0 0.0
    %97 = vmatprep.subr.mxu0 0.0
    %98 = vmatpush2.msra.mxu0 0.0
    %99 = vmatprep.subr.mxu0 0.0
    %100 = vmatpush2.msra.mxu0 0.0
    %101 = vmatprep.subr.mxu0 0.0
    %102 = vmatpush2.msra.mxu0 0.0
    %103 = vmatprep.subr.mxu0 0.0
    %104 = vmatpush2.msra.mxu0 0.0
    %105 = vmatprep.subr.mxu0 0.0
    %106 = vmatpush2.msra.mxu0 0.0
    %107 = vmatprep.subr.mxu0 0.0
    %108 = vmatpush2.msra.mxu0 0.0
    %109 = vmatprep.subr.mxu0 0.0
    %110 = vmatpush2.msra.mxu0 0.0
    %111 = vmatprep.mubr.f32.mxu0 0.0
    %112 = vmatmul.mubr.f32.gmra.mxu0 %v42
    %v113 = vpop.f32.mrf.mxu0
    %v114 = vadd.f32 %v38, %v113
    %v115 = vpop.f32.mrf.mxu0
    %116 = vmatprep.mubr.f32.mxu0 0.0
    %117 = vmatmul.mubr.f32.gmra.mxu0 %v45
    %v118 = vpop.f32.mrf.mxu0
    %v119 = vadd.f32 %v38, %v118
    %v120 = vpop.f32.mrf.mxu0
    %121 = vdwg.mxu0
    %v122 = vmax.f32 %v114, 0.0
    %v123 = vmax.f32 %v119, 0.0
    %v124 = vld [vmem:[%s3] sm:$0xff]
    %v125 = vld [vmem:[%s3 + $0x8] sm:$0xff]
    %v126 = vld [vmem:[%s3 + $0x10] sm:$0xff]
    %v127 = vld [vmem:[%s3 + $0x18] sm:$0xff]
    %v128 = vld [vmem:[%s3 + $0x20] sm:$0xff]
    %v129 = vld [vmem:[%s3 + $0x28] sm:$0xff]
    %v130 = vld [vmem:[%s3 + $0x30] sm:$0xff]
    %v131 = vld [vmem:[%s3 + $0x38] sm:$0xff]
    %v132 = vld [vmem:[%s4] sm:$0x1]
    %v134 = vlaneseq
    %v135 = vshrl.u32 %v134, 7
    %v136 = vsub.s32 0, %v135
    %v137 = vrot.slane %v132, %v136
    %vm139 = vcmask 523264
    %v141 = vsel %vm139, %v122, 0
    %v144 = vsel %vm139, %v123, 0
    %146 = vmatprep.subr.mxu0 0.0
    %147 = vmatpush1.msra.mxu0 0.0
    %148 = vmatprep.subr.mxu0 0.0
    %149 = vmatpush1.msra.mxu0 0.0
    %150 = vmatprep.subr.mxu0 0.0
    %151 = vmatpush1.msra.mxu0 0.0
    %152 = vmatprep.subr.mxu0 0.0
    %153 = vmatpush1.msra.mxu0 0.0
    %154 = vmatprep.subr.mxu0 0.0
    %155 = vmatpush1.msra.mxu0 0.0
    %156 = vmatprep.subr.mxu0 0.0
    %157 = vmatpush1.msra.mxu0 0.0
    %158 = vmatprep.subr.mxu0 0.0
    %159 = vmatpush1.msra.mxu0 0.0
    %160 = vmatprep.subr.mxu0 0.0
    %161 = vmatpush1.msra.mxu0 0.0
    %162 = vmatprep.subr.mxu0 0.0
    %163 = vmatpush1.msra.mxu0 %v131
    %164 = vmatprep.subr.mxu0 0.0
    %165 = vmatpush1.msra.mxu0 %v130
    %166 = vmatprep.subr.mxu0 0.0
    %167 = vmatpush1.msra.mxu0 %v129
    %168 = vmatprep.subr.mxu0 0.0
    %169 = vmatpush1.msra.mxu0 %v128
    %170 = vmatprep.subr.mxu0 0.0
    %171 = vmatpush1.msra.mxu0 %v127
    %172 = vmatprep.subr.mxu0 0.0
    %173 = vmatpush1.msra.mxu0 %v126
    %174 = vmatprep.subr.mxu0 0.0
    %175 = vmatpush1.msra.mxu0 %v125
    %176 = vmatprep.subr.mxu0 0.0
    %177 = vmatpush1.msra.mxu0 %v124
    %178 = vmatprep.subr.mxu0 0.0
    %179 = vmatpush2.msra.mxu0 0.0
    %180 = vmatprep.subr.mxu0 0.0
    %181 = vmatpush2.msra.mxu0 0.0
    %182 = vmatprep.subr.mxu0 0.0
    %183 = vmatpush2.msra.mxu0 0.0
    %184 = vmatprep.subr.mxu0 0.0
    %185 = vmatpush2.msra.mxu0 0.0
    %186 = vmatprep.subr.mxu0 0.0
    %187 = vmatpush2.msra.mxu0 0.0
    %188 = vmatprep.subr.mxu0 0.0
    %189 = vmatpush2.msra.mxu0 0.0
    %190 = vmatprep.subr.mxu0 0.0
    %191 = vmatpush2.msra.mxu0 0.0
    %192 = vmatprep.subr.mxu0 0.0
    %193 = vmatpush2.msra.mxu0 0.0
    %194 = vmatprep.subr.mxu0 0.0
    %195 = vmatpush2.msra.mxu0 0.0
    %196 = vmatprep.subr.mxu0 0.0
    %197 = vmatpush2.msra.mxu0 0.0
    %198 = vmatprep.subr.mxu0 0.0
    %199 = vmatpush2.msra.mxu0 0.0
    %200 = vmatprep.subr.mxu0 0.0
    %201 = vmatpush2.msra.mxu0 0.0
    %202 = vmatprep.subr.mxu0 0.0
    %203 = vmatpush2.msra.mxu0 0.0
    %204 = vmatprep.subr.mxu0 0.0
    %205 = vmatpush2.msra.mxu0 0.0
    %206 = vmatprep.subr.mxu0 0.0
    %207 = vmatpush2.msra.mxu0 0.0
    %208 = vmatprep.subr.mxu0 0.0
    %209 = vmatpush2.msra.mxu0 0.0
    %210 = vmatprep.mubr.f32.mxu0 0.0
    %211 = vmatmul.mubr.f32.gmra.mxu0 %v141
    %v212 = vpop.f32.mrf.mxu0
    %v213 = vadd.f32 %v137, %v212
    %v214 = vpop.f32.mrf.mxu0
    %215 = vmatprep.mubr.f32.mxu0 0.0
    %216 = vmatmul.mubr.f32.gmra.mxu0 %v144
    %v217 = vpop.f32.mrf.mxu0
    %v218 = vadd.f32 %v137, %v217
    %v219 = vpop.f32.mrf.mxu0
    %220 = vdwg.mxu0
    %v221 = vadd.f32 %v27, %v213
    %v222 = vadd.f32 %v28, %v218
    %v223 = vld [vmem:[%s5] sm:$0x1]
    %v224 = vld [vmem:[%s6] sm:$0x1]
    %v225 = vsel %vm40, %v221, 0.0
    %226 = vadd.xlane.f32.xlu0 %v225
    %v227 = vpop.xlane.xlu0 %226
    %v228 = vsel %vm40, %v222, 0.0
    %229 = vadd.xlane.f32.xlu0 %v228
    %v230 = vpop.xlane.xlu0 %229
    %v231 = vmul.f32 %v227, 0.03125
    %v232 = vmul.f32 %v230, 0.03125
    %v233 = vsub.f32 %v221, %v231
    %v234 = vsub.f32 %v222, %v232
    %v235 = vmul.f32 %v233, %v233
    %v236 = vmul.f32 %v234, %v234
    %v237 = vsel %vm40, %v235, 0.0
    %238 = vadd.xlane.f32.xlu0 %v237
    %v239 = vpop.xlane.xlu0 %238
    %v240 = vsel %vm40, %v236, 0.0
    %241 = vadd.xlane.f32.xlu0 %v240
    %v242 = vpop.xlane.xlu0 %241
    %v243 = vmul.f32 %v239, 0.03125
    %v244 = vmul.f32 %v242, 0.03125
    %v245 = vadd.f32 %v243, 1e-05
    %v246 = vadd.f32 %v244, 1e-05
    %v247 = vrsqrt.pop %v245
    %v248 = vrsqrt.pop %v246
    %v249 = vmul.f32 %v233, %v247
    %v250 = vmul.f32 %v234, %v248
    %v252 = vlaneseq
    %v253 = vshrl.u32 %v252, 7
    %v254 = vsub.s32 0, %v253
    %v255 = vrot.slane %v223, %v254
    %v257 = vmul.f32 %v249, %v255
    %v258 = vmul.f32 %v250, %v255
    %v260 = vlaneseq
    %v261 = vshrl.u32 %v260, 7
    %v262 = vsub.s32 0, %v261
    %v263 = vrot.slane %v224, %v262
    %v265 = vadd.f32 %v257, %v263
    %v266 = vadd.f32 %v258, %v263
    %267 = vst.msk [vmem:[#allocation2] sm:$0xff] %vm40, %v265
    %268 = vst.msk [vmem:[#allocation2 + $0x8] sm:$0xff] %vm40, %v266
    // Predicated region
    $region30: #{transformer_encoder_extractor_forward.13} parent=1 // pred_check
      _
    $region31: #{transformer_encoder_extractor_forward.13} parent=1 // pred_check_branch
      %270 = sbr.rel (0) target = $region33
    $region32: #{transformer_encoder_extractor_forward.13} parent=1 // pred_region
      %s272 = ssub.s32 256, 256
      %273 = vsyncadd [#allocation3], %s272
      %s274 = sshll.u32 [#allocation2], 4
      %s275 = int_to_ptr.vmem [resolvable:$true] %s274
      %280 = dma.vmem_to_hbm [thread:$0]  %s275, 256, %s7, [#allocation3], 128, 128, 8
    $region33: #{transformer_encoder_extractor_forward.13} parent=1 // pred_fallthru
      _
    // Predicated region
    $region34: #{transformer_encoder_extractor_forward.13} parent=1 // pred_check
      _
    $region35: #{transformer_encoder_extractor_forward.13} parent=1 // pred_check_branch
      %282 = sbr.rel (0) target = $region37
    $region36: #{transformer_encoder_extractor_forward.13} parent=1 // pred_region
      %283 = dma.done [#allocation3], 256
    $region37: #{transformer_encoder_extractor_forward.13} parent=1 // pred_fallthru
      _
    %284 = vsyncpa [#allocation3], 1

</llo_original>
